<compile_context>
chip_gen: v6e
topology: v6e:2x2x1
jax: 0.10.0
libtpu: 0.0.40
codegen_flags: <defaults>
</compile_context>

<pallas_src>
import numpy as np
import jax
import jax.numpy as jnp
from jax import lax
from jax.experimental import pallas as pl
from jax.experimental.pallas import tpu as pltpu

# ----- static model configuration (MiniGrid-style 7x7x3 obs, 7 actions) -----
B = 2
N = M = 7          # obs_space['image'] spatial dims
CIN = 3
ACTIONS = 7        # action_space.n
HIDDEN = 128       # WorldsPolicyModel hidden_size default
MEMSIZE = 128      # WorldsPolicyModel memory_size default
EPS = 1e-5         # BatchNorm2d eps (PyTorch default); training-mode batch stats

# conv pipeline shapes: (B,7,7,3) -> (B,5,5,16) -> (B,4,4,32) -> (B,3,3,64)
EMB_IN = 3 * 3 * 64  # image_embedding_size = (n-4)*(m-4)*64 = 576

# footprint layout: after conv1 every activation is kept on a per-batch 5x5
# footprint (stride 25 between batch elements); valid region shrinks 5x5->4x4->3x3.
FP = 25                 # rows per batch element in the footprint layout
L1 = B * FP             # 50  conv1 output rows (all valid)
L2 = L1 - 6             # 44  conv2 accumulator rows (valid: 4x4 per batch)
L3 = L2 - 6             # 38  conv3 accumulator rows (valid: 3x3 per batch)
LF = L3 - 12            # 26  fc1 accumulator rows (valid rows: 0 and 25)

PARAM_ORDER = ['w1', 'g1', 'be1',
               'w2', 'g2', 'be2',
               'w3', 'g3', 'be3',
               'wf1', 'bf1',
               'wva', 'bva',      # packed fc2_val || fc2_act
               'wvv', 'bvv',      # packed vf_int || vf_ext
               'wpd', 'bpd']


def pe_forward_kernel(
    xp_ref, m2_ref, m3_ref,
    w1_ref, g1_ref, be1_ref,
    w2_ref, g2_ref, be2_ref,
    w3_ref, g3_ref, be3_ref,
    wf1_ref, bf1_ref,
    wva_ref, bva_ref,
    wvv_ref, bvv_ref,
    wpd_ref, bpd_ref,
    logits_ref, v2_ref,
):
    f32 = jnp.float32

    def bn_relu(a, g, be, mask, count):
        # BatchNorm2d training mode (biased batch stats over valid rows) + ReLU.
        am = a if mask is None else a * mask
        s1 = jnp.sum(am, axis=0, keepdims=True)
        s2 = jnp.sum(am * am, axis=0, keepdims=True)
        inv_n = 1.0 / count
        mu = s1 * inv_n
        var = s2 * inv_n - mu * mu
        y = (a - mu) * lax.rsqrt(var + EPS) * g + be
        return jnp.maximum(y, 0.0)

    # ---- conv1 (3x3, 3->16): one im2col matmul, all 50 rows valid ----
    # conv bias is omitted: BN mean-subtraction cancels it exactly.
    c1 = jnp.dot(xp_ref[...], w1_ref[...], preferred_element_type=f32)
    a1 = bn_relu(c1, g1_ref[...], be1_ref[...], None, float(L1))        # (50, 16)

    # ---- conv2 (2x2, 16->32): 4 shifted-slice dots over the 5x5 footprint ----
    acc2 = jnp.zeros((L2, 32), f32)
    for ki in range(2):
        for kj in range(2):
            off = ki * 5 + kj
            tap = (ki * 2 + kj) * 16
            acc2 = acc2 + jnp.dot(a1[off:off + L2, :],
                                  w2_ref[tap:tap + 16, :],
                                  preferred_element_type=f32)
    a2 = bn_relu(acc2, g2_ref[...], be2_ref[...], m2_ref[...], float(B * 16))  # (44, 32)

    # ---- conv3 (2x2, 32->64) ----
    acc3 = jnp.zeros((L3, 64), f32)
    for ki in range(2):
        for kj in range(2):
            off = ki * 5 + kj
            tap = (ki * 2 + kj) * 32
            acc3 = acc3 + jnp.dot(a2[off:off + L3, :],
                                  w3_ref[tap:tap + 32, :],
                                  preferred_element_type=f32)
    a3 = bn_relu(acc3, g3_ref[...], be3_ref[...], m3_ref[...], float(B * 9))   # (38, 64)

    # ---- fc1: 9 position dots; both batch embeddings land at rows {0, 25} ----
    accf = jnp.zeros((LF, HIDDEN), f32)
    for oh in range(3):
        for ow in range(3):
            off = oh * 5 + ow
            p = oh * 3 + ow
            accf = accf + jnp.dot(a3[off:off + LF, :],
                                  wf1_ref[p * 64:(p + 1) * 64, :],
                                  preferred_element_type=f32)
    emb = jnp.concatenate([accf[0:1, :], accf[FP:FP + 1, :]], axis=0) + bf1_ref[...]  # (B, 128)

    # ---- fused heads ----
    va = jnp.maximum(jnp.dot(emb, wva_ref[...], preferred_element_type=f32)
                     + bva_ref[...], 0.0)                               # (B, 256)
    val = va[:, :MEMSIZE]
    act = va[:, MEMSIZE:]
    # column 0 = vf_int, column 1 = vf_ext
    v2_ref[...] = jnp.dot(val, wvv_ref[...], preferred_element_type=f32) + bvv_ref[...]
    pd = jnp.dot(act, wpd_ref[...], preferred_element_type=f32) + bpd_ref[...]

    # Categorical(logits=F.log_softmax(pd, dim=1)) -> emit the log-softmax logits.
    mx = jnp.max(pd, axis=1, keepdims=True)
    s = pd - mx
    lse = jnp.log(jnp.sum(jnp.exp(s), axis=1, keepdims=True))
    logits_ref[...] = s - lse


def _footprint_mask(length, lim):
    # 1.0 where the footprint row is a valid (oh, ow) position with oh,ow < lim.
    t = np.arange(length)
    r = t % FP
    valid = (r < lim * 5) & (r % 5 < lim)
    return np.asarray(valid, np.float32).reshape(length, 1)


_MASK2 = _footprint_mask(L2, 4)
_MASK3 = _footprint_mask(L3, 3)


def pe_model_forward(image_nhwc, memory, params):
    """PEModel.forward(obs, memory) -> (dist_logits, (vpred_ext, vpred_int), memory)."""
    # im2col for conv1 in the wrapper: pure layout plumbing, fused by XLA.
    taps = [image_nhwc[:, ki:ki + 5, kj:kj + 5, :] for ki in range(3) for kj in range(3)]
    patches = jnp.concatenate(taps, axis=-1).reshape(L1, 3 * 3 * CIN)   # (50, 27)

    # pack head weights (layout-only; conv biases b1/b2/b3 are BN-cancelled, not passed).
    packed = dict(params)
    packed['wva'] = jnp.concatenate([params['wv'], params['wa']], axis=1)    # (128, 256)
    packed['bva'] = jnp.concatenate([params['bv'], params['ba']], axis=1)    # (1, 256)
    packed['wvv'] = jnp.concatenate([params['wvi'], params['wve']], axis=1)  # (128, 2)
    packed['bvv'] = jnp.concatenate([params['bvi'], params['bve']], axis=1)  # (1, 2)

    vmem = pl.BlockSpec(memory_space=pltpu.MemorySpace.VMEM)
    args = [patches, jnp.asarray(_MASK2), jnp.asarray(_MASK3)] + [packed[k] for k in PARAM_ORDER]

    out_shape = (
        jax.ShapeDtypeStruct((B, ACTIONS), jnp.float32),   # log_softmax(pd)
        jax.ShapeDtypeStruct((B, 2), jnp.float32),         # [vpred_int, vpred_ext]
    )
    logits, v2 = pl.pallas_call(
        pe_forward_kernel,
        out_shape=out_shape,
        in_specs=[vmem] * len(args),
        out_specs=(vmem, vmem),
    )(*args)
    # TODO(synk): torch.distributions.Categorical has no Pallas equivalent; we
    # return its defining log-probabilities (log_softmax logits) instead.
    return logits, (v2[:, 1], v2[:, 0]), memory            # memory passes through (use_memory=False)


def init_params(key):
    ks = jax.random.split(key, 24)
    f32 = jnp.float32

    def w(k, fan_in, shape):
        return jax.random.normal(k, shape, f32) / jnp.sqrt(jnp.float32(fan_in))

    p = {}
    # conv1: 3 -> 16, 3x3   (HWIO flattened to (KH*KW*Cin, Cout))
    p['w1'] = w(ks[0], 3 * 3 * 3, (27, 16));   p['b1'] = w(ks[1], 3 * 3 * 3, (1, 16))
    p['g1'] = jnp.ones((1, 16), f32);          p['be1'] = jnp.zeros((1, 16), f32)
    # conv2: 16 -> 32, 2x2
    p['w2'] = w(ks[2], 2 * 2 * 16, (64, 32));  p['b2'] = w(ks[3], 2 * 2 * 16, (1, 32))
    p['g2'] = jnp.ones((1, 32), f32);          p['be2'] = jnp.zeros((1, 32), f32)
    # conv3: 32 -> 64, 2x2
    p['w3'] = w(ks[4], 2 * 2 * 32, (128, 64)); p['b3'] = w(ks[5], 2 * 2 * 32, (1, 64))
    p['g3'] = jnp.ones((1, 64), f32);          p['be3'] = jnp.zeros((1, 64), f32)
    # fc1: 576 -> 128  (rows ordered (h, w, c))
    p['wf1'] = w(ks[6], EMB_IN, (EMB_IN, HIDDEN)); p['bf1'] = w(ks[7], EMB_IN, (1, HIDDEN))
    # fc2_val / fc2_act: 128 -> 128
    p['wv'] = w(ks[8], HIDDEN, (HIDDEN, MEMSIZE));  p['bv'] = w(ks[9], HIDDEN, (1, MEMSIZE))
    p['wa'] = w(ks[10], HIDDEN, (HIDDEN, MEMSIZE)); p['ba'] = w(ks[11], HIDDEN, (1, MEMSIZE))
    # value heads and policy head
    p['wvi'] = w(ks[12], MEMSIZE, (MEMSIZE, 1));    p['bvi'] = w(ks[13], MEMSIZE, (1, 1))
    p['wve'] = w(ks[14], MEMSIZE, (MEMSIZE, 1));    p['bve'] = w(ks[15], MEMSIZE, (1, 1))
    p['wpd'] = w(ks[16], MEMSIZE, (MEMSIZE, ACTIONS)); p['bpd'] = w(ks[17], MEMSIZE, (1, ACTIONS))
    return p


def ref_forward(image, params):
    """Pure-JAX reference of the same PyTorch forward pass (for self-check)."""
    hp = lax.Precision.HIGHEST

    def conv_bn_relu(h, w2d, b, g, be, kh, kw, cin, cout):
        wk = w2d.reshape(kh, kw, cin, cout)
        h = lax.conv_general_dilated(h, wk, (1, 1), 'VALID',
                                     dimension_numbers=('NHWC', 'HWIO', 'NHWC'),
                                     precision=hp) + b.reshape(1, 1, 1, cout)
        mu = jnp.mean(h, axis=(0, 1, 2), keepdims=True)
        var = jnp.mean((h - mu) ** 2, axis=(0, 1, 2), keepdims=True)
        h = (h - mu) * lax.rsqrt(var + EPS) * g.reshape(1, 1, 1, cout) + be.reshape(1, 1, 1, cout)
        return jnp.maximum(h, 0.0)

    h = conv_bn_relu(image, params['w1'], params['b1'], params['g1'], params['be1'], 3, 3, 3, 16)
    h = conv_bn_relu(h, params['w2'], params['b2'], params['g2'], params['be2'], 2, 2, 16, 32)
    h = conv_bn_relu(h, params['w3'], params['b3'], params['g3'], params['be3'], 2, 2, 32, 64)
    flat = h.reshape(B, -1)
    emb = jnp.dot(flat, params['wf1'], precision=hp) + params['bf1']
    val = jnp.maximum(jnp.dot(emb, params['wv'], precision=hp) + params['bv'], 0.0)
    act = jnp.maximum(jnp.dot(emb, params['wa'], precision=hp) + params['ba'], 0.0)
    vint = (jnp.dot(val, params['wvi'], precision=hp) + params['bvi'])[:, 0]
    vext = (jnp.dot(val, params['wve'], precision=hp) + params['bve'])[:, 0]
    pd = jnp.dot(act, params['wpd'], precision=hp) + params['bpd']
    return jax.nn.log_softmax(pd, axis=1), vext, vint


if __name__ == "__main__":
    key = jax.random.PRNGKey(0)
    kx, kp = jax.random.split(key, 2)
    image = jax.random.uniform(kx, (B, N, M, CIN), jnp.float32)   # obs.image, NHWC
    memory = jnp.zeros((B, MEMSIZE), jnp.float32)
    params = init_params(kp)

    logits, (vpred_ext, vpred_int), mem_out = jax.jit(pe_model_forward)(image, memory, params)
    jax.block_until_ready((logits, vpred_ext, vpred_int, mem_out))

    ref_logits, ref_vext, ref_vint = ref_forward(image, params)
    np.testing.assert_allclose(np.asarray(logits), np.asarray(ref_logits), atol=1e-2, rtol=1e-2)
    np.testing.assert_allclose(np.asarray(vpred_ext), np.asarray(ref_vext), atol=1e-2, rtol=1e-2)
    np.testing.assert_allclose(np.asarray(vpred_int), np.asarray(ref_vint), atol=1e-2, rtol=1e-2)
    assert mem_out.shape == (B, MEMSIZE)

    print("KERNEL_OK")
</pallas_src>

<mosaic_0001>
module attributes {stable_mosaic.version = 11 : i64} {
  func.func @pe_forward_kernel(%arg0: memref<50x27xf32, #tpu.memory_space<vmem>>, %arg1: memref<44x1xf32, #tpu.memory_space<vmem>>, %arg2: memref<38x1xf32, #tpu.memory_space<vmem>>, %arg3: memref<27x16xf32, #tpu.memory_space<vmem>>, %arg4: memref<1x16xf32, #tpu.memory_space<vmem>>, %arg5: memref<1x16xf32, #tpu.memory_space<vmem>>, %arg6: memref<64x32xf32, #tpu.memory_space<vmem>>, %arg7: memref<1x32xf32, #tpu.memory_space<vmem>>, %arg8: memref<1x32xf32, #tpu.memory_space<vmem>>, %arg9: memref<128x64xf32, #tpu.memory_space<vmem>>, %arg10: memref<1x64xf32, #tpu.memory_space<vmem>>, %arg11: memref<1x64xf32, #tpu.memory_space<vmem>>, %arg12: memref<576x128xf32, #tpu.memory_space<vmem>>, %arg13: memref<1x128xf32, #tpu.memory_space<vmem>>, %arg14: memref<128x256xf32, #tpu.memory_space<vmem>>, %arg15: memref<1x256xf32, #tpu.memory_space<vmem>>, %arg16: memref<128x2xf32, #tpu.memory_space<vmem>>, %arg17: memref<1x2xf32, #tpu.memory_space<vmem>>, %arg18: memref<128x7xf32, #tpu.memory_space<vmem>>, %arg19: memref<1x7xf32, #tpu.memory_space<vmem>>, %arg20: memref<2x7xf32, #tpu.memory_space<vmem>>, %arg21: memref<2x2xf32, #tpu.memory_space<vmem>>) attributes {dimension_semantics = [], scalar_prefetch = 0 : i64, scratch_operands = 0 : i64, tpu.core_type = #tpu.core_type<tc>} {
    %c0 = arith.constant 0 : index
    %c0_0 = arith.constant 0 : index
    %0 = vector.load %arg0[%c0, %c0_0] : memref<50x27xf32, #tpu.memory_space<vmem>>, vector<50x27xf32>
    %c0_1 = arith.constant 0 : index
    %c0_2 = arith.constant 0 : index
    %1 = vector.load %arg3[%c0_1, %c0_2] : memref<27x16xf32, #tpu.memory_space<vmem>>, vector<27x16xf32>
    %cst = arith.constant dense<0.000000e+00> : vector<50x16xf32>
    %2 = tpu.matmul %0, %1, %cst {dimension_numbers = #tpu.dot_dimension_numbers<[1], [0], [0], [1], [0, 0, 1, 1], [], []>} : vector<50x27xf32>, vector<27x16xf32>, vector<50x16xf32> -> vector<50x16xf32>
    %c0_3 = arith.constant 0 : index
    %c0_4 = arith.constant 0 : index
    %3 = vector.load %arg4[%c0_3, %c0_4] : memref<1x16xf32, #tpu.memory_space<vmem>>, vector<1x16xf32>
    %c0_5 = arith.constant 0 : index
    %c0_6 = arith.constant 0 : index
    %4 = vector.load %arg5[%c0_5, %c0_6] : memref<1x16xf32, #tpu.memory_space<vmem>>, vector<1x16xf32>
    %cst_7 = arith.constant dense<0.000000e+00> : vector<16xf32>
    %5 = vector.multi_reduction <add>, %2, %cst_7 [0] : vector<50x16xf32> to vector<16xf32>
    %6 = vector.shape_cast %5 : vector<16xf32> to vector<1x16xf32>
    %7 = arith.mulf %2, %2 : vector<50x16xf32>
    %cst_8 = arith.constant dense<0.000000e+00> : vector<16xf32>
    %8 = vector.multi_reduction <add>, %7, %cst_8 [0] : vector<50x16xf32> to vector<16xf32>
    %9 = vector.shape_cast %8 : vector<16xf32> to vector<1x16xf32>
    %cst_9 = arith.constant 2.000000e-02 : f32
    %10 = vector.broadcast %cst_9 : f32 to vector<1x16xf32>
    %11 = arith.mulf %6, %10 : vector<1x16xf32>
    %cst_10 = arith.constant 2.000000e-02 : f32
    %12 = vector.broadcast %cst_10 : f32 to vector<1x16xf32>
    %13 = arith.mulf %9, %12 : vector<1x16xf32>
    %14 = arith.mulf %11, %11 : vector<1x16xf32>
    %15 = arith.subf %13, %14 : vector<1x16xf32>
    %16 = vector.broadcast %11 : vector<1x16xf32> to vector<50x16xf32>
    %17 = arith.subf %2, %16 : vector<50x16xf32>
    %cst_11 = arith.constant 9.99999974E-6 : f32
    %18 = vector.broadcast %cst_11 : f32 to vector<1x16xf32>
    %19 = arith.addf %15, %18 : vector<1x16xf32>
    %20 = math.rsqrt %19 : vector<1x16xf32>
    %21 = vector.broadcast %20 : vector<1x16xf32> to vector<50x16xf32>
    %22 = arith.mulf %17, %21 : vector<50x16xf32>
    %23 = vector.broadcast %3 : vector<1x16xf32> to vector<50x16xf32>
    %24 = arith.mulf %22, %23 : vector<50x16xf32>
    %25 = vector.broadcast %4 : vector<1x16xf32> to vector<50x16xf32>
    %26 = arith.addf %24, %25 : vector<50x16xf32>
    %cst_12 = arith.constant 0.000000e+00 : f32
    %27 = vector.broadcast %cst_12 : f32 to vector<50x16xf32>
    %28 = arith.maximumf %26, %27 : vector<50x16xf32>
    %cst_13 = arith.constant 0.000000e+00 : f32
    %29 = vector.broadcast %cst_13 : f32 to vector<44x32xf32>
    %30 = vector.extract_strided_slice %28 {offsets = [0, 0], sizes = [44, 16], strides = [1, 1]} : vector<50x16xf32> to vector<44x16xf32>
    %c0_14 = arith.constant 0 : index
    %c0_15 = arith.constant 0 : index
    %31 = vector.load %arg6[%c0_14, %c0_15] : memref<64x32xf32, #tpu.memory_space<vmem>>, vector<16x32xf32>
    %cst_16 = arith.constant dense<0.000000e+00> : vector<44x32xf32>
    %32 = tpu.matmul %30, %31, %cst_16 {dimension_numbers = #tpu.dot_dimension_numbers<[1], [0], [0], [1], [0, 0, 1, 1], [], []>} : vector<44x16xf32>, vector<16x32xf32>, vector<44x32xf32> -> vector<44x32xf32>
    %33 = arith.addf %29, %32 : vector<44x32xf32>
    %34 = vector.extract_strided_slice %28 {offsets = [1, 0], sizes = [44, 16], strides = [1, 1]} : vector<50x16xf32> to vector<44x16xf32>
    %c16 = arith.constant 16 : index
    %c0_17 = arith.constant 0 : index
    %35 = vector.load %arg6[%c16, %c0_17] : memref<64x32xf32, #tpu.memory_space<vmem>>, vector<16x32xf32>
    %cst_18 = arith.constant dense<0.000000e+00> : vector<44x32xf32>
    %36 = tpu.matmul %34, %35, %cst_18 {dimension_numbers = #tpu.dot_dimension_numbers<[1], [0], [0], [1], [0, 0, 1, 1], [], []>} : vector<44x16xf32>, vector<16x32xf32>, vector<44x32xf32> -> vector<44x32xf32>
    %37 = arith.addf %33, %36 : vector<44x32xf32>
    %38 = vector.extract_strided_slice %28 {offsets = [5, 0], sizes = [44, 16], strides = [1, 1]} : vector<50x16xf32> to vector<44x16xf32>
    %c32 = arith.constant 32 : index
    %c0_19 = arith.constant 0 : index
    %39 = vector.load %arg6[%c32, %c0_19] : memref<64x32xf32, #tpu.memory_space<vmem>>, vector<16x32xf32>
    %cst_20 = arith.constant dense<0.000000e+00> : vector<44x32xf32>
    %40 = tpu.matmul %38, %39, %cst_20 {dimension_numbers = #tpu.dot_dimension_numbers<[1], [0], [0], [1], [0, 0, 1, 1], [], []>} : vector<44x16xf32>, vector<16x32xf32>, vector<44x32xf32> -> vector<44x32xf32>
    %41 = arith.addf %37, %40 : vector<44x32xf32>
    %42 = vector.extract_strided_slice %28 {offsets = [6, 0], sizes = [44, 16], strides = [1, 1]} : vector<50x16xf32> to vector<44x16xf32>
    %c48 = arith.constant 48 : index
    %c0_21 = arith.constant 0 : index
    %43 = vector.load %arg6[%c48, %c0_21] : memref<64x32xf32, #tpu.memory_space<vmem>>, vector<16x32xf32>
    %cst_22 = arith.constant dense<0.000000e+00> : vector<44x32xf32>
    %44 = tpu.matmul %42, %43, %cst_22 {dimension_numbers = #tpu.dot_dimension_numbers<[1], [0], [0], [1], [0, 0, 1, 1], [], []>} : vector<44x16xf32>, vector<16x32xf32>, vector<44x32xf32> -> vector<44x32xf32>
    %45 = arith.addf %41, %44 : vector<44x32xf32>
    %c0_23 = arith.constant 0 : index
    %c0_24 = arith.constant 0 : index
    %46 = vector.load %arg7[%c0_23, %c0_24] : memref<1x32xf32, #tpu.memory_space<vmem>>, vector<1x32xf32>
    %c0_25 = arith.constant 0 : index
    %c0_26 = arith.constant 0 : index
    %47 = vector.load %arg8[%c0_25, %c0_26] : memref<1x32xf32, #tpu.memory_space<vmem>>, vector<1x32xf32>
    %c0_27 = arith.constant 0 : index
    %c0_28 = arith.constant 0 : index
    %48 = vector.load %arg1[%c0_27, %c0_28] : memref<44x1xf32, #tpu.memory_space<vmem>>, vector<44x1xf32>
    %49 = vector.broadcast %48 : vector<44x1xf32> to vector<44x32xf32>
    %50 = arith.mulf %45, %49 : vector<44x32xf32>
    %cst_29 = arith.constant dense<0.000000e+00> : vector<32xf32>
    %51 = vector.multi_reduction <add>, %50, %cst_29 [0] : vector<44x32xf32> to vector<32xf32>
    %52 = vector.shape_cast %51 : vector<32xf32> to vector<1x32xf32>
    %53 = arith.mulf %50, %50 : vector<44x32xf32>
    %cst_30 = arith.constant dense<0.000000e+00> : vector<32xf32>
    %54 = vector.multi_reduction <add>, %53, %cst_30 [0] : vector<44x32xf32> to vector<32xf32>
    %55 = vector.shape_cast %54 : vector<32xf32> to vector<1x32xf32>
    %cst_31 = arith.constant 3.125000e-02 : f32
    %56 = vector.broadcast %cst_31 : f32 to vector<1x32xf32>
    %57 = arith.mulf %52, %56 : vector<1x32xf32>
    %cst_32 = arith.constant 3.125000e-02 : f32
    %58 = vector.broadcast %cst_32 : f32 to vector<1x32xf32>
    %59 = arith.mulf %55, %58 : vector<1x32xf32>
    %60 = arith.mulf %57, %57 : vector<1x32xf32>
    %61 = arith.subf %59, %60 : vector<1x32xf32>
    %62 = vector.broadcast %57 : vector<1x32xf32> to vector<44x32xf32>
    %63 = arith.subf %45, %62 : vector<44x32xf32>
    %cst_33 = arith.constant 9.99999974E-6 : f32
    %64 = vector.broadcast %cst_33 : f32 to vector<1x32xf32>
    %65 = arith.addf %61, %64 : vector<1x32xf32>
    %66 = math.rsqrt %65 : vector<1x32xf32>
    %67 = vector.broadcast %66 : vector<1x32xf32> to vector<44x32xf32>
    %68 = arith.mulf %63, %67 : vector<44x32xf32>
    %69 = vector.broadcast %46 : vector<1x32xf32> to vector<44x32xf32>
    %70 = arith.mulf %68, %69 : vector<44x32xf32>
    %71 = vector.broadcast %47 : vector<1x32xf32> to vector<44x32xf32>
    %72 = arith.addf %70, %71 : vector<44x32xf32>
    %cst_34 = arith.constant 0.000000e+00 : f32
    %73 = vector.broadcast %cst_34 : f32 to vector<44x32xf32>
    %74 = arith.maximumf %72, %73 : vector<44x32xf32>
    %cst_35 = arith.constant 0.000000e+00 : f32
    %75 = vector.broadcast %cst_35 : f32 to vector<38x64xf32>
    %76 = vector.extract_strided_slice %74 {offsets = [0, 0], sizes = [38, 32], strides = [1, 1]} : vector<44x32xf32> to vector<38x32xf32>
    %c0_36 = arith.constant 0 : index
    %c0_37 = arith.constant 0 : index
    %77 = vector.load %arg9[%c0_36, %c0_37] : memref<128x64xf32, #tpu.memory_space<vmem>>, vector<32x64xf32>
    %cst_38 = arith.constant dense<0.000000e+00> : vector<38x64xf32>
    %78 = tpu.matmul %76, %77, %cst_38 {dimension_numbers = #tpu.dot_dimension_numbers<[1], [0], [0], [1], [0, 0, 1, 1], [], []>} : vector<38x32xf32>, vector<32x64xf32>, vector<38x64xf32> -> vector<38x64xf32>
    %79 = arith.addf %75, %78 : vector<38x64xf32>
    %80 = vector.extract_strided_slice %74 {offsets = [1, 0], sizes = [38, 32], strides = [1, 1]} : vector<44x32xf32> to vector<38x32xf32>
    %c32_39 = arith.constant 32 : index
    %c0_40 = arith.constant 0 : index
    %81 = vector.load %arg9[%c32_39, %c0_40] : memref<128x64xf32, #tpu.memory_space<vmem>>, vector<32x64xf32>
    %cst_41 = arith.constant dense<0.000000e+00> : vector<38x64xf32>
    %82 = tpu.matmul %80, %81, %cst_41 {dimension_numbers = #tpu.dot_dimension_numbers<[1], [0], [0], [1], [0, 0, 1, 1], [], []>} : vector<38x32xf32>, vector<32x64xf32>, vector<38x64xf32> -> vector<38x64xf32>
    %83 = arith.addf %79, %82 : vector<38x64xf32>
    %84 = vector.extract_strided_slice %74 {offsets = [5, 0], sizes = [38, 32], strides = [1, 1]} : vector<44x32xf32> to vector<38x32xf32>
    %c64 = arith.constant 64 : index
    %c0_42 = arith.constant 0 : index
    %85 = vector.load %arg9[%c64, %c0_42] : memref<128x64xf32, #tpu.memory_space<vmem>>, vector<32x64xf32>
    %cst_43 = arith.constant dense<0.000000e+00> : vector<38x64xf32>
    %86 = tpu.matmul %84, %85, %cst_43 {dimension_numbers = #tpu.dot_dimension_numbers<[1], [0], [0], [1], [0, 0, 1, 1], [], []>} : vector<38x32xf32>, vector<32x64xf32>, vector<38x64xf32> -> vector<38x64xf32>
    %87 = arith.addf %83, %86 : vector<38x64xf32>
    %88 = vector.extract_strided_slice %74 {offsets = [6, 0], sizes = [38, 32], strides = [1, 1]} : vector<44x32xf32> to vector<38x32xf32>
    %c96 = arith.constant 96 : index
    %c0_44 = arith.constant 0 : index
    %89 = vector.load %arg9[%c96, %c0_44] : memref<128x64xf32, #tpu.memory_space<vmem>>, vector<32x64xf32>
    %cst_45 = arith.constant dense<0.000000e+00> : vector<38x64xf32>
    %90 = tpu.matmul %88, %89, %cst_45 {dimension_numbers = #tpu.dot_dimension_numbers<[1], [0], [0], [1], [0, 0, 1, 1], [], []>} : vector<38x32xf32>, vector<32x64xf32>, vector<38x64xf32> -> vector<38x64xf32>
    %91 = arith.addf %87, %90 : vector<38x64xf32>
    %c0_46 = arith.constant 0 : index
    %c0_47 = arith.constant 0 : index
    %92 = vector.load %arg10[%c0_46, %c0_47] : memref<1x64xf32, #tpu.memory_space<vmem>>, vector<1x64xf32>
    %c0_48 = arith.constant 0 : index
    %c0_49 = arith.constant 0 : index
    %93 = vector.load %arg11[%c0_48, %c0_49] : memref<1x64xf32, #tpu.memory_space<vmem>>, vector<1x64xf32>
    %c0_50 = arith.constant 0 : index
    %c0_51 = arith.constant 0 : index
    %94 = vector.load %arg2[%c0_50, %c0_51] : memref<38x1xf32, #tpu.memory_space<vmem>>, vector<38x1xf32>
    %95 = vector.broadcast %94 : vector<38x1xf32> to vector<38x64xf32>
    %96 = arith.mulf %91, %95 : vector<38x64xf32>
    %cst_52 = arith.constant dense<0.000000e+00> : vector<64xf32>
    %97 = vector.multi_reduction <add>, %96, %cst_52 [0] : vector<38x64xf32> to vector<64xf32>
    %98 = vector.shape_cast %97 : vector<64xf32> to vector<1x64xf32>
    %99 = arith.mulf %96, %96 : vector<38x64xf32>
    %cst_53 = arith.constant dense<0.000000e+00> : vector<64xf32>
    %100 = vector.multi_reduction <add>, %99, %cst_53 [0] : vector<38x64xf32> to vector<64xf32>
    %101 = vector.shape_cast %100 : vector<64xf32> to vector<1x64xf32>
    %cst_54 = arith.constant 0.055555556 : f32
    %102 = vector.broadcast %cst_54 : f32 to vector<1x64xf32>
    %103 = arith.mulf %98, %102 : vector<1x64xf32>
    %cst_55 = arith.constant 0.055555556 : f32
    %104 = vector.broadcast %cst_55 : f32 to vector<1x64xf32>
    %105 = arith.mulf %101, %104 : vector<1x64xf32>
    %106 = arith.mulf %103, %103 : vector<1x64xf32>
    %107 = arith.subf %105, %106 : vector<1x64xf32>
    %108 = vector.broadcast %103 : vector<1x64xf32> to vector<38x64xf32>
    %109 = arith.subf %91, %108 : vector<38x64xf32>
    %cst_56 = arith.constant 9.99999974E-6 : f32
    %110 = vector.broadcast %cst_56 : f32 to vector<1x64xf32>
    %111 = arith.addf %107, %110 : vector<1x64xf32>
    %112 = math.rsqrt %111 : vector<1x64xf32>
    %113 = vector.broadcast %112 : vector<1x64xf32> to vector<38x64xf32>
    %114 = arith.mulf %109, %113 : vector<38x64xf32>
    %115 = vector.broadcast %92 : vector<1x64xf32> to vector<38x64xf32>
    %116 = arith.mulf %114, %115 : vector<38x64xf32>
    %117 = vector.broadcast %93 : vector<1x64xf32> to vector<38x64xf32>
    %118 = arith.addf %116, %117 : vector<38x64xf32>
    %cst_57 = arith.constant 0.000000e+00 : f32
    %119 = vector.broadcast %cst_57 : f32 to vector<38x64xf32>
    %120 = arith.maximumf %118, %119 : vector<38x64xf32>
    %cst_58 = arith.constant 0.000000e+00 : f32
    %121 = vector.broadcast %cst_58 : f32 to vector<26x128xf32>
    %122 = vector.extract_strided_slice %120 {offsets = [0, 0], sizes = [26, 64], strides = [1, 1]} : vector<38x64xf32> to vector<26x64xf32>
    %c0_59 = arith.constant 0 : index
    %c0_60 = arith.constant 0 : index
    %123 = vector.load %arg12[%c0_59, %c0_60] : memref<576x128xf32, #tpu.memory_space<vmem>>, vector<64x128xf32>
    %cst_61 = arith.constant dense<0.000000e+00> : vector<26x128xf32>
    %124 = tpu.matmul %122, %123, %cst_61 {dimension_numbers = #tpu.dot_dimension_numbers<[1], [0], [0], [1], [0, 0, 1, 1], [], []>} : vector<26x64xf32>, vector<64x128xf32>, vector<26x128xf32> -> vector<26x128xf32>
    %125 = arith.addf %121, %124 : vector<26x128xf32>
    %126 = vector.extract_strided_slice %120 {offsets = [1, 0], sizes = [26, 64], strides = [1, 1]} : vector<38x64xf32> to vector<26x64xf32>
    %c64_62 = arith.constant 64 : index
    %c0_63 = arith.constant 0 : index
    %127 = vector.load %arg12[%c64_62, %c0_63] : memref<576x128xf32, #tpu.memory_space<vmem>>, vector<64x128xf32>
    %cst_64 = arith.constant dense<0.000000e+00> : vector<26x128xf32>
    %128 = tpu.matmul %126, %127, %cst_64 {dimension_numbers = #tpu.dot_dimension_numbers<[1], [0], [0], [1], [0, 0, 1, 1], [], []>} : vector<26x64xf32>, vector<64x128xf32>, vector<26x128xf32> -> vector<26x128xf32>
    %129 = arith.addf %125, %128 : vector<26x128xf32>
    %130 = vector.extract_strided_slice %120 {offsets = [2, 0], sizes = [26, 64], strides = [1, 1]} : vector<38x64xf32> to vector<26x64xf32>
    %c128 = arith.constant 128 : index
    %c0_65 = arith.constant 0 : index
    %131 = vector.load %arg12[%c128, %c0_65] : memref<576x128xf32, #tpu.memory_space<vmem>>, vector<64x128xf32>
    %cst_66 = arith.constant dense<0.000000e+00> : vector<26x128xf32>
    %132 = tpu.matmul %130, %131, %cst_66 {dimension_numbers = #tpu.dot_dimension_numbers<[1], [0], [0], [1], [0, 0, 1, 1], [], []>} : vector<26x64xf32>, vector<64x128xf32>, vector<26x128xf32> -> vector<26x128xf32>
    %133 = arith.addf %129, %132 : vector<26x128xf32>
    %134 = vector.extract_strided_slice %120 {offsets = [5, 0], sizes = [26, 64], strides = [1, 1]} : vector<38x64xf32> to vector<26x64xf32>
    %c192 = arith.constant 192 : index
    %c0_67 = arith.constant 0 : index
    %135 = vector.load %arg12[%c192, %c0_67] : memref<576x128xf32, #tpu.memory_space<vmem>>, vector<64x128xf32>
    %cst_68 = arith.constant dense<0.000000e+00> : vector<26x128xf32>
    %136 = tpu.matmul %134, %135, %cst_68 {dimension_numbers = #tpu.dot_dimension_numbers<[1], [0], [0], [1], [0, 0, 1, 1], [], []>} : vector<26x64xf32>, vector<64x128xf32>, vector<26x128xf32> -> vector<26x128xf32>
    %137 = arith.addf %133, %136 : vector<26x128xf32>
    %138 = vector.extract_strided_slice %120 {offsets = [6, 0], sizes = [26, 64], strides = [1, 1]} : vector<38x64xf32> to vector<26x64xf32>
    %c256 = arith.constant 256 : index
    %c0_69 = arith.constant 0 : index
    %139 = vector.load %arg12[%c256, %c0_69] : memref<576x128xf32, #tpu.memory_space<vmem>>, vector<64x128xf32>
    %cst_70 = arith.constant dense<0.000000e+00> : vector<26x128xf32>
    %140 = tpu.matmul %138, %139, %cst_70 {dimension_numbers = #tpu.dot_dimension_numbers<[1], [0], [0], [1], [0, 0, 1, 1], [], []>} : vector<26x64xf32>, vector<64x128xf32>, vector<26x128xf32> -> vector<26x128xf32>
    %141 = arith.addf %137, %140 : vector<26x128xf32>
    %142 = vector.extract_strided_slice %120 {offsets = [7, 0], sizes = [26, 64], strides = [1, 1]} : vector<38x64xf32> to vector<26x64xf32>
    %c320 = arith.constant 320 : index
    %c0_71 = arith.constant 0 : index
    %143 = vector.load %arg12[%c320, %c0_71] : memref<576x128xf32, #tpu.memory_space<vmem>>, vector<64x128xf32>
    %cst_72 = arith.constant dense<0.000000e+00> : vector<26x128xf32>
    %144 = tpu.matmul %142, %143, %cst_72 {dimension_numbers = #tpu.dot_dimension_numbers<[1], [0], [0], [1], [0, 0, 1, 1], [], []>} : vector<26x64xf32>, vector<64x128xf32>, vector<26x128xf32> -> vector<26x128xf32>
    %145 = arith.addf %141, %144 : vector<26x128xf32>
    %146 = vector.extract_strided_slice %120 {offsets = [10, 0], sizes = [26, 64], strides = [1, 1]} : vector<38x64xf32> to vector<26x64xf32>
    %c384 = arith.constant 384 : index
    %c0_73 = arith.constant 0 : index
    %147 = vector.load %arg12[%c384, %c0_73] : memref<576x128xf32, #tpu.memory_space<vmem>>, vector<64x128xf32>
    %cst_74 = arith.constant dense<0.000000e+00> : vector<26x128xf32>
    %148 = tpu.matmul %146, %147, %cst_74 {dimension_numbers = #tpu.dot_dimension_numbers<[1], [0], [0], [1], [0, 0, 1, 1], [], []>} : vector<26x64xf32>, vector<64x128xf32>, vector<26x128xf32> -> vector<26x128xf32>
    %149 = arith.addf %145, %148 : vector<26x128xf32>
    %150 = vector.extract_strided_slice %120 {offsets = [11, 0], sizes = [26, 64], strides = [1, 1]} : vector<38x64xf32> to vector<26x64xf32>
    %c448 = arith.constant 448 : index
    %c0_75 = arith.constant 0 : index
    %151 = vector.load %arg12[%c448, %c0_75] : memref<576x128xf32, #tpu.memory_space<vmem>>, vector<64x128xf32>
    %cst_76 = arith.constant dense<0.000000e+00> : vector<26x128xf32>
    %152 = tpu.matmul %150, %151, %cst_76 {dimension_numbers = #tpu.dot_dimension_numbers<[1], [0], [0], [1], [0, 0, 1, 1], [], []>} : vector<26x64xf32>, vector<64x128xf32>, vector<26x128xf32> -> vector<26x128xf32>
    %153 = arith.addf %149, %152 : vector<26x128xf32>
    %154 = vector.extract_strided_slice %120 {offsets = [12, 0], sizes = [26, 64], strides = [1, 1]} : vector<38x64xf32> to vector<26x64xf32>
    %c512 = arith.constant 512 : index
    %c0_77 = arith.constant 0 : index
    %155 = vector.load %arg12[%c512, %c0_77] : memref<576x128xf32, #tpu.memory_space<vmem>>, vector<64x128xf32>
    %cst_78 = arith.constant dense<0.000000e+00> : vector<26x128xf32>
    %156 = tpu.matmul %154, %155, %cst_78 {dimension_numbers = #tpu.dot_dimension_numbers<[1], [0], [0], [1], [0, 0, 1, 1], [], []>} : vector<26x64xf32>, vector<64x128xf32>, vector<26x128xf32> -> vector<26x128xf32>
    %157 = arith.addf %153, %156 : vector<26x128xf32>
    %158 = vector.extract_strided_slice %157 {offsets = [0, 0], sizes = [1, 128], strides = [1, 1]} : vector<26x128xf32> to vector<1x128xf32>
    %159 = vector.extract_strided_slice %157 {offsets = [25, 0], sizes = [1, 128], strides = [1, 1]} : vector<26x128xf32> to vector<1x128xf32>
    %160 = tpu.concatenate %158, %159 in 0 : vector<1x128xf32>, vector<1x128xf32> -> vector<2x128xf32>
    %c0_79 = arith.constant 0 : index
    %c0_80 = arith.constant 0 : index
    %161 = vector.load %arg13[%c0_79, %c0_80] : memref<1x128xf32, #tpu.memory_space<vmem>>, vector<1x128xf32>
    %162 = vector.broadcast %161 : vector<1x128xf32> to vector<2x128xf32>
    %163 = arith.addf %160, %162 : vector<2x128xf32>
    %c0_81 = arith.constant 0 : index
    %c0_82 = arith.constant 0 : index
    %164 = vector.load %arg14[%c0_81, %c0_82] : memref<128x256xf32, #tpu.memory_space<vmem>>, vector<128x256xf32>
    %cst_83 = arith.constant dense<0.000000e+00> : vector<2x256xf32>
    %165 = tpu.matmul %163, %164, %cst_83 {dimension_numbers = #tpu.dot_dimension_numbers<[1], [0], [0], [1], [0, 0, 1, 1], [], []>} : vector<2x128xf32>, vector<128x256xf32>, vector<2x256xf32> -> vector<2x256xf32>
    %c0_84 = arith.constant 0 : index
    %c0_85 = arith.constant 0 : index
    %166 = vector.load %arg15[%c0_84, %c0_85] : memref<1x256xf32, #tpu.memory_space<vmem>>, vector<1x256xf32>
    %167 = vector.broadcast %166 : vector<1x256xf32> to vector<2x256xf32>
    %168 = arith.addf %165, %167 : vector<2x256xf32>
    %cst_86 = arith.constant 0.000000e+00 : f32
    %169 = vector.broadcast %cst_86 : f32 to vector<2x256xf32>
    %170 = arith.maximumf %168, %169 : vector<2x256xf32>
    %171 = vector.extract_strided_slice %170 {offsets = [0, 0], sizes = [2, 128], strides = [1, 1]} : vector<2x256xf32> to vector<2x128xf32>
    %172 = vector.extract_strided_slice %170 {offsets = [0, 128], sizes = [2, 128], strides = [1, 1]} : vector<2x256xf32> to vector<2x128xf32>
    %c0_87 = arith.constant 0 : index
    %c0_88 = arith.constant 0 : index
    %173 = vector.load %arg16[%c0_87, %c0_88] : memref<128x2xf32, #tpu.memory_space<vmem>>, vector<128x2xf32>
    %cst_89 = arith.constant dense<0.000000e+00> : vector<2x2xf32>
    %174 = tpu.matmul %171, %173, %cst_89 {dimension_numbers = #tpu.dot_dimension_numbers<[1], [0], [0], [1], [0, 0, 1, 1], [], []>} : vector<2x128xf32>, vector<128x2xf32>, vector<2x2xf32> -> vector<2x2xf32>
    %c0_90 = arith.constant 0 : index
    %c0_91 = arith.constant 0 : index
    %175 = vector.load %arg17[%c0_90, %c0_91] : memref<1x2xf32, #tpu.memory_space<vmem>>, vector<1x2xf32>
    %176 = vector.broadcast %175 : vector<1x2xf32> to vector<2x2xf32>
    %177 = arith.addf %174, %176 : vector<2x2xf32>
    %c0_92 = arith.constant 0 : index
    %c0_93 = arith.constant 0 : index
    %178 = vector.load %arg21[%c0_92, %c0_93] : memref<2x2xf32, #tpu.memory_space<vmem>>, vector<2x2xf32>
    tpu.vector_store %arg21[%c0_92, %c0_93], %177 {strides = array<i32>} : memref<2x2xf32, #tpu.memory_space<vmem>>, vector<2x2xf32>,
    %c0_94 = arith.constant 0 : index
    %c0_95 = arith.constant 0 : index
    %179 = vector.load %arg18[%c0_94, %c0_95] : memref<128x7xf32, #tpu.memory_space<vmem>>, vector<128x7xf32>
    %cst_96 = arith.constant dense<0.000000e+00> : vector<2x7xf32>
    %180 = tpu.matmul %172, %179, %cst_96 {dimension_numbers = #tpu.dot_dimension_numbers<[1], [0], [0], [1], [0, 0, 1, 1], [], []>} : vector<2x128xf32>, vector<128x7xf32>, vector<2x7xf32> -> vector<2x7xf32>
    %c0_97 = arith.constant 0 : index
    %c0_98 = arith.constant 0 : index
    %181 = vector.load %arg19[%c0_97, %c0_98] : memref<1x7xf32, #tpu.memory_space<vmem>>, vector<1x7xf32>
    %182 = vector.broadcast %181 : vector<1x7xf32> to vector<2x7xf32>
    %183 = arith.addf %180, %182 : vector<2x7xf32>
    %cst_99 = arith.constant dense<0xFF800000> : vector<2xf32>
    %184 = vector.multi_reduction <maximumf>, %183, %cst_99 [1] : vector<2x7xf32> to vector<2xf32>
    %185 = vector.shape_cast %184 : vector<2xf32> to vector<2x1xf32>
    %186 = vector.broadcast %185 : vector<2x1xf32> to vector<2x7xf32>
    %187 = arith.subf %183, %186 : vector<2x7xf32>
    %188 = math.exp %187 : vector<2x7xf32>
    %cst_100 = arith.constant dense<0.000000e+00> : vector<2xf32>
    %189 = vector.multi_reduction <add>, %188, %cst_100 [1] : vector<2x7xf32> to vector<2xf32>
    %190 = vector.shape_cast %189 : vector<2xf32> to vector<2x1xf32>
    %191 = math.log %190 : vector<2x1xf32>
    %192 = vector.broadcast %191 : vector<2x1xf32> to vector<2x7xf32>
    %193 = arith.subf %187, %192 : vector<2x7xf32>
    %c0_101 = arith.constant 0 : index
    %c0_102 = arith.constant 0 : index
    %194 = vector.load %arg20[%c0_101, %c0_102] : memref<2x7xf32, #tpu.memory_space<vmem>>, vector<2x7xf32>
    tpu.vector_store %arg20[%c0_101, %c0_102], %193 {strides = array<i32>} : memref<2x7xf32, #tpu.memory_space<vmem>>, vector<2x7xf32>,
    return
  }
}

</mosaic_0001>

<llo_original>
// kernel: pe_model_forward.1
$region0: #{pe_model_forward.1}
  #allocation0 [shape = 'u32[]', space=smem, size = 0x4, offset = 0x4, fixed_abs, tag = 'smem constant byte address 0x4 - core index']
  #allocation1 [shape = 'u32[144,128]{1,0:T(1,128)}', space=vmem, size = 0x12000, scoped, tag = 'internal scratch']
  %s0 = inlined_call_operand.vmem [shape: f32[50,27], index: 0, kind: input, shape index: {}]
  %s1 = inlined_call_operand.vmem [shape: f32[44,1], index: 1, kind: input, shape index: {}]
  %s2 = inlined_call_operand.vmem [shape: f32[38,1], index: 2, kind: input, shape index: {}]
  %s3 = inlined_call_operand.vmem [shape: f32[27,16], index: 3, kind: input, shape index: {}]
  %s4 = inlined_call_operand.vmem [shape: f32[1,16], index: 4, kind: input, shape index: {}]
  %s5 = inlined_call_operand.vmem [shape: f32[1,16], index: 5, kind: input, shape index: {}]
  %s6 = inlined_call_operand.vmem [shape: f32[64,32], index: 6, kind: input, shape index: {}]
  %s7 = inlined_call_operand.vmem [shape: f32[1,32], index: 7, kind: input, shape index: {}]
  %s8 = inlined_call_operand.vmem [shape: f32[1,32], index: 8, kind: input, shape index: {}]
  %s9 = inlined_call_operand.vmem [shape: f32[128,64], index: 9, kind: input, shape index: {}]
  %s10 = inlined_call_operand.vmem [shape: f32[1,64], index: 10, kind: input, shape index: {}]
  %s11 = inlined_call_operand.vmem [shape: f32[1,64], index: 11, kind: input, shape index: {}]
  %s12 = inlined_call_operand.vmem [shape: f32[576,128], index: 12, kind: input, shape index: {}]
  %s13 = inlined_call_operand.vmem [shape: f32[1,128], index: 13, kind: input, shape index: {}]
  %s14 = inlined_call_operand.vmem [shape: f32[128,256], index: 14, kind: input, shape index: {}]
  %s15 = inlined_call_operand.vmem [shape: f32[1,256], index: 15, kind: input, shape index: {}]
  %s16 = inlined_call_operand.vmem [shape: f32[128,2], index: 16, kind: input, shape index: {}]
  %s17 = inlined_call_operand.vmem [shape: f32[1,2], index: 17, kind: input, shape index: {}]
  %s18 = inlined_call_operand.vmem [shape: f32[128,7], index: 18, kind: input, shape index: {}]
  %s19 = inlined_call_operand.vmem [shape: f32[1,7], index: 19, kind: input, shape index: {}]
  %s20 = inlined_call_operand.hbm [shape: f32[2,7], index: 20, kind: output, shape index: {0}]
  %s21 = inlined_call_operand.vmem [shape: f32[2,2], index: 21, kind: output, shape index: {1}]
  %22 = xla_tuple %s20, %s21
  %s23 = sld [smem:[#allocation0]]
  $region98: #{pe_model_forward.1} parent=0
    _
  %s25 = ssub.s32 1, %s23
  %s26 = scalar_select 0, %s25, %s23
  $region1: #{pe_model_forward.1} parent=0
    #allocation2 [shape = 'u8[1024]{0}', space=vmem, size = 0x400, scoped, tag = 'output window, operand 0, single buffered']
    #allocation3 [shape = 's32[1]{0}', space=sflag, size = 0x4, scoped, tag = 'scoped memory for pe_model_forward.1']
    %27 = vsyncpa [#allocation3], 0
    // Predicated region
    $region2: #{pe_model_forward.1} parent=1 // pred_check
      _
    $region3: #{pe_model_forward.1} parent=1 // pred_check_branch
      %29 = sbr.rel (0) target = $region5
    $region4: #{pe_model_forward.1} parent=1 // pred_region
      _
    $region5: #{pe_model_forward.1} parent=1 // pred_fallthru
      _
    // Predicated region
    $region6: #{pe_model_forward.1} parent=1 // pred_check
      _
    $region7: #{pe_model_forward.1} parent=1 // pred_check_branch
      %31 = sbr.rel (0) target = $region9
    $region8: #{pe_model_forward.1} parent=1 // pred_region
      _
    $region9: #{pe_model_forward.1} parent=1 // pred_fallthru
      _
    // Predicated region
    $region10: #{pe_model_forward.1} parent=1 // pred_check
      _
    $region11: #{pe_model_forward.1} parent=1 // pred_check_branch
      %33 = sbr.rel (0) target = $region13
    $region12: #{pe_model_forward.1} parent=1 // pred_region
      _
    $region13: #{pe_model_forward.1} parent=1 // pred_fallthru
      _
    // Predicated region
    $region14: #{pe_model_forward.1} parent=1 // pred_check
      _
    $region15: #{pe_model_forward.1} parent=1 // pred_check_branch
      %35 = sbr.rel (0) target = $region17
    $region16: #{pe_model_forward.1} parent=1 // pred_region
      _
    $region17: #{pe_model_forward.1} parent=1 // pred_fallthru
      _
    // Predicated region
    $region18: #{pe_model_forward.1} parent=1 // pred_check
      _
    $region19: #{pe_model_forward.1} parent=1 // pred_check_branch
      %37 = sbr.rel (0) target = $region21
    $region20: #{pe_model_forward.1} parent=1 // pred_region
      _
    $region21: #{pe_model_forward.1} parent=1 // pred_fallthru
      _
    // Predicated region
    $region22: #{pe_model_forward.1} parent=1 // pred_check
      _
    $region23: #{pe_model_forward.1} parent=1 // pred_check_branch
      %39 = sbr.rel (0) target = $region25
    $region24: #{pe_model_forward.1} parent=1 // pred_region
      _
    $region25: #{pe_model_forward.1} parent=1 // pred_fallthru
      _
    // Predicated region
    $region26: #{pe_model_forward.1} parent=1 // pred_check
      _
    $region27: #{pe_model_forward.1} parent=1 // pred_check_branch
      %41 = sbr.rel (0) target = $region29
    $region28: #{pe_model_forward.1} parent=1 // pred_region
      _
    $region29: #{pe_model_forward.1} parent=1 // pred_fallthru
      _
    // Predicated region
    $region30: #{pe_model_forward.1} parent=1 // pred_check
      _
    $region31: #{pe_model_forward.1} parent=1 // pred_check_branch
      %43 = sbr.rel (0) target = $region33
    $region32: #{pe_model_forward.1} parent=1 // pred_region
      _
    $region33: #{pe_model_forward.1} parent=1 // pred_fallthru
      _
    // Predicated region
    $region34: #{pe_model_forward.1} parent=1 // pred_check
      _
    $region35: #{pe_model_forward.1} parent=1 // pred_check_branch
      %45 = sbr.rel (0) target = $region37
    $region36: #{pe_model_forward.1} parent=1 // pred_region
      _
    $region37: #{pe_model_forward.1} parent=1 // pred_fallthru
      _
    // Predicated region
    $region38: #{pe_model_forward.1} parent=1 // pred_check
      _
    $region39: #{pe_model_forward.1} parent=1 // pred_check_branch
      %47 = sbr.rel (0) target = $region41
    $region40: #{pe_model_forward.1} parent=1 // pred_region
      _
    $region41: #{pe_model_forward.1} parent=1 // pred_fallthru
      _
    // Predicated region
    $region42: #{pe_model_forward.1} parent=1 // pred_check
      _
    $region43: #{pe_model_forward.1} parent=1 // pred_check_branch
      %49 = sbr.rel (0) target = $region45
    $region44: #{pe_model_forward.1} parent=1 // pred_region
      _
    $region45: #{pe_model_forward.1} parent=1 // pred_fallthru
      _
    // Predicated region
    $region46: #{pe_model_forward.1} parent=1 // pred_check
      _
    $region47: #{pe_model_forward.1} parent=1 // pred_check_branch
      %51 = sbr.rel (0) target = $region49
    $region48: #{pe_model_forward.1} parent=1 // pred_region
      _
    $region49: #{pe_model_forward.1} parent=1 // pred_fallthru
      _
    // Predicated region
    $region50: #{pe_model_forward.1} parent=1 // pred_check
      _
    $region51: #{pe_model_forward.1} parent=1 // pred_check_branch
      %53 = sbr.rel (0) target = $region53
    $region52: #{pe_model_forward.1} parent=1 // pred_region
      _
    $region53: #{pe_model_forward.1} parent=1 // pred_fallthru
      _
    // Predicated region
    $region54: #{pe_model_forward.1} parent=1 // pred_check
      _
    $region55: #{pe_model_forward.1} parent=1 // pred_check_branch
      %55 = sbr.rel (0) target = $region57
    $region56: #{pe_model_forward.1} parent=1 // pred_region
      _
    $region57: #{pe_model_forward.1} parent=1 // pred_fallthru
      _
    // Predicated region
    $region58: #{pe_model_forward.1} parent=1 // pred_check
      _
    $region59: #{pe_model_forward.1} parent=1 // pred_check_branch
      %57 = sbr.rel (0) target = $region61
    $region60: #{pe_model_forward.1} parent=1 // pred_region
      _
    $region61: #{pe_model_forward.1} parent=1 // pred_fallthru
      _
    // Predicated region
    $region62: #{pe_model_forward.1} parent=1 // pred_check
      _
    $region63: #{pe_model_forward.1} parent=1 // pred_check_branch
      %59 = sbr.rel (0) target = $region65
    $region64: #{pe_model_forward.1} parent=1 // pred_region
      _
    $region65: #{pe_model_forward.1} parent=1 // pred_fallthru
      _
    // Predicated region
    $region66: #{pe_model_forward.1} parent=1 // pred_check
      _
    $region67: #{pe_model_forward.1} parent=1 // pred_check_branch
      %61 = sbr.rel (0) target = $region69
    $region68: #{pe_model_forward.1} parent=1 // pred_region
      _
    $region69: #{pe_model_forward.1} parent=1 // pred_fallthru
      _
    // Predicated region
    $region70: #{pe_model_forward.1} parent=1 // pred_check
      _
    $region71: #{pe_model_forward.1} parent=1 // pred_check_branch
      %63 = sbr.rel (0) target = $region73
    $region72: #{pe_model_forward.1} parent=1 // pred_region
      _
    $region73: #{pe_model_forward.1} parent=1 // pred_fallthru
      _
    // Predicated region
    $region74: #{pe_model_forward.1} parent=1 // pred_check
      _
    $region75: #{pe_model_forward.1} parent=1 // pred_check_branch
      %65 = sbr.rel (0) target = $region77
    $region76: #{pe_model_forward.1} parent=1 // pred_region
      _
    $region77: #{pe_model_forward.1} parent=1 // pred_fallthru
      _
    // Predicated region
    $region78: #{pe_model_forward.1} parent=1 // pred_check
      _
    $region79: #{pe_model_forward.1} parent=1 // pred_check_branch
      %67 = sbr.rel (0) target = $region81
    $region80: #{pe_model_forward.1} parent=1 // pred_region
      _
    $region81: #{pe_model_forward.1} parent=1 // pred_fallthru
      _
    %v68 = vld [vmem:[%s0] sm:$0xff]
    %v69 = vld [vmem:[%s0 + $0x8] sm:$0xff]
    %v70 = vld [vmem:[%s0 + $0x10] sm:$0xff]
    %v71 = vld [vmem:[%s0 + $0x18] sm:$0xff]
    %v72 = vld [vmem:[%s0 + $0x20] sm:$0xff]
    %v73 = vld [vmem:[%s0 + $0x28] sm:$0xff]
    %v74 = vld [vmem:[%s0 + $0x30] sm:$0x3]
    %v75 = vld [vmem:[%s3] sm:$0xff]
    %v76 = vld [vmem:[%s3 + $0x8] sm:$0xff]
    %v77 = vld [vmem:[%s3 + $0x10] sm:$0xff]
    %v78 = vld [vmem:[%s3 + $0x18] sm:$0x7]
    %vm79 = vcmask 220160
    %v81 = vsel %vm79, %v68, 0
    %v84 = vsel %vm79, %v69, 0
    %v87 = vsel %vm79, %v70, 0
    %v90 = vsel %vm79, %v71, 0
    %v93 = vsel %vm79, %v72, 0
    %v96 = vsel %vm79, %v73, 0
    %v99 = vsel %vm79, %v74, 0
    %vm101 = vcmask 1042432
    %v103 = vsel %vm101, %v78, 0
    %105 = vmatprep.subr.mxu0 0.0
    %106 = vmatpush1.msra.mxu0 0.0
    %107 = vmatprep.subr.mxu0 0.0
    %108 = vmatpush1.msra.mxu0 0.0
    %109 = vmatprep.subr.mxu0 0.0
    %110 = vmatpush1.msra.mxu0 0.0
    %111 = vmatprep.subr.mxu0 0.0
    %112 = vmatpush1.msra.mxu0 0.0
    %113 = vmatprep.subr.mxu0 0.0
    %114 = vmatpush1.msra.mxu0 0.0
    %115 = vmatprep.subr.mxu0 0.0
    %116 = vmatpush1.msra.mxu0 0.0
    %117 = vmatprep.subr.mxu0 0.0
    %118 = vmatpush1.msra.mxu0 0.0
    %119 = vmatprep.subr.mxu0 0.0
    %120 = vmatpush1.msra.mxu0 0.0
    %121 = vmatprep.subr.mxu0 0.0
    %122 = vmatpush1.msra.mxu0 0.0
    %123 = vmatprep.subr.mxu0 0.0
    %124 = vmatpush1.msra.mxu0 0.0
    %125 = vmatprep.subr.mxu0 0.0
    %126 = vmatpush1.msra.mxu0 0.0
    %127 = vmatprep.subr.mxu0 0.0
    %128 = vmatpush1.msra.mxu0 0.0
    %129 = vmatprep.subr.mxu0 0.0
    %130 = vmatpush1.msra.mxu0 %v103
    %131 = vmatprep.subr.mxu0 0.0
    %132 = vmatpush1.msra.mxu0 %v77
    %133 = vmatprep.subr.mxu0 0.0
    %134 = vmatpush1.msra.mxu0 %v76
    %135 = vmatprep.subr.mxu0 0.0
    %136 = vmatpush1.msra.mxu0 %v75
    %137 = vmatprep.subr.mxu0 0.0
    %138 = vmatpush2.msra.mxu0 0.0
    %139 = vmatprep.subr.mxu0 0.0
    %140 = vmatpush2.msra.mxu0 0.0
    %141 = vmatprep.subr.mxu0 0.0
    %142 = vmatpush2.msra.mxu0 0.0
    %143 = vmatprep.subr.mxu0 0.0
    %144 = vmatpush2.msra.mxu0 0.0
    %145 = vmatprep.subr.mxu0 0.0
    %146 = vmatpush2.msra.mxu0 0.0
    %147 = vmatprep.subr.mxu0 0.0
    %148 = vmatpush2.msra.mxu0 0.0
    %149 = vmatprep.subr.mxu0 0.0
    %150 = vmatpush2.msra.mxu0 0.0
    %151 = vmatprep.subr.mxu0 0.0
    %152 = vmatpush2.msra.mxu0 0.0
    %153 = vmatprep.subr.mxu0 0.0
    %154 = vmatpush2.msra.mxu0 0.0
    %155 = vmatprep.subr.mxu0 0.0
    %156 = vmatpush2.msra.mxu0 0.0
    %157 = vmatprep.subr.mxu0 0.0
    %158 = vmatpush2.msra.mxu0 0.0
    %159 = vmatprep.subr.mxu0 0.0
    %160 = vmatpush2.msra.mxu0 0.0
    %161 = vmatprep.subr.mxu0 0.0
    %162 = vmatpush2.msra.mxu0 0.0
    %163 = vmatprep.subr.mxu0 0.0
    %164 = vmatpush2.msra.mxu0 0.0
    %165 = vmatprep.subr.mxu0 0.0
    %166 = vmatpush2.msra.mxu0 0.0
    %167 = vmatprep.subr.mxu0 0.0
    %168 = vmatpush2.msra.mxu0 0.0
    %169 = vmatprep.mubr.f32.mxu0 0.0
    %170 = vmatmul.mubr.f32.gmra.mxu0 %v81
    %v171 = vpop.f32.mrf.mxu0
    %v172 = vadd.f32 0.0, %v171
    %v173 = vpop.f32.mrf.mxu0
    %174 = vmatprep.mubr.f32.mxu0 0.0
    %175 = vmatmul.mubr.f32.gmra.mxu0 %v84
    %v176 = vpop.f32.mrf.mxu0
    %v177 = vadd.f32 0.0, %v176
    %v178 = vpop.f32.mrf.mxu0
    %179 = vmatprep.mubr.f32.mxu0 0.0
    %180 = vmatmul.mubr.f32.gmra.mxu0 %v87
    %v181 = vpop.f32.mrf.mxu0
    %v182 = vadd.f32 0.0, %v181
    %v183 = vpop.f32.mrf.mxu0
    %184 = vmatprep.mubr.f32.mxu0 0.0
    %185 = vmatmul.mubr.f32.gmra.mxu0 %v90
    %v186 = vpop.f32.mrf.mxu0
    %v187 = vadd.f32 0.0, %v186
    %v188 = vpop.f32.mrf.mxu0
    %189 = vmatprep.mubr.f32.mxu0 0.0
    %190 = vmatmul.mubr.f32.gmra.mxu0 %v93
    %v191 = vpop.f32.mrf.mxu0
    %v192 = vadd.f32 0.0, %v191
    %v193 = vpop.f32.mrf.mxu0
    %194 = vmatprep.mubr.f32.mxu0 0.0
    %195 = vmatmul.mubr.f32.gmra.mxu0 %v96
    %v196 = vpop.f32.mrf.mxu0
    %v197 = vadd.f32 0.0, %v196
    %v198 = vpop.f32.mrf.mxu0
    %199 = vmatprep.mubr.f32.mxu0 0.0
    %200 = vmatmul.mubr.f32.gmra.mxu0 %v99
    %v201 = vpop.f32.mrf.mxu0
    %v202 = vadd.f32 0.0, %v201
    %v203 = vpop.f32.mrf.mxu0
    %204 = vdwg.mxu0
    %v205 = vld [vmem:[%s4] sm:$0x1]
    %v206 = vld [vmem:[%s5] sm:$0x1]
    %vm207 = vcmask 130048
    %v208 = vsel %vm207, %v172, 0.0
    %v209 = vsel %vm207, %v177, 0.0
    %v210 = vadd.f32 %v208, %v209
    %v211 = vsel %vm207, %v182, 0.0
    %v212 = vadd.f32 %v210, %v211
    %v213 = vsel %vm207, %v187, 0.0
    %v214 = vadd.f32 %v212, %v213
    %v215 = vsel %vm207, %v192, 0.0
    %v216 = vadd.f32 %v214, %v215
    %v217 = vsel %vm207, %v197, 0.0
    %v218 = vadd.f32 %v216, %v217
    %vm219 = vcmask 123904
    %v220 = vsel %vm219, %v202, 0.0
    %v221 = vadd.f32 %v218, %v220
    %v222 = vrot.slane %v221, 4
    %v223 = vadd.f32 %v221, %v222
    %v224 = vrot.slane %v223, 2
    %v225 = vadd.f32 %v223, %v224
    %v226 = vrot.slane %v225, 1
    %v227 = vadd.f32 %v225, %v226
    %v228 = vmul.f32 %v172, %v172
    %v229 = vmul.f32 %v177, %v177
    %v230 = vmul.f32 %v182, %v182
    %v231 = vmul.f32 %v187, %v187
    %v232 = vmul.f32 %v192, %v192
    %v233 = vmul.f32 %v197, %v197
    %v234 = vmul.f32 %v202, %v202
    %v235 = vsel %vm207, %v228, 0.0
    %v236 = vsel %vm207, %v229, 0.0
    %v237 = vadd.f32 %v235, %v236
    %v238 = vsel %vm207, %v230, 0.0
    %v239 = vadd.f32 %v237, %v238
    %v240 = vsel %vm207, %v231, 0.0
    %v241 = vadd.f32 %v239, %v240
    %v242 = vsel %vm207, %v232, 0.0
    %v243 = vadd.f32 %v241, %v242
    %v244 = vsel %vm207, %v233, 0.0
    %v245 = vadd.f32 %v243, %v244
    %v246 = vsel %vm219, %v234, 0.0
    %v247 = vadd.f32 %v245, %v246
    %v248 = vrot.slane %v247, 4
    %v249 = vadd.f32 %v247, %v248
    %v250 = vrot.slane %v249, 2
    %v251 = vadd.f32 %v249, %v250
    %v252 = vrot.slane %v251, 1
    %v253 = vadd.f32 %v251, %v252
    %v254 = vmul.f32 %v227, 0.02
    %v255 = vmul.f32 %v253, 0.02
    %v256 = vmul.f32 %v254, %v254
    %v257 = vsub.f32 %v255, %v256
    %v258 = vsub.f32 %v172, %v254
    %v259 = vsub.f32 %v177, %v254
    %v260 = vsub.f32 %v182, %v254
    %v261 = vsub.f32 %v187, %v254
    %v262 = vsub.f32 %v192, %v254
    %v263 = vsub.f32 %v197, %v254
    %v264 = vsub.f32 %v202, %v254
    %v265 = vadd.f32 %v257, 1e-05
    %v266 = vrsqrt.pop %v265
    %v267 = vmul.f32 %v258, %v266
    %v268 = vmul.f32 %v259, %v266
    %v269 = vmul.f32 %v260, %v266
    %v270 = vmul.f32 %v261, %v266
    %v271 = vmul.f32 %v262, %v266
    %v272 = vmul.f32 %v263, %v266
    %v273 = vmul.f32 %v264, %v266
    %v275 = vlaneseq
    %v276 = vshrl.u32 %v275, 7
    %v277 = vsub.s32 0, %v276
    %v278 = vrot.slane %v205, %v277
    %v280 = vmul.f32 %v267, %v278
    %v281 = vmul.f32 %v268, %v278
    %v282 = vmul.f32 %v269, %v278
    %v283 = vmul.f32 %v270, %v278
    %v284 = vmul.f32 %v271, %v278
    %v285 = vmul.f32 %v272, %v278
    %v286 = vmul.f32 %v273, %v278
    %v288 = vlaneseq
    %v289 = vshrl.u32 %v288, 7
    %v290 = vsub.s32 0, %v289
    %v291 = vrot.slane %v206, %v290
    %v293 = vadd.f32 %v280, %v291
    %v294 = vadd.f32 %v281, %v291
    %v295 = vadd.f32 %v282, %v291
    %v296 = vadd.f32 %v283, %v291
    %v297 = vadd.f32 %v284, %v291
    %v298 = vadd.f32 %v285, %v291
    %v299 = vadd.f32 %v286, %v291
    %v300 = vmax.f32 %v293, 0.0
    %v301 = vmax.f32 %v294, 0.0
    %v302 = vmax.f32 %v295, 0.0
    %v303 = vmax.f32 %v296, 0.0
    %v304 = vmax.f32 %v297, 0.0
    %v305 = vmax.f32 %v298, 0.0
    %v306 = vmax.f32 %v299, 0.0
    %v307 = vld [vmem:[%s6] sm:$0xff]
    %v308 = vld [vmem:[%s6 + $0x8] sm:$0xff]
    %v309 = vld [vmem:[%s6 + $0x10] sm:$0xff]
    %v310 = vld [vmem:[%s6 + $0x18] sm:$0xff]
    %vm317 = vcmask 1046528
    %v318 = vrot.slane %v300, 1
    %v319 = vrot.slane %v301, 1
    %v320 = vsel %vm317, %v318, %v319
    %v321 = vrot.slane %v302, 1
    %v322 = vsel %vm317, %v319, %v321
    %v323 = vrot.slane %v303, 1
    %v324 = vsel %vm317, %v321, %v323
    %v325 = vrot.slane %v304, 1
    %v326 = vsel %vm317, %v323, %v325
    %v327 = vrot.slane %v305, 1
    %v328 = vsel %vm317, %v325, %v327
    %v329 = vsel %vm207, %v320, 0
    %v331 = vsel %vm207, %v322, 0
    %v333 = vsel %vm207, %v324, 0
    %v335 = vsel %vm207, %v326, 0
    %v337 = vsel %vm207, %v328, 0
    %v339 = vsel %vm207, %v327, 0
    %341 = vmatprep.subr.mxu0 0.0
    %342 = vmatpush1.msra.mxu0 0.0
    %343 = vmatprep.subr.mxu0 0.0
    %344 = vmatpush1.msra.mxu0 0.0
    %345 = vmatprep.subr.mxu0 0.0
    %346 = vmatpush1.msra.mxu0 0.0
    %347 = vmatprep.subr.mxu0 0.0
    %348 = vmatpush1.msra.mxu0 0.0
    %349 = vmatprep.subr.mxu0 0.0
    %350 = vmatpush1.msra.mxu0 0.0
    %351 = vmatprep.subr.mxu0 0.0
    %352 = vmatpush1.msra.mxu0 0.0
    %353 = vmatprep.subr.mxu0 0.0
    %354 = vmatpush1.msra.mxu0 0.0
    %355 = vmatprep.subr.mxu0 0.0
    %356 = vmatpush1.msra.mxu0 0.0
    %357 = vmatprep.subr.mxu0 0.0
    %358 = vmatpush1.msra.mxu0 0.0
    %359 = vmatprep.subr.mxu0 0.0
    %360 = vmatpush1.msra.mxu0 0.0
    %361 = vmatprep.subr.mxu0 0.0
    %362 = vmatpush1.msra.mxu0 0.0
    %363 = vmatprep.subr.mxu0 0.0
    %364 = vmatpush1.msra.mxu0 0.0
    %365 = vmatprep.subr.mxu0 0.0
    %366 = vmatpush1.msra.mxu0 0.0
    %367 = vmatprep.subr.mxu0 0.0
    %368 = vmatpush1.msra.mxu0 0.0
    %369 = vmatprep.subr.mxu0 0.0
    %370 = vmatpush1.msra.mxu0 %v310
    %371 = vmatprep.subr.mxu0 0.0
    %372 = vmatpush1.msra.mxu0 %v309
    %373 = vmatprep.subr.mxu0 0.0
    %374 = vmatpush2.msra.mxu0 0.0
    %375 = vmatprep.subr.mxu0 0.0
    %376 = vmatpush2.msra.mxu0 0.0
    %377 = vmatprep.subr.mxu0 0.0
    %378 = vmatpush2.msra.mxu0 0.0
    %379 = vmatprep.subr.mxu0 0.0
    %380 = vmatpush2.msra.mxu0 0.0
    %381 = vmatprep.subr.mxu0 0.0
    %382 = vmatpush2.msra.mxu0 0.0
    %383 = vmatprep.subr.mxu0 0.0
    %384 = vmatpush2.msra.mxu0 0.0
    %385 = vmatprep.subr.mxu0 0.0
    %386 = vmatpush2.msra.mxu0 0.0
    %387 = vmatprep.subr.mxu0 0.0
    %388 = vmatpush2.msra.mxu0 0.0
    %389 = vmatprep.subr.mxu0 0.0
    %390 = vmatpush2.msra.mxu0 0.0
    %391 = vmatprep.subr.mxu0 0.0
    %392 = vmatpush2.msra.mxu0 0.0
    %393 = vmatprep.subr.mxu0 0.0
    %394 = vmatpush2.msra.mxu0 0.0
    %395 = vmatprep.subr.mxu0 0.0
    %396 = vmatpush2.msra.mxu0 0.0
    %397 = vmatprep.subr.mxu0 0.0
    %398 = vmatpush2.msra.mxu0 0.0
    %399 = vmatprep.subr.mxu0 0.0
    %400 = vmatpush2.msra.mxu0 0.0
    %401 = vmatprep.subr.mxu0 0.0
    %402 = vmatpush2.msra.mxu0 0.0
    %403 = vmatprep.subr.mxu0 0.0
    %404 = vmatpush2.msra.mxu0 0.0
    %405 = vmatprep.mubr.f32.mxu0 0.0
    %406 = vmatmul.mubr.f32.gmra.mxu0 %v329
    %v407 = vpop.f32.mrf.mxu0
    %v408 = vadd.f32 0.0, %v407
    %v409 = vpop.f32.mrf.mxu0
    %410 = vmatprep.mubr.f32.mxu0 0.0
    %411 = vmatmul.mubr.f32.gmra.mxu0 %v331
    %v412 = vpop.f32.mrf.mxu0
    %v413 = vadd.f32 0.0, %v412
    %v414 = vpop.f32.mrf.mxu0
    %415 = vmatprep.mubr.f32.mxu0 0.0
    %416 = vmatmul.mubr.f32.gmra.mxu0 %v333
    %v417 = vpop.f32.mrf.mxu0
    %v418 = vadd.f32 0.0, %v417
    %v419 = vpop.f32.mrf.mxu0
    %420 = vmatprep.mubr.f32.mxu0 0.0
    %421 = vmatmul.mubr.f32.gmra.mxu0 %v335
    %v422 = vpop.f32.mrf.mxu0
    %v423 = vadd.f32 0.0, %v422
    %v424 = vpop.f32.mrf.mxu0
    %425 = vmatprep.mubr.f32.mxu0 0.0
    %426 = vmatmul.mubr.f32.gmra.mxu0 %v337
    %v427 = vpop.f32.mrf.mxu0
    %v428 = vadd.f32 0.0, %v427
    %v429 = vpop.f32.mrf.mxu0
    %430 = vmatprep.mubr.f32.mxu0 0.0
    %431 = vmatmul.mubr.f32.gmra.mxu0 %v339
    %v432 = vpop.f32.mrf.mxu0
    %v433 = vadd.f32 0.0, %v432
    %v434 = vpop.f32.mrf.mxu0
    %435 = vdwg.mxu0
    %v436 = vsel %vm207, %v300, 0
    %v438 = vsel %vm207, %v301, 0
    %v440 = vsel %vm207, %v302, 0
    %v442 = vsel %vm207, %v303, 0
    %v444 = vsel %vm207, %v304, 0
    %v446 = vsel %vm207, %v305, 0
    %448 = vmatprep.subr.mxu0 0.0
    %449 = vmatpush1.msra.mxu0 0.0
    %450 = vmatprep.subr.mxu0 0.0
    %451 = vmatpush1.msra.mxu0 0.0
    %452 = vmatprep.subr.mxu0 0.0
    %453 = vmatpush1.msra.mxu0 0.0
    %454 = vmatprep.subr.mxu0 0.0
    %455 = vmatpush1.msra.mxu0 0.0
    %456 = vmatprep.subr.mxu0 0.0
    %457 = vmatpush1.msra.mxu0 0.0
    %458 = vmatprep.subr.mxu0 0.0
    %459 = vmatpush1.msra.mxu0 0.0
    %460 = vmatprep.subr.mxu0 0.0
    %461 = vmatpush1.msra.mxu0 0.0
    %462 = vmatprep.subr.mxu0 0.0
    %463 = vmatpush1.msra.mxu0 0.0
    %464 = vmatprep.subr.mxu0 0.0
    %465 = vmatpush1.msra.mxu0 0.0
    %466 = vmatprep.subr.mxu0 0.0
    %467 = vmatpush1.msra.mxu0 0.0
    %468 = vmatprep.subr.mxu0 0.0
    %469 = vmatpush1.msra.mxu0 0.0
    %470 = vmatprep.subr.mxu0 0.0
    %471 = vmatpush1.msra.mxu0 0.0
    %472 = vmatprep.subr.mxu0 0.0
    %473 = vmatpush1.msra.mxu0 0.0
    %474 = vmatprep.subr.mxu0 0.0
    %475 = vmatpush1.msra.mxu0 0.0
    %476 = vmatprep.subr.mxu0 0.0
    %477 = vmatpush1.msra.mxu0 %v308
    %478 = vmatprep.subr.mxu0 0.0
    %479 = vmatpush1.msra.mxu0 %v307
    %480 = vmatprep.subr.mxu0 0.0
    %481 = vmatpush2.msra.mxu0 0.0
    %482 = vmatprep.subr.mxu0 0.0
    %483 = vmatpush2.msra.mxu0 0.0
    %484 = vmatprep.subr.mxu0 0.0
    %485 = vmatpush2.msra.mxu0 0.0
    %486 = vmatprep.subr.mxu0 0.0
    %487 = vmatpush2.msra.mxu0 0.0
    %488 = vmatprep.subr.mxu0 0.0
    %489 = vmatpush2.msra.mxu0 0.0
    %490 = vmatprep.subr.mxu0 0.0
    %491 = vmatpush2.msra.mxu0 0.0
    %492 = vmatprep.subr.mxu0 0.0
    %493 = vmatpush2.msra.mxu0 0.0
    %494 = vmatprep.subr.mxu0 0.0
    %495 = vmatpush2.msra.mxu0 0.0
    %496 = vmatprep.subr.mxu0 0.0
    %497 = vmatpush2.msra.mxu0 0.0
    %498 = vmatprep.subr.mxu0 0.0
    %499 = vmatpush2.msra.mxu0 0.0
    %500 = vmatprep.subr.mxu0 0.0
    %501 = vmatpush2.msra.mxu0 0.0
    %502 = vmatprep.subr.mxu0 0.0
    %503 = vmatpush2.msra.mxu0 0.0
    %504 = vmatprep.subr.mxu0 0.0
    %505 = vmatpush2.msra.mxu0 0.0
    %506 = vmatprep.subr.mxu0 0.0
    %507 = vmatpush2.msra.mxu0 0.0
    %508 = vmatprep.subr.mxu0 0.0
    %509 = vmatpush2.msra.mxu0 0.0
    %510 = vmatprep.subr.mxu0 0.0
    %511 = vmatpush2.msra.mxu0 0.0
    %512 = vmatprep.mubr.f32.mxu0 0.0
    %513 = vmatmul.mubr.f32.gmra.mxu0 %v436
    %v514 = vpop.f32.mrf.mxu0
    %v515 = vadd.f32 %v408, %v514
    %v516 = vpop.f32.mrf.mxu0
    %517 = vmatprep.mubr.f32.mxu0 0.0
    %518 = vmatmul.mubr.f32.gmra.mxu0 %v438
    %v519 = vpop.f32.mrf.mxu0
    %v520 = vadd.f32 %v413, %v519
    %v521 = vpop.f32.mrf.mxu0
    %522 = vmatprep.mubr.f32.mxu0 0.0
    %523 = vmatmul.mubr.f32.gmra.mxu0 %v440
    %v524 = vpop.f32.mrf.mxu0
    %v525 = vadd.f32 %v418, %v524
    %v526 = vpop.f32.mrf.mxu0
    %527 = vmatprep.mubr.f32.mxu0 0.0
    %528 = vmatmul.mubr.f32.gmra.mxu0 %v442
    %v529 = vpop.f32.mrf.mxu0
    %v530 = vadd.f32 %v423, %v529
    %v531 = vpop.f32.mrf.mxu0
    %532 = vmatprep.mubr.f32.mxu0 0.0
    %533 = vmatmul.mubr.f32.gmra.mxu0 %v444
    %v534 = vpop.f32.mrf.mxu0
    %v535 = vadd.f32 %v428, %v534
    %v536 = vpop.f32.mrf.mxu0
    %537 = vmatprep.mubr.f32.mxu0 0.0
    %538 = vmatmul.mubr.f32.gmra.mxu0 %v446
    %v539 = vpop.f32.mrf.mxu0
    %v540 = vadd.f32 %v433, %v539
    %v541 = vpop.f32.mrf.mxu0
    %542 = vdwg.mxu0
    %v543 = vld [vmem:[%s6 + $0x20] sm:$0xff]
    %v544 = vld [vmem:[%s6 + $0x28] sm:$0xff]
    %v546 = vrot.slane %v300, 5
    %v547 = vrot.slane %v301, 5
    %v548 = vsel %vm101, %v546, %v547
    %v549 = vrot.slane %v302, 5
    %v550 = vsel %vm101, %v547, %v549
    %v551 = vrot.slane %v303, 5
    %v552 = vsel %vm101, %v549, %v551
    %v553 = vrot.slane %v304, 5
    %v554 = vsel %vm101, %v551, %v553
    %v555 = vrot.slane %v305, 5
    %v556 = vsel %vm101, %v553, %v555
    %v557 = vrot.slane %v306, 5
    %v558 = vsel %vm101, %v555, %v557
    %v559 = vsel %vm207, %v548, 0
    %v561 = vsel %vm207, %v550, 0
    %v563 = vsel %vm207, %v552, 0
    %v565 = vsel %vm207, %v554, 0
    %v567 = vsel %vm207, %v556, 0
    %v569 = vsel %vm207, %v558, 0
    %571 = vmatprep.subr.mxu0 0.0
    %572 = vmatpush1.msra.mxu0 0.0
    %573 = vmatprep.subr.mxu0 0.0
    %574 = vmatpush1.msra.mxu0 0.0
    %575 = vmatprep.subr.mxu0 0.0
    %576 = vmatpush1.msra.mxu0 0.0
    %577 = vmatprep.subr.mxu0 0.0
    %578 = vmatpush1.msra.mxu0 0.0
    %579 = vmatprep.subr.mxu0 0.0
    %580 = vmatpush1.msra.mxu0 0.0
    %581 = vmatprep.subr.mxu0 0.0
    %582 = vmatpush1.msra.mxu0 0.0
    %583 = vmatprep.subr.mxu0 0.0
    %584 = vmatpush1.msra.mxu0 0.0
    %585 = vmatprep.subr.mxu0 0.0
    %586 = vmatpush1.msra.mxu0 0.0
    %587 = vmatprep.subr.mxu0 0.0
    %588 = vmatpush1.msra.mxu0 0.0
    %589 = vmatprep.subr.mxu0 0.0
    %590 = vmatpush1.msra.mxu0 0.0
    %591 = vmatprep.subr.mxu0 0.0
    %592 = vmatpush1.msra.mxu0 0.0
    %593 = vmatprep.subr.mxu0 0.0
    %594 = vmatpush1.msra.mxu0 0.0
    %595 = vmatprep.subr.mxu0 0.0
    %596 = vmatpush1.msra.mxu0 0.0
    %597 = vmatprep.subr.mxu0 0.0
    %598 = vmatpush1.msra.mxu0 0.0
    %599 = vmatprep.subr.mxu0 0.0
    %600 = vmatpush1.msra.mxu0 %v544
    %601 = vmatprep.subr.mxu0 0.0
    %602 = vmatpush1.msra.mxu0 %v543
    %603 = vmatprep.subr.mxu0 0.0
    %604 = vmatpush2.msra.mxu0 0.0
    %605 = vmatprep.subr.mxu0 0.0
    %606 = vmatpush2.msra.mxu0 0.0
    %607 = vmatprep.subr.mxu0 0.0
    %608 = vmatpush2.msra.mxu0 0.0
    %609 = vmatprep.subr.mxu0 0.0
    %610 = vmatpush2.msra.mxu0 0.0
    %611 = vmatprep.subr.mxu0 0.0
    %612 = vmatpush2.msra.mxu0 0.0
    %613 = vmatprep.subr.mxu0 0.0
    %614 = vmatpush2.msra.mxu0 0.0
    %615 = vmatprep.subr.mxu0 0.0
    %616 = vmatpush2.msra.mxu0 0.0
    %617 = vmatprep.subr.mxu0 0.0
    %618 = vmatpush2.msra.mxu0 0.0
    %619 = vmatprep.subr.mxu0 0.0
    %620 = vmatpush2.msra.mxu0 0.0
    %621 = vmatprep.subr.mxu0 0.0
    %622 = vmatpush2.msra.mxu0 0.0
    %623 = vmatprep.subr.mxu0 0.0
    %624 = vmatpush2.msra.mxu0 0.0
    %625 = vmatprep.subr.mxu0 0.0
    %626 = vmatpush2.msra.mxu0 0.0
    %627 = vmatprep.subr.mxu0 0.0
    %628 = vmatpush2.msra.mxu0 0.0
    %629 = vmatprep.subr.mxu0 0.0
    %630 = vmatpush2.msra.mxu0 0.0
    %631 = vmatprep.subr.mxu0 0.0
    %632 = vmatpush2.msra.mxu0 0.0
    %633 = vmatprep.subr.mxu0 0.0
    %634 = vmatpush2.msra.mxu0 0.0
    %635 = vmatprep.mubr.f32.mxu0 0.0
    %636 = vmatmul.mubr.f32.gmra.mxu0 %v559
    %v637 = vpop.f32.mrf.mxu0
    %v638 = vadd.f32 0.0, %v637
    %v639 = vpop.f32.mrf.mxu0
    %640 = vmatprep.mubr.f32.mxu0 0.0
    %641 = vmatmul.mubr.f32.gmra.mxu0 %v561
    %v642 = vpop.f32.mrf.mxu0
    %v643 = vadd.f32 0.0, %v642
    %v644 = vpop.f32.mrf.mxu0
    %645 = vmatprep.mubr.f32.mxu0 0.0
    %646 = vmatmul.mubr.f32.gmra.mxu0 %v563
    %v647 = vpop.f32.mrf.mxu0
    %v648 = vadd.f32 0.0, %v647
    %v649 = vpop.f32.mrf.mxu0
    %650 = vmatprep.mubr.f32.mxu0 0.0
    %651 = vmatmul.mubr.f32.gmra.mxu0 %v565
    %v652 = vpop.f32.mrf.mxu0
    %v653 = vadd.f32 0.0, %v652
    %v654 = vpop.f32.mrf.mxu0
    %655 = vmatprep.mubr.f32.mxu0 0.0
    %656 = vmatmul.mubr.f32.gmra.mxu0 %v567
    %v657 = vpop.f32.mrf.mxu0
    %v658 = vadd.f32 0.0, %v657
    %v659 = vpop.f32.mrf.mxu0
    %660 = vmatprep.mubr.f32.mxu0 0.0
    %661 = vmatmul.mubr.f32.gmra.mxu0 %v569
    %v662 = vpop.f32.mrf.mxu0
    %v663 = vadd.f32 0.0, %v662
    %v664 = vpop.f32.mrf.mxu0
    %665 = vdwg.mxu0
    %v666 = vadd.f32 %v515, %v638
    %v667 = vadd.f32 %v520, %v643
    %v668 = vadd.f32 %v525, %v648
    %v669 = vadd.f32 %v530, %v653
    %v670 = vadd.f32 %v535, %v658
    %v671 = vadd.f32 %v540, %v663
    %v672 = vld [vmem:[%s6 + $0x30] sm:$0xff]
    %v673 = vld [vmem:[%s6 + $0x38] sm:$0xff]
    %vm674 = vcmask 1041408
    %v675 = vrot.slane %v300, 6
    %v676 = vrot.slane %v301, 6
    %v677 = vsel %vm674, %v675, %v676
    %v678 = vrot.slane %v302, 6
    %v679 = vsel %vm674, %v676, %v678
    %v680 = vrot.slane %v303, 6
    %v681 = vsel %vm674, %v678, %v680
    %v682 = vrot.slane %v304, 6
    %v683 = vsel %vm674, %v680, %v682
    %v684 = vrot.slane %v305, 6
    %v685 = vsel %vm674, %v682, %v684
    %v686 = vrot.slane %v306, 6
    %v687 = vsel %vm674, %v684, %v686
    %v688 = vsel %vm207, %v677, 0
    %v690 = vsel %vm207, %v679, 0
    %v692 = vsel %vm207, %v681, 0
    %v694 = vsel %vm207, %v683, 0
    %v696 = vsel %vm207, %v685, 0
    %v698 = vsel %vm207, %v687, 0
    %700 = vmatprep.subr.mxu0 0.0
    %701 = vmatpush1.msra.mxu0 0.0
    %702 = vmatprep.subr.mxu0 0.0
    %703 = vmatpush1.msra.mxu0 0.0
    %704 = vmatprep.subr.mxu0 0.0
    %705 = vmatpush1.msra.mxu0 0.0
    %706 = vmatprep.subr.mxu0 0.0
    %707 = vmatpush1.msra.mxu0 0.0
    %708 = vmatprep.subr.mxu0 0.0
    %709 = vmatpush1.msra.mxu0 0.0
    %710 = vmatprep.subr.mxu0 0.0
    %711 = vmatpush1.msra.mxu0 0.0
    %712 = vmatprep.subr.mxu0 0.0
    %713 = vmatpush1.msra.mxu0 0.0
    %714 = vmatprep.subr.mxu0 0.0
    %715 = vmatpush1.msra.mxu0 0.0
    %716 = vmatprep.subr.mxu0 0.0
    %717 = vmatpush1.msra.mxu0 0.0
    %718 = vmatprep.subr.mxu0 0.0
    %719 = vmatpush1.msra.mxu0 0.0
    %720 = vmatprep.subr.mxu0 0.0
    %721 = vmatpush1.msra.mxu0 0.0
    %722 = vmatprep.subr.mxu0 0.0
    %723 = vmatpush1.msra.mxu0 0.0
    %724 = vmatprep.subr.mxu0 0.0
    %725 = vmatpush1.msra.mxu0 0.0
    %726 = vmatprep.subr.mxu0 0.0
    %727 = vmatpush1.msra.mxu0 0.0
    %728 = vmatprep.subr.mxu0 0.0
    %729 = vmatpush1.msra.mxu0 %v673
    %730 = vmatprep.subr.mxu0 0.0
    %731 = vmatpush1.msra.mxu0 %v672
    %732 = vmatprep.subr.mxu0 0.0
    %733 = vmatpush2.msra.mxu0 0.0
    %734 = vmatprep.subr.mxu0 0.0
    %735 = vmatpush2.msra.mxu0 0.0
    %736 = vmatprep.subr.mxu0 0.0
    %737 = vmatpush2.msra.mxu0 0.0
    %738 = vmatprep.subr.mxu0 0.0
    %739 = vmatpush2.msra.mxu0 0.0
    %740 = vmatprep.subr.mxu0 0.0
    %741 = vmatpush2.msra.mxu0 0.0
    %742 = vmatprep.subr.mxu0 0.0
    %743 = vmatpush2.msra.mxu0 0.0
    %744 = vmatprep.subr.mxu0 0.0
    %745 = vmatpush2.msra.mxu0 0.0
    %746 = vmatprep.subr.mxu0 0.0
    %747 = vmatpush2.msra.mxu0 0.0
    %748 = vmatprep.subr.mxu0 0.0
    %749 = vmatpush2.msra.mxu0 0.0
    %750 = vmatprep.subr.mxu0 0.0
    %751 = vmatpush2.msra.mxu0 0.0
    %752 = vmatprep.subr.mxu0 0.0
    %753 = vmatpush2.msra.mxu0 0.0
    %754 = vmatprep.subr.mxu0 0.0
    %755 = vmatpush2.msra.mxu0 0.0
    %756 = vmatprep.subr.mxu0 0.0
    %757 = vmatpush2.msra.mxu0 0.0
    %758 = vmatprep.subr.mxu0 0.0
    %759 = vmatpush2.msra.mxu0 0.0
    %760 = vmatprep.subr.mxu0 0.0
    %761 = vmatpush2.msra.mxu0 0.0
    %762 = vmatprep.subr.mxu0 0.0
    %763 = vmatpush2.msra.mxu0 0.0
    %764 = vmatprep.mubr.f32.mxu0 0.0
    %765 = vmatmul.mubr.f32.gmra.mxu0 %v688
    %v766 = vpop.f32.mrf.mxu0
    %v767 = vadd.f32 0.0, %v766
    %v768 = vpop.f32.mrf.mxu0
    %769 = vmatprep.mubr.f32.mxu0 0.0
    %770 = vmatmul.mubr.f32.gmra.mxu0 %v690
    %v771 = vpop.f32.mrf.mxu0
    %v772 = vadd.f32 0.0, %v771
    %v773 = vpop.f32.mrf.mxu0
    %774 = vmatprep.mubr.f32.mxu0 0.0
    %775 = vmatmul.mubr.f32.gmra.mxu0 %v692
    %v776 = vpop.f32.mrf.mxu0
    %v777 = vadd.f32 0.0, %v776
    %v778 = vpop.f32.mrf.mxu0
    %779 = vmatprep.mubr.f32.mxu0 0.0
    %780 = vmatmul.mubr.f32.gmra.mxu0 %v694
    %v781 = vpop.f32.mrf.mxu0
    %v782 = vadd.f32 0.0, %v781
    %v783 = vpop.f32.mrf.mxu0
    %784 = vmatprep.mubr.f32.mxu0 0.0
    %785 = vmatmul.mubr.f32.gmra.mxu0 %v696
    %v786 = vpop.f32.mrf.mxu0
    %v787 = vadd.f32 0.0, %v786
    %v788 = vpop.f32.mrf.mxu0
    %789 = vmatprep.mubr.f32.mxu0 0.0
    %790 = vmatmul.mubr.f32.gmra.mxu0 %v698
    %v791 = vpop.f32.mrf.mxu0
    %v792 = vadd.f32 0.0, %v791
    %v793 = vpop.f32.mrf.mxu0
    %794 = vdwg.mxu0
    %v795 = vadd.f32 %v666, %v767
    %v796 = vadd.f32 %v667, %v772
    %v797 = vadd.f32 %v668, %v777
    %v798 = vadd.f32 %v669, %v782
    %v799 = vadd.f32 %v670, %v787
    %v800 = vadd.f32 %v671, %v792
    %v801 = vld [vmem:[%s7] sm:$0x1]
    %v802 = vld [vmem:[%s8] sm:$0x1]
    %v803 = vld [vmem:[%s1] sm:$0xff]
    %v804 = vld [vmem:[%s1 + $0x8] sm:$0xff]
    %v805 = vld [vmem:[%s1 + $0x10] sm:$0xff]
    %v806 = vld [vmem:[%s1 + $0x18] sm:$0xff]
    %v807 = vld [vmem:[%s1 + $0x20] sm:$0xff]
    %v808 = vld [vmem:[%s1 + $0x28] sm:$0xf]
    %810 = vset.pattern.permute.xlu0 0
    %811 = vperm.xlu0 %810, %v803
    %v812 = vpop.permute.xlu0 %811
    %815 = vset.pattern.permute.xlu0 0
    %816 = vperm.xlu0 %815, %v804
    %v817 = vpop.permute.xlu0 %816
    %820 = vset.pattern.permute.xlu0 0
    %821 = vperm.xlu0 %820, %v805
    %v822 = vpop.permute.xlu0 %821
    %825 = vset.pattern.permute.xlu0 0
    %826 = vperm.xlu0 %825, %v806
    %v827 = vpop.permute.xlu0 %826
    %830 = vset.pattern.permute.xlu0 0
    %831 = vperm.xlu0 %830, %v807
    %v832 = vpop.permute.xlu0 %831
    %835 = vset.pattern.permute.xlu0 0
    %836 = vperm.xlu0 %835, %v808
    %v837 = vpop.permute.xlu0 %836
    %v839 = vmul.f32 %v795, %v812
    %v840 = vmul.f32 %v796, %v817
    %v841 = vmul.f32 %v797, %v822
    %v842 = vmul.f32 %v798, %v827
    %v843 = vmul.f32 %v799, %v832
    %v844 = vmul.f32 %v800, %v837
    %vm845 = vcmask 261120
    %v846 = vsel %vm845, %v839, 0.0
    %v847 = vsel %vm845, %v840, 0.0
    %v848 = vadd.f32 %v846, %v847
    %v849 = vsel %vm845, %v841, 0.0
    %v850 = vadd.f32 %v848, %v849
    %v851 = vsel %vm845, %v842, 0.0
    %v852 = vadd.f32 %v850, %v851
    %v853 = vsel %vm845, %v843, 0.0
    %v854 = vadd.f32 %v852, %v853
    %vm855 = vcmask 257024
    %v856 = vsel %vm855, %v844, 0.0
    %v857 = vadd.f32 %v854, %v856
    %v858 = vrot.slane %v857, 4
    %v859 = vadd.f32 %v857, %v858
    %v860 = vrot.slane %v859, 2
    %v861 = vadd.f32 %v859, %v860
    %v862 = vrot.slane %v861, 1
    %v863 = vadd.f32 %v861, %v862
    %v864 = vmul.f32 %v839, %v839
    %v865 = vmul.f32 %v840, %v840
    %v866 = vmul.f32 %v841, %v841
    %v867 = vmul.f32 %v842, %v842
    %v868 = vmul.f32 %v843, %v843
    %v869 = vmul.f32 %v844, %v844
    %v870 = vsel %vm845, %v864, 0.0
    %v871 = vsel %vm845, %v865, 0.0
    %v872 = vadd.f32 %v870, %v871
    %v873 = vsel %vm845, %v866, 0.0
    %v874 = vadd.f32 %v872, %v873
    %v875 = vsel %vm845, %v867, 0.0
    %v876 = vadd.f32 %v874, %v875
    %v877 = vsel %vm845, %v868, 0.0
    %v878 = vadd.f32 %v876, %v877
    %v879 = vsel %vm855, %v869, 0.0
    %v880 = vadd.f32 %v878, %v879
    %v881 = vrot.slane %v880, 4
    %v882 = vadd.f32 %v880, %v881
    %v883 = vrot.slane %v882, 2
    %v884 = vadd.f32 %v882, %v883
    %v885 = vrot.slane %v884, 1
    %v886 = vadd.f32 %v884, %v885
    %v887 = vmul.f32 %v863, 0.03125
    %v888 = vmul.f32 %v886, 0.03125
    %v889 = vmul.f32 %v887, %v887
    %v890 = vsub.f32 %v888, %v889
    %v891 = vsub.f32 %v795, %v887
    %v892 = vsub.f32 %v796, %v887
    %v893 = vsub.f32 %v797, %v887
    %v894 = vsub.f32 %v798, %v887
    %v895 = vsub.f32 %v799, %v887
    %v896 = vsub.f32 %v800, %v887
    %v897 = vadd.f32 %v890, 1e-05
    %v898 = vrsqrt.pop %v897
    %v899 = vmul.f32 %v891, %v898
    %v900 = vmul.f32 %v892, %v898
    %v901 = vmul.f32 %v893, %v898
    %v902 = vmul.f32 %v894, %v898
    %v903 = vmul.f32 %v895, %v898
    %v904 = vmul.f32 %v896, %v898
    %v906 = vlaneseq
    %v907 = vshrl.u32 %v906, 7
    %v908 = vsub.s32 0, %v907
    %v909 = vrot.slane %v801, %v908
    %v911 = vmul.f32 %v899, %v909
    %v912 = vmul.f32 %v900, %v909
    %v913 = vmul.f32 %v901, %v909
    %v914 = vmul.f32 %v902, %v909
    %v915 = vmul.f32 %v903, %v909
    %v916 = vmul.f32 %v904, %v909
    %v918 = vlaneseq
    %v919 = vshrl.u32 %v918, 7
    %v920 = vsub.s32 0, %v919
    %v921 = vrot.slane %v802, %v920
    %v923 = vadd.f32 %v911, %v921
    %v924 = vadd.f32 %v912, %v921
    %v925 = vadd.f32 %v913, %v921
    %v926 = vadd.f32 %v914, %v921
    %v927 = vadd.f32 %v915, %v921
    %v928 = vadd.f32 %v916, %v921
    %v929 = vmax.f32 %v923, 0.0
    %v930 = vmax.f32 %v924, 0.0
    %v931 = vmax.f32 %v925, 0.0
    %v932 = vmax.f32 %v926, 0.0
    %v933 = vmax.f32 %v927, 0.0
    %v934 = vmax.f32 %v928, 0.0
    %v935 = vld [vmem:[%s9] sm:$0xff]
    %v936 = vld [vmem:[%s9 + $0x8] sm:$0xff]
    %v937 = vld [vmem:[%s9 + $0x10] sm:$0xff]
    %v938 = vld [vmem:[%s9 + $0x18] sm:$0xff]
    %v939 = vld [vmem:[%s9 + $0x20] sm:$0xff]
    %v940 = vld [vmem:[%s9 + $0x28] sm:$0xff]
    %v941 = vld [vmem:[%s9 + $0x30] sm:$0xff]
    %v942 = vld [vmem:[%s9 + $0x38] sm:$0xff]
    %v948 = vrot.slane %v929, 1
    %v949 = vrot.slane %v930, 1
    %v950 = vsel %vm317, %v948, %v949
    %v951 = vrot.slane %v931, 1
    %v952 = vsel %vm317, %v949, %v951
    %v953 = vrot.slane %v932, 1
    %v954 = vsel %vm317, %v951, %v953
    %v955 = vrot.slane %v933, 1
    %v956 = vsel %vm317, %v953, %v955
    %v957 = vsel %vm845, %v950, 0
    %v959 = vsel %vm845, %v952, 0
    %v961 = vsel %vm845, %v954, 0
    %v963 = vsel %vm845, %v956, 0
    %v965 = vsel %vm845, %v955, 0
    %967 = vmatprep.subr.mxu0 0.0
    %968 = vmatpush1.msra.mxu0 0.0
    %969 = vmatprep.subr.mxu0 0.0
    %970 = vmatpush1.msra.mxu0 0.0
    %971 = vmatprep.subr.mxu0 0.0
    %972 = vmatpush1.msra.mxu0 0.0
    %973 = vmatprep.subr.mxu0 0.0
    %974 = vmatpush1.msra.mxu0 0.0
    %975 = vmatprep.subr.mxu0 0.0
    %976 = vmatpush1.msra.mxu0 0.0
    %977 = vmatprep.subr.mxu0 0.0
    %978 = vmatpush1.msra.mxu0 0.0
    %979 = vmatprep.subr.mxu0 0.0
    %980 = vmatpush1.msra.mxu0 0.0
    %981 = vmatprep.subr.mxu0 0.0
    %982 = vmatpush1.msra.mxu0 0.0
    %983 = vmatprep.subr.mxu0 0.0
    %984 = vmatpush1.msra.mxu0 0.0
    %985 = vmatprep.subr.mxu0 0.0
    %986 = vmatpush1.msra.mxu0 0.0
    %987 = vmatprep.subr.mxu0 0.0
    %988 = vmatpush1.msra.mxu0 0.0
    %989 = vmatprep.subr.mxu0 0.0
    %990 = vmatpush1.msra.mxu0 0.0
    %991 = vmatprep.subr.mxu0 0.0
    %992 = vmatpush1.msra.mxu0 %v942
    %993 = vmatprep.subr.mxu0 0.0
    %994 = vmatpush1.msra.mxu0 %v941
    %995 = vmatprep.subr.mxu0 0.0
    %996 = vmatpush1.msra.mxu0 %v940
    %997 = vmatprep.subr.mxu0 0.0
    %998 = vmatpush1.msra.mxu0 %v939
    %999 = vmatprep.subr.mxu0 0.0
    %1000 = vmatpush2.msra.mxu0 0.0
    %1001 = vmatprep.subr.mxu0 0.0
    %1002 = vmatpush2.msra.mxu0 0.0
    %1003 = vmatprep.subr.mxu0 0.0
    %1004 = vmatpush2.msra.mxu0 0.0
    %1005 = vmatprep.subr.mxu0 0.0
    %1006 = vmatpush2.msra.mxu0 0.0
    %1007 = vmatprep.subr.mxu0 0.0
    %1008 = vmatpush2.msra.mxu0 0.0
    %1009 = vmatprep.subr.mxu0 0.0
    %1010 = vmatpush2.msra.mxu0 0.0
    %1011 = vmatprep.subr.mxu0 0.0
    %1012 = vmatpush2.msra.mxu0 0.0
    %1013 = vmatprep.subr.mxu0 0.0
    %1014 = vmatpush2.msra.mxu0 0.0
    %1015 = vmatprep.subr.mxu0 0.0
    %1016 = vmatpush2.msra.mxu0 0.0
    %1017 = vmatprep.subr.mxu0 0.0
    %1018 = vmatpush2.msra.mxu0 0.0
    %1019 = vmatprep.subr.mxu0 0.0
    %1020 = vmatpush2.msra.mxu0 0.0
    %1021 = vmatprep.subr.mxu0 0.0
    %1022 = vmatpush2.msra.mxu0 0.0
    %1023 = vmatprep.subr.mxu0 0.0
    %1024 = vmatpush2.msra.mxu0 0.0
    %1025 = vmatprep.subr.mxu0 0.0
    %1026 = vmatpush2.msra.mxu0 0.0
    %1027 = vmatprep.subr.mxu0 0.0
    %1028 = vmatpush2.msra.mxu0 0.0
    %1029 = vmatprep.subr.mxu0 0.0
    %1030 = vmatpush2.msra.mxu0 0.0
    %1031 = vmatprep.mubr.f32.mxu0 0.0
    %1032 = vmatmul.mubr.f32.gmra.mxu0 %v957
    %v1033 = vpop.f32.mrf.mxu0
    %v1034 = vadd.f32 0.0, %v1033
    %v1035 = vpop.f32.mrf.mxu0
    %1036 = vmatprep.mubr.f32.mxu0 0.0
    %1037 = vmatmul.mubr.f32.gmra.mxu0 %v959
    %v1038 = vpop.f32.mrf.mxu0
    %v1039 = vadd.f32 0.0, %v1038
    %v1040 = vpop.f32.mrf.mxu0
    %1041 = vmatprep.mubr.f32.mxu0 0.0
    %1042 = vmatmul.mubr.f32.gmra.mxu0 %v961
    %v1043 = vpop.f32.mrf.mxu0
    %v1044 = vadd.f32 0.0, %v1043
    %v1045 = vpop.f32.mrf.mxu0
    %1046 = vmatprep.mubr.f32.mxu0 0.0
    %1047 = vmatmul.mubr.f32.gmra.mxu0 %v963
    %v1048 = vpop.f32.mrf.mxu0
    %v1049 = vadd.f32 0.0, %v1048
    %v1050 = vpop.f32.mrf.mxu0
    %1051 = vmatprep.mubr.f32.mxu0 0.0
    %1052 = vmatmul.mubr.f32.gmra.mxu0 %v965
    %v1053 = vpop.f32.mrf.mxu0
    %v1054 = vadd.f32 0.0, %v1053
    %v1055 = vpop.f32.mrf.mxu0
    %1056 = vdwg.mxu0
    %v1057 = vsel %vm845, %v929, 0
    %v1059 = vsel %vm845, %v930, 0
    %v1061 = vsel %vm845, %v931, 0
    %v1063 = vsel %vm845, %v932, 0
    %v1065 = vsel %vm845, %v933, 0
    %1067 = vmatprep.subr.mxu0 0.0
    %1068 = vmatpush1.msra.mxu0 0.0
    %1069 = vmatprep.subr.mxu0 0.0
    %1070 = vmatpush1.msra.mxu0 0.0
    %1071 = vmatprep.subr.mxu0 0.0
    %1072 = vmatpush1.msra.mxu0 0.0
    %1073 = vmatprep.subr.mxu0 0.0
    %1074 = vmatpush1.msra.mxu0 0.0
    %1075 = vmatprep.subr.mxu0 0.0
    %1076 = vmatpush1.msra.mxu0 0.0
    %1077 = vmatprep.subr.mxu0 0.0
    %1078 = vmatpush1.msra.mxu0 0.0
    %1079 = vmatprep.subr.mxu0 0.0
    %1080 = vmatpush1.msra.mxu0 0.0
    %1081 = vmatprep.subr.mxu0 0.0
    %1082 = vmatpush1.msra.mxu0 0.0
    %1083 = vmatprep.subr.mxu0 0.0
    %1084 = vmatpush1.msra.mxu0 0.0
    %1085 = vmatprep.subr.mxu0 0.0
    %1086 = vmatpush1.msra.mxu0 0.0
    %1087 = vmatprep.subr.mxu0 0.0
    %1088 = vmatpush1.msra.mxu0 0.0
    %1089 = vmatprep.subr.mxu0 0.0
    %1090 = vmatpush1.msra.mxu0 0.0
    %1091 = vmatprep.subr.mxu0 0.0
    %1092 = vmatpush1.msra.mxu0 %v938
    %1093 = vmatprep.subr.mxu0 0.0
    %1094 = vmatpush1.msra.mxu0 %v937
    %1095 = vmatprep.subr.mxu0 0.0
    %1096 = vmatpush1.msra.mxu0 %v936
    %1097 = vmatprep.subr.mxu0 0.0
    %1098 = vmatpush1.msra.mxu0 %v935
    %1099 = vmatprep.subr.mxu0 0.0
    %1100 = vmatpush2.msra.mxu0 0.0
    %1101 = vmatprep.subr.mxu0 0.0
    %1102 = vmatpush2.msra.mxu0 0.0
    %1103 = vmatprep.subr.mxu0 0.0
    %1104 = vmatpush2.msra.mxu0 0.0
    %1105 = vmatprep.subr.mxu0 0.0
    %1106 = vmatpush2.msra.mxu0 0.0
    %1107 = vmatprep.subr.mxu0 0.0
    %1108 = vmatpush2.msra.mxu0 0.0
    %1109 = vmatprep.subr.mxu0 0.0
    %1110 = vmatpush2.msra.mxu0 0.0
    %1111 = vmatprep.subr.mxu0 0.0
    %1112 = vmatpush2.msra.mxu0 0.0
    %1113 = vmatprep.subr.mxu0 0.0
    %1114 = vmatpush2.msra.mxu0 0.0
    %1115 = vmatprep.subr.mxu0 0.0
    %1116 = vmatpush2.msra.mxu0 0.0
    %1117 = vmatprep.subr.mxu0 0.0
    %1118 = vmatpush2.msra.mxu0 0.0
    %1119 = vmatprep.subr.mxu0 0.0
    %1120 = vmatpush2.msra.mxu0 0.0
    %1121 = vmatprep.subr.mxu0 0.0
    %1122 = vmatpush2.msra.mxu0 0.0
    %1123 = vmatprep.subr.mxu0 0.0
    %1124 = vmatpush2.msra.mxu0 0.0
    %1125 = vmatprep.subr.mxu0 0.0
    %1126 = vmatpush2.msra.mxu0 0.0
    %1127 = vmatprep.subr.mxu0 0.0
    %1128 = vmatpush2.msra.mxu0 0.0
    %1129 = vmatprep.subr.mxu0 0.0
    %1130 = vmatpush2.msra.mxu0 0.0
    %1131 = vmatprep.mubr.f32.mxu0 0.0
    %1132 = vmatmul.mubr.f32.gmra.mxu0 %v1057
    %v1133 = vpop.f32.mrf.mxu0
    %v1134 = vadd.f32 %v1034, %v1133
    %v1135 = vpop.f32.mrf.mxu0
    %1136 = vmatprep.mubr.f32.mxu0 0.0
    %1137 = vmatmul.mubr.f32.gmra.mxu0 %v1059
    %v1138 = vpop.f32.mrf.mxu0
    %v1139 = vadd.f32 %v1039, %v1138
    %v1140 = vpop.f32.mrf.mxu0
    %1141 = vmatprep.mubr.f32.mxu0 0.0
    %1142 = vmatmul.mubr.f32.gmra.mxu0 %v1061
    %v1143 = vpop.f32.mrf.mxu0
    %v1144 = vadd.f32 %v1044, %v1143
    %v1145 = vpop.f32.mrf.mxu0
    %1146 = vmatprep.mubr.f32.mxu0 0.0
    %1147 = vmatmul.mubr.f32.gmra.mxu0 %v1063
    %v1148 = vpop.f32.mrf.mxu0
    %v1149 = vadd.f32 %v1049, %v1148
    %v1150 = vpop.f32.mrf.mxu0
    %1151 = vmatprep.mubr.f32.mxu0 0.0
    %1152 = vmatmul.mubr.f32.gmra.mxu0 %v1065
    %v1153 = vpop.f32.mrf.mxu0
    %v1154 = vadd.f32 %v1054, %v1153
    %v1155 = vpop.f32.mrf.mxu0
    %1156 = vdwg.mxu0
    %v1157 = vld [vmem:[%s9 + $0x40] sm:$0xff]
    %v1158 = vld [vmem:[%s9 + $0x48] sm:$0xff]
    %v1159 = vld [vmem:[%s9 + $0x50] sm:$0xff]
    %v1160 = vld [vmem:[%s9 + $0x58] sm:$0xff]
    %v1162 = vrot.slane %v929, 5
    %v1163 = vrot.slane %v930, 5
    %v1164 = vsel %vm101, %v1162, %v1163
    %v1165 = vrot.slane %v931, 5
    %v1166 = vsel %vm101, %v1163, %v1165
    %v1167 = vrot.slane %v932, 5
    %v1168 = vsel %vm101, %v1165, %v1167
    %v1169 = vrot.slane %v933, 5
    %v1170 = vsel %vm101, %v1167, %v1169
    %v1171 = vrot.slane %v934, 5
    %v1172 = vsel %vm101, %v1169, %v1171
    %v1173 = vsel %vm845, %v1164, 0
    %v1175 = vsel %vm845, %v1166, 0
    %v1177 = vsel %vm845, %v1168, 0
    %v1179 = vsel %vm845, %v1170, 0
    %v1181 = vsel %vm845, %v1172, 0
    %1183 = vmatprep.subr.mxu0 0.0
    %1184 = vmatpush1.msra.mxu0 0.0
    %1185 = vmatprep.subr.mxu0 0.0
    %1186 = vmatpush1.msra.mxu0 0.0
    %1187 = vmatprep.subr.mxu0 0.0
    %1188 = vmatpush1.msra.mxu0 0.0
    %1189 = vmatprep.subr.mxu0 0.0
    %1190 = vmatpush1.msra.mxu0 0.0
    %1191 = vmatprep.subr.mxu0 0.0
    %1192 = vmatpush1.msra.mxu0 0.0
    %1193 = vmatprep.subr.mxu0 0.0
    %1194 = vmatpush1.msra.mxu0 0.0
    %1195 = vmatprep.subr.mxu0 0.0
    %1196 = vmatpush1.msra.mxu0 0.0
    %1197 = vmatprep.subr.mxu0 0.0
    %1198 = vmatpush1.msra.mxu0 0.0
    %1199 = vmatprep.subr.mxu0 0.0
    %1200 = vmatpush1.msra.mxu0 0.0
    %1201 = vmatprep.subr.mxu0 0.0
    %1202 = vmatpush1.msra.mxu0 0.0
    %1203 = vmatprep.subr.mxu0 0.0
    %1204 = vmatpush1.msra.mxu0 0.0
    %1205 = vmatprep.subr.mxu0 0.0
    %1206 = vmatpush1.msra.mxu0 0.0
    %1207 = vmatprep.subr.mxu0 0.0
    %1208 = vmatpush1.msra.mxu0 %v1160
    %1209 = vmatprep.subr.mxu0 0.0
    %1210 = vmatpush1.msra.mxu0 %v1159
    %1211 = vmatprep.subr.mxu0 0.0
    %1212 = vmatpush1.msra.mxu0 %v1158
    %1213 = vmatprep.subr.mxu0 0.0
    %1214 = vmatpush1.msra.mxu0 %v1157
    %1215 = vmatprep.subr.mxu0 0.0
    %1216 = vmatpush2.msra.mxu0 0.0
    %1217 = vmatprep.subr.mxu0 0.0
    %1218 = vmatpush2.msra.mxu0 0.0
    %1219 = vmatprep.subr.mxu0 0.0
    %1220 = vmatpush2.msra.mxu0 0.0
    %1221 = vmatprep.subr.mxu0 0.0
    %1222 = vmatpush2.msra.mxu0 0.0
    %1223 = vmatprep.subr.mxu0 0.0
    %1224 = vmatpush2.msra.mxu0 0.0
    %1225 = vmatprep.subr.mxu0 0.0
    %1226 = vmatpush2.msra.mxu0 0.0
    %1227 = vmatprep.subr.mxu0 0.0
    %1228 = vmatpush2.msra.mxu0 0.0
    %1229 = vmatprep.subr.mxu0 0.0
    %1230 = vmatpush2.msra.mxu0 0.0
    %1231 = vmatprep.subr.mxu0 0.0
    %1232 = vmatpush2.msra.mxu0 0.0
    %1233 = vmatprep.subr.mxu0 0.0
    %1234 = vmatpush2.msra.mxu0 0.0
    %1235 = vmatprep.subr.mxu0 0.0
    %1236 = vmatpush2.msra.mxu0 0.0
    %1237 = vmatprep.subr.mxu0 0.0
    %1238 = vmatpush2.msra.mxu0 0.0
    %1239 = vmatprep.subr.mxu0 0.0
    %1240 = vmatpush2.msra.mxu0 0.0
    %1241 = vmatprep.subr.mxu0 0.0
    %1242 = vmatpush2.msra.mxu0 0.0
    %1243 = vmatprep.subr.mxu0 0.0
    %1244 = vmatpush2.msra.mxu0 0.0
    %1245 = vmatprep.subr.mxu0 0.0
    %1246 = vmatpush2.msra.mxu0 0.0
    %1247 = vmatprep.mubr.f32.mxu0 0.0
    %1248 = vmatmul.mubr.f32.gmra.mxu0 %v1173
    %v1249 = vpop.f32.mrf.mxu0
    %v1250 = vadd.f32 0.0, %v1249
    %v1251 = vpop.f32.mrf.mxu0
    %1252 = vmatprep.mubr.f32.mxu0 0.0
    %1253 = vmatmul.mubr.f32.gmra.mxu0 %v1175
    %v1254 = vpop.f32.mrf.mxu0
    %v1255 = vadd.f32 0.0, %v1254
    %v1256 = vpop.f32.mrf.mxu0
    %1257 = vmatprep.mubr.f32.mxu0 0.0
    %1258 = vmatmul.mubr.f32.gmra.mxu0 %v1177
    %v1259 = vpop.f32.mrf.mxu0
    %v1260 = vadd.f32 0.0, %v1259
    %v1261 = vpop.f32.mrf.mxu0
    %1262 = vmatprep.mubr.f32.mxu0 0.0
    %1263 = vmatmul.mubr.f32.gmra.mxu0 %v1179
    %v1264 = vpop.f32.mrf.mxu0
    %v1265 = vadd.f32 0.0, %v1264
    %v1266 = vpop.f32.mrf.mxu0
    %1267 = vmatprep.mubr.f32.mxu0 0.0
    %1268 = vmatmul.mubr.f32.gmra.mxu0 %v1181
    %v1269 = vpop.f32.mrf.mxu0
    %v1270 = vadd.f32 0.0, %v1269
    %v1271 = vpop.f32.mrf.mxu0
    %1272 = vdwg.mxu0
    %v1273 = vadd.f32 %v1134, %v1250
    %v1274 = vadd.f32 %v1139, %v1255
    %v1275 = vadd.f32 %v1144, %v1260
    %v1276 = vadd.f32 %v1149, %v1265
    %v1277 = vadd.f32 %v1154, %v1270
    %v1278 = vld [vmem:[%s9 + $0x60] sm:$0xff]
    %v1279 = vld [vmem:[%s9 + $0x68] sm:$0xff]
    %v1280 = vld [vmem:[%s9 + $0x70] sm:$0xff]
    %v1281 = vld [vmem:[%s9 + $0x78] sm:$0xff]
    %v1282 = vrot.slane %v929, 6
    %v1283 = vrot.slane %v930, 6
    %v1284 = vsel %vm674, %v1282, %v1283
    %v1285 = vrot.slane %v931, 6
    %v1286 = vsel %vm674, %v1283, %v1285
    %v1287 = vrot.slane %v932, 6
    %v1288 = vsel %vm674, %v1285, %v1287
    %v1289 = vrot.slane %v933, 6
    %v1290 = vsel %vm674, %v1287, %v1289
    %v1291 = vrot.slane %v934, 6
    %v1292 = vsel %vm674, %v1289, %v1291
    %v1293 = vsel %vm845, %v1284, 0
    %v1295 = vsel %vm845, %v1286, 0
    %v1297 = vsel %vm845, %v1288, 0
    %v1299 = vsel %vm845, %v1290, 0
    %v1301 = vsel %vm845, %v1292, 0
    %1303 = vmatprep.subr.mxu0 0.0
    %1304 = vmatpush1.msra.mxu0 0.0
    %1305 = vmatprep.subr.mxu0 0.0
    %1306 = vmatpush1.msra.mxu0 0.0
    %1307 = vmatprep.subr.mxu0 0.0
    %1308 = vmatpush1.msra.mxu0 0.0
    %1309 = vmatprep.subr.mxu0 0.0
    %1310 = vmatpush1.msra.mxu0 0.0
    %1311 = vmatprep.subr.mxu0 0.0
    %1312 = vmatpush1.msra.mxu0 0.0
    %1313 = vmatprep.subr.mxu0 0.0
    %1314 = vmatpush1.msra.mxu0 0.0
    %1315 = vmatprep.subr.mxu0 0.0
    %1316 = vmatpush1.msra.mxu0 0.0
    %1317 = vmatprep.subr.mxu0 0.0
    %1318 = vmatpush1.msra.mxu0 0.0
    %1319 = vmatprep.subr.mxu0 0.0
    %1320 = vmatpush1.msra.mxu0 0.0
    %1321 = vmatprep.subr.mxu0 0.0
    %1322 = vmatpush1.msra.mxu0 0.0
    %1323 = vmatprep.subr.mxu0 0.0
    %1324 = vmatpush1.msra.mxu0 0.0
    %1325 = vmatprep.subr.mxu0 0.0
    %1326 = vmatpush1.msra.mxu0 0.0
    %1327 = vmatprep.subr.mxu0 0.0
    %1328 = vmatpush1.msra.mxu0 %v1281
    %1329 = vmatprep.subr.mxu0 0.0
    %1330 = vmatpush1.msra.mxu0 %v1280
    %1331 = vmatprep.subr.mxu0 0.0
    %1332 = vmatpush1.msra.mxu0 %v1279
    %1333 = vmatprep.subr.mxu0 0.0
    %1334 = vmatpush1.msra.mxu0 %v1278
    %1335 = vmatprep.subr.mxu0 0.0
    %1336 = vmatpush2.msra.mxu0 0.0
    %1337 = vmatprep.subr.mxu0 0.0
    %1338 = vmatpush2.msra.mxu0 0.0
    %1339 = vmatprep.subr.mxu0 0.0
    %1340 = vmatpush2.msra.mxu0 0.0
    %1341 = vmatprep.subr.mxu0 0.0
    %1342 = vmatpush2.msra.mxu0 0.0
    %1343 = vmatprep.subr.mxu0 0.0
    %1344 = vmatpush2.msra.mxu0 0.0
    %1345 = vmatprep.subr.mxu0 0.0
    %1346 = vmatpush2.msra.mxu0 0.0
    %1347 = vmatprep.subr.mxu0 0.0
    %1348 = vmatpush2.msra.mxu0 0.0
    %1349 = vmatprep.subr.mxu0 0.0
    %1350 = vmatpush2.msra.mxu0 0.0
    %1351 = vmatprep.subr.mxu0 0.0
    %1352 = vmatpush2.msra.mxu0 0.0
    %1353 = vmatprep.subr.mxu0 0.0
    %1354 = vmatpush2.msra.mxu0 0.0
    %1355 = vmatprep.subr.mxu0 0.0
    %1356 = vmatpush2.msra.mxu0 0.0
    %1357 = vmatprep.subr.mxu0 0.0
    %1358 = vmatpush2.msra.mxu0 0.0
    %1359 = vmatprep.subr.mxu0 0.0
    %1360 = vmatpush2.msra.mxu0 0.0
    %1361 = vmatprep.subr.mxu0 0.0
    %1362 = vmatpush2.msra.mxu0 0.0
    %1363 = vmatprep.subr.mxu0 0.0
    %1364 = vmatpush2.msra.mxu0 0.0
    %1365 = vmatprep.subr.mxu0 0.0
    %1366 = vmatpush2.msra.mxu0 0.0
    %1367 = vmatprep.mubr.f32.mxu0 0.0
    %1368 = vmatmul.mubr.f32.gmra.mxu0 %v1293
    %v1369 = vpop.f32.mrf.mxu0
    %v1370 = vadd.f32 0.0, %v1369
    %v1371 = vpop.f32.mrf.mxu0
    %1372 = vmatprep.mubr.f32.mxu0 0.0
    %1373 = vmatmul.mubr.f32.gmra.mxu0 %v1295
    %v1374 = vpop.f32.mrf.mxu0
    %v1375 = vadd.f32 0.0, %v1374
    %v1376 = vpop.f32.mrf.mxu0
    %1377 = vmatprep.mubr.f32.mxu0 0.0
    %1378 = vmatmul.mubr.f32.gmra.mxu0 %v1297
    %v1379 = vpop.f32.mrf.mxu0
    %v1380 = vadd.f32 0.0, %v1379
    %v1381 = vpop.f32.mrf.mxu0
    %1382 = vmatprep.mubr.f32.mxu0 0.0
    %1383 = vmatmul.mubr.f32.gmra.mxu0 %v1299
    %v1384 = vpop.f32.mrf.mxu0
    %v1385 = vadd.f32 0.0, %v1384
    %v1386 = vpop.f32.mrf.mxu0
    %1387 = vmatprep.mubr.f32.mxu0 0.0
    %1388 = vmatmul.mubr.f32.gmra.mxu0 %v1301
    %v1389 = vpop.f32.mrf.mxu0
    %v1390 = vadd.f32 0.0, %v1389
    %v1391 = vpop.f32.mrf.mxu0
    %1392 = vdwg.mxu0
    %v1393 = vadd.f32 %v1273, %v1370
    %v1394 = vadd.f32 %v1274, %v1375
    %v1395 = vadd.f32 %v1275, %v1380
    %v1396 = vadd.f32 %v1276, %v1385
    %v1397 = vadd.f32 %v1277, %v1390
    %v1398 = vld [vmem:[%s10] sm:$0x1]
    %v1399 = vld [vmem:[%s11] sm:$0x1]
    %v1400 = vld [vmem:[%s2] sm:$0xff]
    %v1401 = vld [vmem:[%s2 + $0x8] sm:$0xff]
    %v1402 = vld [vmem:[%s2 + $0x10] sm:$0xff]
    %v1403 = vld [vmem:[%s2 + $0x18] sm:$0xff]
    %v1404 = vld [vmem:[%s2 + $0x20] sm:$0x3f]
    %1406 = vset.pattern.permute.xlu0 0
    %1407 = vperm.xlu0 %1406, %v1400
    %v1408 = vpop.permute.xlu0 %1407
    %1411 = vset.pattern.permute.xlu0 0
    %1412 = vperm.xlu0 %1411, %v1401
    %v1413 = vpop.permute.xlu0 %1412
    %1416 = vset.pattern.permute.xlu0 0
    %1417 = vperm.xlu0 %1416, %v1402
    %v1418 = vpop.permute.xlu0 %1417
    %1421 = vset.pattern.permute.xlu0 0
    %1422 = vperm.xlu0 %1421, %v1403
    %v1423 = vpop.permute.xlu0 %1422
    %1426 = vset.pattern.permute.xlu0 0
    %1427 = vperm.xlu0 %1426, %v1404
    %v1428 = vpop.permute.xlu0 %1427
    %v1430 = vmul.f32 %v1393, %v1408
    %v1431 = vmul.f32 %v1394, %v1413
    %v1432 = vmul.f32 %v1395, %v1418
    %v1433 = vmul.f32 %v1396, %v1423
    %v1434 = vmul.f32 %v1397, %v1428
    %vm1435 = vcmask 523264
    %v1436 = vsel %vm1435, %v1430, 0.0
    %v1437 = vsel %vm1435, %v1431, 0.0
    %v1438 = vadd.f32 %v1436, %v1437
    %v1439 = vsel %vm1435, %v1432, 0.0
    %v1440 = vadd.f32 %v1438, %v1439
    %v1441 = vsel %vm1435, %v1433, 0.0
    %v1442 = vadd.f32 %v1440, %v1441
    %vm1443 = vcmask 521216
    %v1444 = vsel %vm1443, %v1434, 0.0
    %v1445 = vadd.f32 %v1442, %v1444
    %v1446 = vrot.slane %v1445, 4
    %v1447 = vadd.f32 %v1445, %v1446
    %v1448 = vrot.slane %v1447, 2
    %v1449 = vadd.f32 %v1447, %v1448
    %v1450 = vrot.slane %v1449, 1
    %v1451 = vadd.f32 %v1449, %v1450
    %v1452 = vmul.f32 %v1430, %v1430
    %v1453 = vmul.f32 %v1431, %v1431
    %v1454 = vmul.f32 %v1432, %v1432
    %v1455 = vmul.f32 %v1433, %v1433
    %v1456 = vmul.f32 %v1434, %v1434
    %v1457 = vsel %vm1435, %v1452, 0.0
    %v1458 = vsel %vm1435, %v1453, 0.0
    %v1459 = vadd.f32 %v1457, %v1458
    %v1460 = vsel %vm1435, %v1454, 0.0
    %v1461 = vadd.f32 %v1459, %v1460
    %v1462 = vsel %vm1435, %v1455, 0.0
    %v1463 = vadd.f32 %v1461, %v1462
    %v1464 = vsel %vm1443, %v1456, 0.0
    %v1465 = vadd.f32 %v1463, %v1464
    %v1466 = vrot.slane %v1465, 4
    %v1467 = vadd.f32 %v1465, %v1466
    %v1468 = vrot.slane %v1467, 2
    %v1469 = vadd.f32 %v1467, %v1468
    %v1470 = vrot.slane %v1469, 1
    %v1471 = vadd.f32 %v1469, %v1470
    %v1472 = vmul.f32 %v1451, 0.055555556
    %v1473 = vmul.f32 %v1471, 0.055555556
    %v1474 = vmul.f32 %v1472, %v1472
    %v1475 = vsub.f32 %v1473, %v1474
    %v1476 = vsub.f32 %v1393, %v1472
    %v1477 = vsub.f32 %v1394, %v1472
    %v1478 = vsub.f32 %v1395, %v1472
    %v1479 = vsub.f32 %v1396, %v1472
    %v1480 = vsub.f32 %v1397, %v1472
    %v1481 = vadd.f32 %v1475, 1e-05
    %v1482 = vrsqrt.pop %v1481
    %v1483 = vmul.f32 %v1476, %v1482
    %v1484 = vmul.f32 %v1477, %v1482
    %v1485 = vmul.f32 %v1478, %v1482
    %v1486 = vmul.f32 %v1479, %v1482
    %v1487 = vmul.f32 %v1480, %v1482
    %v1489 = vlaneseq
    %v1490 = vshrl.u32 %v1489, 7
    %v1491 = vsub.s32 0, %v1490
    %v1492 = vrot.slane %v1398, %v1491
    %v1494 = vmul.f32 %v1483, %v1492
    %v1495 = vmul.f32 %v1484, %v1492
    %v1496 = vmul.f32 %v1485, %v1492
    %v1497 = vmul.f32 %v1486, %v1492
    %v1498 = vmul.f32 %v1487, %v1492
    %v1500 = vlaneseq
    %v1501 = vshrl.u32 %v1500, 7
    %v1502 = vsub.s32 0, %v1501
    %v1503 = vrot.slane %v1399, %v1502
    %v1505 = vadd.f32 %v1494, %v1503
    %v1506 = vadd.f32 %v1495, %v1503
    %v1507 = vadd.f32 %v1496, %v1503
    %v1508 = vadd.f32 %v1497, %v1503
    %v1509 = vadd.f32 %v1498, %v1503
    %v1510 = vmax.f32 %v1505, 0.0
    %v1511 = vmax.f32 %v1506, 0.0
    %v1512 = vmax.f32 %v1507, 0.0
    %v1513 = vmax.f32 %v1508, 0.0
    %v1514 = vmax.f32 %v1509, 0.0
    %v1515 = vld [vmem:[%s12] sm:$0xff]
    %v1516 = vld [vmem:[%s12 + $0x8] sm:$0xff]
    %v1517 = vld [vmem:[%s12 + $0x10] sm:$0xff]
    %v1518 = vld [vmem:[%s12 + $0x18] sm:$0xff]
    %v1519 = vld [vmem:[%s12 + $0x20] sm:$0xff]
    %v1520 = vld [vmem:[%s12 + $0x28] sm:$0xff]
    %v1521 = vld [vmem:[%s12 + $0x30] sm:$0xff]
    %v1522 = vld [vmem:[%s12 + $0x38] sm:$0xff]
    %v1523 = vld [vmem:[%s12 + $0x40] sm:$0xff]
    %v1524 = vld [vmem:[%s12 + $0x48] sm:$0xff]
    %v1525 = vld [vmem:[%s12 + $0x50] sm:$0xff]
    %v1526 = vld [vmem:[%s12 + $0x58] sm:$0xff]
    %v1527 = vld [vmem:[%s12 + $0x60] sm:$0xff]
    %v1528 = vld [vmem:[%s12 + $0x68] sm:$0xff]
    %v1529 = vld [vmem:[%s12 + $0x70] sm:$0xff]
    %v1530 = vld [vmem:[%s12 + $0x78] sm:$0xff]
    %v1535 = vrot.slane %v1510, 1
    %v1536 = vrot.slane %v1511, 1
    %v1537 = vsel %vm317, %v1535, %v1536
    %v1538 = vrot.slane %v1512, 1
    %v1539 = vsel %vm317, %v1536, %v1538
    %v1540 = vrot.slane %v1513, 1
    %v1541 = vsel %vm317, %v1538, %v1540
    %v1542 = vsel %vm1435, %v1537, 0
    %v1544 = vsel %vm1435, %v1539, 0
    %v1546 = vsel %vm1435, %v1541, 0
    %v1548 = vsel %vm1435, %v1540, 0
    %1550 = vmatprep.subr.mxu0 0.0
    %1551 = vmatpush1.msra.mxu0 0.0
    %1552 = vmatprep.subr.mxu0 0.0
    %1553 = vmatpush1.msra.mxu0 0.0
    %1554 = vmatprep.subr.mxu0 0.0
    %1555 = vmatpush1.msra.mxu0 0.0
    %1556 = vmatprep.subr.mxu0 0.0
    %1557 = vmatpush1.msra.mxu0 0.0
    %1558 = vmatprep.subr.mxu0 0.0
    %1559 = vmatpush1.msra.mxu0 0.0
    %1560 = vmatprep.subr.mxu0 0.0
    %1561 = vmatpush1.msra.mxu0 0.0
    %1562 = vmatprep.subr.mxu0 0.0
    %1563 = vmatpush1.msra.mxu0 0.0
    %1564 = vmatprep.subr.mxu0 0.0
    %1565 = vmatpush1.msra.mxu0 0.0
    %1566 = vmatprep.subr.mxu0 0.0
    %1567 = vmatpush1.msra.mxu0 %v1530
    %1568 = vmatprep.subr.mxu0 0.0
    %1569 = vmatpush1.msra.mxu0 %v1529
    %1570 = vmatprep.subr.mxu0 0.0
    %1571 = vmatpush1.msra.mxu0 %v1528
    %1572 = vmatprep.subr.mxu0 0.0
    %1573 = vmatpush1.msra.mxu0 %v1527
    %1574 = vmatprep.subr.mxu0 0.0
    %1575 = vmatpush1.msra.mxu0 %v1526
    %1576 = vmatprep.subr.mxu0 0.0
    %1577 = vmatpush1.msra.mxu0 %v1525
    %1578 = vmatprep.subr.mxu0 0.0
    %1579 = vmatpush1.msra.mxu0 %v1524
    %1580 = vmatprep.subr.mxu0 0.0
    %1581 = vmatpush1.msra.mxu0 %v1523
    %1582 = vmatprep.subr.mxu0 0.0
    %1583 = vmatpush2.msra.mxu0 0.0
    %1584 = vmatprep.subr.mxu0 0.0
    %1585 = vmatpush2.msra.mxu0 0.0
    %1586 = vmatprep.subr.mxu0 0.0
    %1587 = vmatpush2.msra.mxu0 0.0
    %1588 = vmatprep.subr.mxu0 0.0
    %1589 = vmatpush2.msra.mxu0 0.0
    %1590 = vmatprep.subr.mxu0 0.0
    %1591 = vmatpush2.msra.mxu0 0.0
    %1592 = vmatprep.subr.mxu0 0.0
    %1593 = vmatpush2.msra.mxu0 0.0
    %1594 = vmatprep.subr.mxu0 0.0
    %1595 = vmatpush2.msra.mxu0 0.0
    %1596 = vmatprep.subr.mxu0 0.0
    %1597 = vmatpush2.msra.mxu0 0.0
    %1598 = vmatprep.subr.mxu0 0.0
    %1599 = vmatpush2.msra.mxu0 0.0
    %1600 = vmatprep.subr.mxu0 0.0
    %1601 = vmatpush2.msra.mxu0 0.0
    %1602 = vmatprep.subr.mxu0 0.0
    %1603 = vmatpush2.msra.mxu0 0.0
    %1604 = vmatprep.subr.mxu0 0.0
    %1605 = vmatpush2.msra.mxu0 0.0
    %1606 = vmatprep.subr.mxu0 0.0
    %1607 = vmatpush2.msra.mxu0 0.0
    %1608 = vmatprep.subr.mxu0 0.0
    %1609 = vmatpush2.msra.mxu0 0.0
    %1610 = vmatprep.subr.mxu0 0.0
    %1611 = vmatpush2.msra.mxu0 0.0
    %1612 = vmatprep.subr.mxu0 0.0
    %1613 = vmatpush2.msra.mxu0 0.0
    %1614 = vmatprep.mubr.f32.mxu0 0.0
    %1615 = vmatmul.mubr.f32.gmra.mxu0 %v1542
    %v1616 = vpop.f32.mrf.mxu0
    %v1617 = vadd.f32 0.0, %v1616
    %v1618 = vpop.f32.mrf.mxu0
    %1619 = vmatprep.mubr.f32.mxu0 0.0
    %1620 = vmatmul.mubr.f32.gmra.mxu0 %v1544
    %v1621 = vpop.f32.mrf.mxu0
    %v1622 = vpop.f32.mrf.mxu0
    %1623 = vmatprep.mubr.f32.mxu0 0.0
    %1624 = vmatmul.mubr.f32.gmra.mxu0 %v1546
    %v1625 = vpop.f32.mrf.mxu0
    %v1626 = vpop.f32.mrf.mxu0
    %1627 = vmatprep.mubr.f32.mxu0 0.0
    %1628 = vmatmul.mubr.f32.gmra.mxu0 %v1548
    %v1629 = vpop.f32.mrf.mxu0
    %v1630 = vadd.f32 0.0, %v1629
    %v1631 = vpop.f32.mrf.mxu0
    %1632 = vdwg.mxu0
    %v1633 = vsel %vm1435, %v1510, 0
    %v1635 = vsel %vm1435, %v1511, 0
    %v1637 = vsel %vm1435, %v1512, 0
    %v1639 = vsel %vm1435, %v1513, 0
    %1641 = vmatprep.subr.mxu0 0.0
    %1642 = vmatpush1.msra.mxu0 0.0
    %1643 = vmatprep.subr.mxu0 0.0
    %1644 = vmatpush1.msra.mxu0 0.0
    %1645 = vmatprep.subr.mxu0 0.0
    %1646 = vmatpush1.msra.mxu0 0.0
    %1647 = vmatprep.subr.mxu0 0.0
    %1648 = vmatpush1.msra.mxu0 0.0
    %1649 = vmatprep.subr.mxu0 0.0
    %1650 = vmatpush1.msra.mxu0 0.0
    %1651 = vmatprep.subr.mxu0 0.0
    %1652 = vmatpush1.msra.mxu0 0.0
    %1653 = vmatprep.subr.mxu0 0.0
    %1654 = vmatpush1.msra.mxu0 0.0
    %1655 = vmatprep.subr.mxu0 0.0
    %1656 = vmatpush1.msra.mxu0 0.0
    %1657 = vmatprep.subr.mxu0 0.0
    %1658 = vmatpush1.msra.mxu0 %v1522
    %1659 = vmatprep.subr.mxu0 0.0
    %1660 = vmatpush1.msra.mxu0 %v1521
    %1661 = vmatprep.subr.mxu0 0.0
    %1662 = vmatpush1.msra.mxu0 %v1520
    %1663 = vmatprep.subr.mxu0 0.0
    %1664 = vmatpush1.msra.mxu0 %v1519
    %1665 = vmatprep.subr.mxu0 0.0
    %1666 = vmatpush1.msra.mxu0 %v1518
    %1667 = vmatprep.subr.mxu0 0.0
    %1668 = vmatpush1.msra.mxu0 %v1517
    %1669 = vmatprep.subr.mxu0 0.0
    %1670 = vmatpush1.msra.mxu0 %v1516
    %1671 = vmatprep.subr.mxu0 0.0
    %1672 = vmatpush1.msra.mxu0 %v1515
    %1673 = vmatprep.subr.mxu0 0.0
    %1674 = vmatpush2.msra.mxu0 0.0
    %1675 = vmatprep.subr.mxu0 0.0
    %1676 = vmatpush2.msra.mxu0 0.0
    %1677 = vmatprep.subr.mxu0 0.0
    %1678 = vmatpush2.msra.mxu0 0.0
    %1679 = vmatprep.subr.mxu0 0.0
    %1680 = vmatpush2.msra.mxu0 0.0
    %1681 = vmatprep.subr.mxu0 0.0
    %1682 = vmatpush2.msra.mxu0 0.0
    %1683 = vmatprep.subr.mxu0 0.0
    %1684 = vmatpush2.msra.mxu0 0.0
    %1685 = vmatprep.subr.mxu0 0.0
    %1686 = vmatpush2.msra.mxu0 0.0
    %1687 = vmatprep.subr.mxu0 0.0
    %1688 = vmatpush2.msra.mxu0 0.0
    %1689 = vmatprep.subr.mxu0 0.0
    %1690 = vmatpush2.msra.mxu0 0.0
    %1691 = vmatprep.subr.mxu0 0.0
    %1692 = vmatpush2.msra.mxu0 0.0
    %1693 = vmatprep.subr.mxu0 0.0
    %1694 = vmatpush2.msra.mxu0 0.0
    %1695 = vmatprep.subr.mxu0 0.0
    %1696 = vmatpush2.msra.mxu0 0.0
    %1697 = vmatprep.subr.mxu0 0.0
    %1698 = vmatpush2.msra.mxu0 0.0
    %1699 = vmatprep.subr.mxu0 0.0
    %1700 = vmatpush2.msra.mxu0 0.0
    %1701 = vmatprep.subr.mxu0 0.0
    %1702 = vmatpush2.msra.mxu0 0.0
    %1703 = vmatprep.subr.mxu0 0.0
    %1704 = vmatpush2.msra.mxu0 0.0
    %1705 = vmatprep.mubr.f32.mxu0 0.0
    %1706 = vmatmul.mubr.f32.gmra.mxu0 %v1633
    %v1707 = vpop.f32.mrf.mxu0
    %v1708 = vadd.f32 %v1617, %v1707
    %v1709 = vpop.f32.mrf.mxu0
    %1710 = vmatprep.mubr.f32.mxu0 0.0
    %1711 = vmatmul.mubr.f32.gmra.mxu0 %v1635
    %v1712 = vpop.f32.mrf.mxu0
    %v1713 = vpop.f32.mrf.mxu0
    %1714 = vmatprep.mubr.f32.mxu0 0.0
    %1715 = vmatmul.mubr.f32.gmra.mxu0 %v1637
    %v1716 = vpop.f32.mrf.mxu0
    %v1717 = vpop.f32.mrf.mxu0
    %1718 = vmatprep.mubr.f32.mxu0 0.0
    %1719 = vmatmul.mubr.f32.gmra.mxu0 %v1639
    %v1720 = vpop.f32.mrf.mxu0
    %v1721 = vadd.f32 %v1630, %v1720
    %v1722 = vpop.f32.mrf.mxu0
    %1723 = vdwg.mxu0
    %v1724 = vld [vmem:[%s12 + $0x80] sm:$0xff]
    %v1725 = vld [vmem:[%s12 + $0x88] sm:$0xff]
    %v1726 = vld [vmem:[%s12 + $0x90] sm:$0xff]
    %v1727 = vld [vmem:[%s12 + $0x98] sm:$0xff]
    %v1728 = vld [vmem:[%s12 + $0xa0] sm:$0xff]
    %v1729 = vld [vmem:[%s12 + $0xa8] sm:$0xff]
    %v1730 = vld [vmem:[%s12 + $0xb0] sm:$0xff]
    %v1731 = vld [vmem:[%s12 + $0xb8] sm:$0xff]
    %vm1732 = vcmask 1045504
    %v1733 = vrot.slane %v1510, 2
    %v1734 = vrot.slane %v1511, 2
    %v1735 = vsel %vm1732, %v1733, %v1734
    %v1736 = vrot.slane %v1512, 2
    %v1737 = vsel %vm1732, %v1734, %v1736
    %v1738 = vrot.slane %v1513, 2
    %v1739 = vsel %vm1732, %v1736, %v1738
    %v1740 = vsel %vm1435, %v1735, 0
    %v1742 = vsel %vm1435, %v1737, 0
    %v1744 = vsel %vm1435, %v1739, 0
    %v1746 = vsel %vm1435, %v1738, 0
    %1748 = vmatprep.subr.mxu0 0.0
    %1749 = vmatpush1.msra.mxu0 0.0
    %1750 = vmatprep.subr.mxu0 0.0
    %1751 = vmatpush1.msra.mxu0 0.0
    %1752 = vmatprep.subr.mxu0 0.0
    %1753 = vmatpush1.msra.mxu0 0.0
    %1754 = vmatprep.subr.mxu0 0.0
    %1755 = vmatpush1.msra.mxu0 0.0
    %1756 = vmatprep.subr.mxu0 0.0
    %1757 = vmatpush1.msra.mxu0 0.0
    %1758 = vmatprep.subr.mxu0 0.0
    %1759 = vmatpush1.msra.mxu0 0.0
    %1760 = vmatprep.subr.mxu0 0.0
    %1761 = vmatpush1.msra.mxu0 0.0
    %1762 = vmatprep.subr.mxu0 0.0
    %1763 = vmatpush1.msra.mxu0 0.0
    %1764 = vmatprep.subr.mxu0 0.0
    %1765 = vmatpush1.msra.mxu0 %v1731
    %1766 = vmatprep.subr.mxu0 0.0
    %1767 = vmatpush1.msra.mxu0 %v1730
    %1768 = vmatprep.subr.mxu0 0.0
    %1769 = vmatpush1.msra.mxu0 %v1729
    %1770 = vmatprep.subr.mxu0 0.0
    %1771 = vmatpush1.msra.mxu0 %v1728
    %1772 = vmatprep.subr.mxu0 0.0
    %1773 = vmatpush1.msra.mxu0 %v1727
    %1774 = vmatprep.subr.mxu0 0.0
    %1775 = vmatpush1.msra.mxu0 %v1726
    %1776 = vmatprep.subr.mxu0 0.0
    %1777 = vmatpush1.msra.mxu0 %v1725
    %1778 = vmatprep.subr.mxu0 0.0
    %1779 = vmatpush1.msra.mxu0 %v1724
    %1780 = vmatprep.subr.mxu0 0.0
    %1781 = vmatpush2.msra.mxu0 0.0
    %1782 = vmatprep.subr.mxu0 0.0
    %1783 = vmatpush2.msra.mxu0 0.0
    %1784 = vmatprep.subr.mxu0 0.0
    %1785 = vmatpush2.msra.mxu0 0.0
    %1786 = vmatprep.subr.mxu0 0.0
    %1787 = vmatpush2.msra.mxu0 0.0
    %1788 = vmatprep.subr.mxu0 0.0
    %1789 = vmatpush2.msra.mxu0 0.0
    %1790 = vmatprep.subr.mxu0 0.0
    %1791 = vmatpush2.msra.mxu0 0.0
    %1792 = vmatprep.subr.mxu0 0.0
    %1793 = vmatpush2.msra.mxu0 0.0
    %1794 = vmatprep.subr.mxu0 0.0
    %1795 = vmatpush2.msra.mxu0 0.0
    %1796 = vmatprep.subr.mxu0 0.0
    %1797 = vmatpush2.msra.mxu0 0.0
    %1798 = vmatprep.subr.mxu0 0.0
    %1799 = vmatpush2.msra.mxu0 0.0
    %1800 = vmatprep.subr.mxu0 0.0
    %1801 = vmatpush2.msra.mxu0 0.0
    %1802 = vmatprep.subr.mxu0 0.0
    %1803 = vmatpush2.msra.mxu0 0.0
    %1804 = vmatprep.subr.mxu0 0.0
    %1805 = vmatpush2.msra.mxu0 0.0
    %1806 = vmatprep.subr.mxu0 0.0
    %1807 = vmatpush2.msra.mxu0 0.0
    %1808 = vmatprep.subr.mxu0 0.0
    %1809 = vmatpush2.msra.mxu0 0.0
    %1810 = vmatprep.subr.mxu0 0.0
    %1811 = vmatpush2.msra.mxu0 0.0
    %1812 = vmatprep.mubr.f32.mxu0 0.0
    %1813 = vmatmul.mubr.f32.gmra.mxu0 %v1740
    %v1814 = vpop.f32.mrf.mxu0
    %v1815 = vadd.f32 0.0, %v1814
    %v1816 = vpop.f32.mrf.mxu0
    %1817 = vmatprep.mubr.f32.mxu0 0.0
    %1818 = vmatmul.mubr.f32.gmra.mxu0 %v1742
    %v1819 = vpop.f32.mrf.mxu0
    %v1820 = vpop.f32.mrf.mxu0
    %1821 = vmatprep.mubr.f32.mxu0 0.0
    %1822 = vmatmul.mubr.f32.gmra.mxu0 %v1744
    %v1823 = vpop.f32.mrf.mxu0
    %v1824 = vpop.f32.mrf.mxu0
    %1825 = vmatprep.mubr.f32.mxu0 0.0
    %1826 = vmatmul.mubr.f32.gmra.mxu0 %v1746
    %v1827 = vpop.f32.mrf.mxu0
    %v1828 = vadd.f32 0.0, %v1827
    %v1829 = vpop.f32.mrf.mxu0
    %1830 = vdwg.mxu0
    %v1831 = vadd.f32 %v1708, %v1815
    %v1832 = vadd.f32 %v1721, %v1828
    %v1833 = vld [vmem:[%s12 + $0xc0] sm:$0xff]
    %v1834 = vld [vmem:[%s12 + $0xc8] sm:$0xff]
    %v1835 = vld [vmem:[%s12 + $0xd0] sm:$0xff]
    %v1836 = vld [vmem:[%s12 + $0xd8] sm:$0xff]
    %v1837 = vld [vmem:[%s12 + $0xe0] sm:$0xff]
    %v1838 = vld [vmem:[%s12 + $0xe8] sm:$0xff]
    %v1839 = vld [vmem:[%s12 + $0xf0] sm:$0xff]
    %v1840 = vld [vmem:[%s12 + $0xf8] sm:$0xff]
    %v1841 = vrot.slane %v1510, 5
    %v1842 = vrot.slane %v1511, 5
    %v1843 = vsel %vm101, %v1841, %v1842
    %v1844 = vrot.slane %v1512, 5
    %v1845 = vsel %vm101, %v1842, %v1844
    %v1846 = vrot.slane %v1513, 5
    %v1847 = vsel %vm101, %v1844, %v1846
    %v1848 = vsel %vm1435, %v1843, 0
    %v1850 = vsel %vm1435, %v1845, 0
    %v1852 = vsel %vm1435, %v1847, 0
    %v1854 = vsel %vm1435, %v1846, 0
    %1856 = vmatprep.subr.mxu0 0.0
    %1857 = vmatpush1.msra.mxu0 0.0
    %1858 = vmatprep.subr.mxu0 0.0
    %1859 = vmatpush1.msra.mxu0 0.0
    %1860 = vmatprep.subr.mxu0 0.0
    %1861 = vmatpush1.msra.mxu0 0.0
    %1862 = vmatprep.subr.mxu0 0.0
    %1863 = vmatpush1.msra.mxu0 0.0
    %1864 = vmatprep.subr.mxu0 0.0
    %1865 = vmatpush1.msra.mxu0 0.0
    %1866 = vmatprep.subr.mxu0 0.0
    %1867 = vmatpush1.msra.mxu0 0.0
    %1868 = vmatprep.subr.mxu0 0.0
    %1869 = vmatpush1.msra.mxu0 0.0
    %1870 = vmatprep.subr.mxu0 0.0
    %1871 = vmatpush1.msra.mxu0 0.0
    %1872 = vmatprep.subr.mxu0 0.0
    %1873 = vmatpush1.msra.mxu0 %v1840
    %1874 = vmatprep.subr.mxu0 0.0
    %1875 = vmatpush1.msra.mxu0 %v1839
    %1876 = vmatprep.subr.mxu0 0.0
    %1877 = vmatpush1.msra.mxu0 %v1838
    %1878 = vmatprep.subr.mxu0 0.0
    %1879 = vmatpush1.msra.mxu0 %v1837
    %1880 = vmatprep.subr.mxu0 0.0
    %1881 = vmatpush1.msra.mxu0 %v1836
    %1882 = vmatprep.subr.mxu0 0.0
    %1883 = vmatpush1.msra.mxu0 %v1835
    %1884 = vmatprep.subr.mxu0 0.0
    %1885 = vmatpush1.msra.mxu0 %v1834
    %1886 = vmatprep.subr.mxu0 0.0
    %1887 = vmatpush1.msra.mxu0 %v1833
    %1888 = vmatprep.subr.mxu0 0.0
    %1889 = vmatpush2.msra.mxu0 0.0
    %1890 = vmatprep.subr.mxu0 0.0
    %1891 = vmatpush2.msra.mxu0 0.0
    %1892 = vmatprep.subr.mxu0 0.0
    %1893 = vmatpush2.msra.mxu0 0.0
    %1894 = vmatprep.subr.mxu0 0.0
    %1895 = vmatpush2.msra.mxu0 0.0
    %1896 = vmatprep.subr.mxu0 0.0
    %1897 = vmatpush2.msra.mxu0 0.0
    %1898 = vmatprep.subr.mxu0 0.0
    %1899 = vmatpush2.msra.mxu0 0.0
    %1900 = vmatprep.subr.mxu0 0.0
    %1901 = vmatpush2.msra.mxu0 0.0
    %1902 = vmatprep.subr.mxu0 0.0
    %1903 = vmatpush2.msra.mxu0 0.0
    %1904 = vmatprep.subr.mxu0 0.0
    %1905 = vmatpush2.msra.mxu0 0.0
    %1906 = vmatprep.subr.mxu0 0.0
    %1907 = vmatpush2.msra.mxu0 0.0
    %1908 = vmatprep.subr.mxu0 0.0
    %1909 = vmatpush2.msra.mxu0 0.0
    %1910 = vmatprep.subr.mxu0 0.0
    %1911 = vmatpush2.msra.mxu0 0.0
    %1912 = vmatprep.subr.mxu0 0.0
    %1913 = vmatpush2.msra.mxu0 0.0
    %1914 = vmatprep.subr.mxu0 0.0
    %1915 = vmatpush2.msra.mxu0 0.0
    %1916 = vmatprep.subr.mxu0 0.0
    %1917 = vmatpush2.msra.mxu0 0.0
    %1918 = vmatprep.subr.mxu0 0.0
    %1919 = vmatpush2.msra.mxu0 0.0
    %1920 = vmatprep.mubr.f32.mxu0 0.0
    %1921 = vmatmul.mubr.f32.gmra.mxu0 %v1848
    %v1922 = vpop.f32.mrf.mxu0
    %v1923 = vadd.f32 0.0, %v1922
    %v1924 = vpop.f32.mrf.mxu0
    %1925 = vmatprep.mubr.f32.mxu0 0.0
    %1926 = vmatmul.mubr.f32.gmra.mxu0 %v1850
    %v1927 = vpop.f32.mrf.mxu0
    %v1928 = vpop.f32.mrf.mxu0
    %1929 = vmatprep.mubr.f32.mxu0 0.0
    %1930 = vmatmul.mubr.f32.gmra.mxu0 %v1852
    %v1931 = vpop.f32.mrf.mxu0
    %v1932 = vpop.f32.mrf.mxu0
    %1933 = vmatprep.mubr.f32.mxu0 0.0
    %1934 = vmatmul.mubr.f32.gmra.mxu0 %v1854
    %v1935 = vpop.f32.mrf.mxu0
    %v1936 = vadd.f32 0.0, %v1935
    %v1937 = vpop.f32.mrf.mxu0
    %1938 = vdwg.mxu0
    %v1939 = vadd.f32 %v1831, %v1923
    %v1940 = vadd.f32 %v1832, %v1936
    %v1941 = vld [vmem:[%s12 + $0x100] sm:$0xff]
    %v1942 = vld [vmem:[%s12 + $0x108] sm:$0xff]
    %v1943 = vld [vmem:[%s12 + $0x110] sm:$0xff]
    %v1944 = vld [vmem:[%s12 + $0x118] sm:$0xff]
    %v1945 = vld [vmem:[%s12 + $0x120] sm:$0xff]
    %v1946 = vld [vmem:[%s12 + $0x128] sm:$0xff]
    %v1947 = vld [vmem:[%s12 + $0x130] sm:$0xff]
    %v1948 = vld [vmem:[%s12 + $0x138] sm:$0xff]
    %v1949 = vrot.slane %v1510, 6
    %v1950 = vrot.slane %v1511, 6
    %v1951 = vsel %vm674, %v1949, %v1950
    %v1952 = vrot.slane %v1512, 6
    %v1953 = vsel %vm674, %v1950, %v1952
    %v1954 = vrot.slane %v1513, 6
    %v1955 = vsel %vm674, %v1952, %v1954
    %v1956 = vsel %vm1435, %v1951, 0
    %v1958 = vsel %vm1435, %v1953, 0
    %v1960 = vsel %vm1435, %v1955, 0
    %v1962 = vsel %vm1435, %v1954, 0
    %1964 = vmatprep.subr.mxu0 0.0
    %1965 = vmatpush1.msra.mxu0 0.0
    %1966 = vmatprep.subr.mxu0 0.0
    %1967 = vmatpush1.msra.mxu0 0.0
    %1968 = vmatprep.subr.mxu0 0.0
    %1969 = vmatpush1.msra.mxu0 0.0
    %1970 = vmatprep.subr.mxu0 0.0
    %1971 = vmatpush1.msra.mxu0 0.0
    %1972 = vmatprep.subr.mxu0 0.0
    %1973 = vmatpush1.msra.mxu0 0.0
    %1974 = vmatprep.subr.mxu0 0.0
    %1975 = vmatpush1.msra.mxu0 0.0
    %1976 = vmatprep.subr.mxu0 0.0
    %1977 = vmatpush1.msra.mxu0 0.0
    %1978 = vmatprep.subr.mxu0 0.0
    %1979 = vmatpush1.msra.mxu0 0.0
    %1980 = vmatprep.subr.mxu0 0.0
    %1981 = vmatpush1.msra.mxu0 %v1948
    %1982 = vmatprep.subr.mxu0 0.0
    %1983 = vmatpush1.msra.mxu0 %v1947
    %1984 = vmatprep.subr.mxu0 0.0
    %1985 = vmatpush1.msra.mxu0 %v1946
    %1986 = vmatprep.subr.mxu0 0.0
    %1987 = vmatpush1.msra.mxu0 %v1945
    %1988 = vmatprep.subr.mxu0 0.0
    %1989 = vmatpush1.msra.mxu0 %v1944
    %1990 = vmatprep.subr.mxu0 0.0
    %1991 = vmatpush1.msra.mxu0 %v1943
    %1992 = vmatprep.subr.mxu0 0.0
    %1993 = vmatpush1.msra.mxu0 %v1942
    %1994 = vmatprep.subr.mxu0 0.0
    %1995 = vmatpush1.msra.mxu0 %v1941
    %1996 = vmatprep.subr.mxu0 0.0
    %1997 = vmatpush2.msra.mxu0 0.0
    %1998 = vmatprep.subr.mxu0 0.0
    %1999 = vmatpush2.msra.mxu0 0.0
    %2000 = vmatprep.subr.mxu0 0.0
    %2001 = vmatpush2.msra.mxu0 0.0
    %2002 = vmatprep.subr.mxu0 0.0
    %2003 = vmatpush2.msra.mxu0 0.0
    %2004 = vmatprep.subr.mxu0 0.0
    %2005 = vmatpush2.msra.mxu0 0.0
    %2006 = vmatprep.subr.mxu0 0.0
    %2007 = vmatpush2.msra.mxu0 0.0
    %2008 = vmatprep.subr.mxu0 0.0
    %2009 = vmatpush2.msra.mxu0 0.0
    %2010 = vmatprep.subr.mxu0 0.0
    %2011 = vmatpush2.msra.mxu0 0.0
    %2012 = vmatprep.subr.mxu0 0.0
    %2013 = vmatpush2.msra.mxu0 0.0
    %2014 = vmatprep.subr.mxu0 0.0
    %2015 = vmatpush2.msra.mxu0 0.0
    %2016 = vmatprep.subr.mxu0 0.0
    %2017 = vmatpush2.msra.mxu0 0.0
    %2018 = vmatprep.subr.mxu0 0.0
    %2019 = vmatpush2.msra.mxu0 0.0
    %2020 = vmatprep.subr.mxu0 0.0
    %2021 = vmatpush2.msra.mxu0 0.0
    %2022 = vmatprep.subr.mxu0 0.0
    %2023 = vmatpush2.msra.mxu0 0.0
    %2024 = vmatprep.subr.mxu0 0.0
    %2025 = vmatpush2.msra.mxu0 0.0
    %2026 = vmatprep.subr.mxu0 0.0
    %2027 = vmatpush2.msra.mxu0 0.0
    %2028 = vmatprep.mubr.f32.mxu0 0.0
    %2029 = vmatmul.mubr.f32.gmra.mxu0 %v1956
    %v2030 = vpop.f32.mrf.mxu0
    %v2031 = vadd.f32 0.0, %v2030
    %v2032 = vpop.f32.mrf.mxu0
    %2033 = vmatprep.mubr.f32.mxu0 0.0
    %2034 = vmatmul.mubr.f32.gmra.mxu0 %v1958
    %v2035 = vpop.f32.mrf.mxu0
    %v2036 = vpop.f32.mrf.mxu0
    %2037 = vmatprep.mubr.f32.mxu0 0.0
    %2038 = vmatmul.mubr.f32.gmra.mxu0 %v1960
    %v2039 = vpop.f32.mrf.mxu0
    %v2040 = vpop.f32.mrf.mxu0
    %2041 = vmatprep.mubr.f32.mxu0 0.0
    %2042 = vmatmul.mubr.f32.gmra.mxu0 %v1962
    %v2043 = vpop.f32.mrf.mxu0
    %v2044 = vadd.f32 0.0, %v2043
    %v2045 = vpop.f32.mrf.mxu0
    %2046 = vdwg.mxu0
    %v2047 = vadd.f32 %v1939, %v2031
    %v2048 = vadd.f32 %v1940, %v2044
    %v2049 = vld [vmem:[%s12 + $0x140] sm:$0xff]
    %v2050 = vld [vmem:[%s12 + $0x148] sm:$0xff]
    %v2051 = vld [vmem:[%s12 + $0x150] sm:$0xff]
    %v2052 = vld [vmem:[%s12 + $0x158] sm:$0xff]
    %v2053 = vld [vmem:[%s12 + $0x160] sm:$0xff]
    %v2054 = vld [vmem:[%s12 + $0x168] sm:$0xff]
    %v2055 = vld [vmem:[%s12 + $0x170] sm:$0xff]
    %v2056 = vld [vmem:[%s12 + $0x178] sm:$0xff]
    %vm2058 = vcmask 1040384
    %v2059 = vrot.slane %v1510, 7
    %v2060 = vrot.slane %v1511, 7
    %v2061 = vsel %vm2058, %v2059, %v2060
    %v2062 = vrot.slane %v1512, 7
    %v2063 = vsel %vm2058, %v2060, %v2062
    %v2064 = vrot.slane %v1513, 7
    %v2065 = vsel %vm2058, %v2062, %v2064
    %v2066 = vrot.slane %v1514, 7
    %v2067 = vsel %vm2058, %v2064, %v2066
    %v2068 = vsel %vm1435, %v2061, 0
    %v2070 = vsel %vm1435, %v2063, 0
    %v2072 = vsel %vm1435, %v2065, 0
    %v2074 = vsel %vm1435, %v2067, 0
    %2076 = vmatprep.subr.mxu0 0.0
    %2077 = vmatpush1.msra.mxu0 0.0
    %2078 = vmatprep.subr.mxu0 0.0
    %2079 = vmatpush1.msra.mxu0 0.0
    %2080 = vmatprep.subr.mxu0 0.0
    %2081 = vmatpush1.msra.mxu0 0.0
    %2082 = vmatprep.subr.mxu0 0.0
    %2083 = vmatpush1.msra.mxu0 0.0
    %2084 = vmatprep.subr.mxu0 0.0
    %2085 = vmatpush1.msra.mxu0 0.0
    %2086 = vmatprep.subr.mxu0 0.0
    %2087 = vmatpush1.msra.mxu0 0.0
    %2088 = vmatprep.subr.mxu0 0.0
    %2089 = vmatpush1.msra.mxu0 0.0
    %2090 = vmatprep.subr.mxu0 0.0
    %2091 = vmatpush1.msra.mxu0 0.0
    %2092 = vmatprep.subr.mxu0 0.0
    %2093 = vmatpush1.msra.mxu0 %v2056
    %2094 = vmatprep.subr.mxu0 0.0
    %2095 = vmatpush1.msra.mxu0 %v2055
    %2096 = vmatprep.subr.mxu0 0.0
    %2097 = vmatpush1.msra.mxu0 %v2054
    %2098 = vmatprep.subr.mxu0 0.0
    %2099 = vmatpush1.msra.mxu0 %v2053
    %2100 = vmatprep.subr.mxu0 0.0
    %2101 = vmatpush1.msra.mxu0 %v2052
    %2102 = vmatprep.subr.mxu0 0.0
    %2103 = vmatpush1.msra.mxu0 %v2051
    %2104 = vmatprep.subr.mxu0 0.0
    %2105 = vmatpush1.msra.mxu0 %v2050
    %2106 = vmatprep.subr.mxu0 0.0
    %2107 = vmatpush1.msra.mxu0 %v2049
    %2108 = vmatprep.subr.mxu0 0.0
    %2109 = vmatpush2.msra.mxu0 0.0
    %2110 = vmatprep.subr.mxu0 0.0
    %2111 = vmatpush2.msra.mxu0 0.0
    %2112 = vmatprep.subr.mxu0 0.0
    %2113 = vmatpush2.msra.mxu0 0.0
    %2114 = vmatprep.subr.mxu0 0.0
    %2115 = vmatpush2.msra.mxu0 0.0
    %2116 = vmatprep.subr.mxu0 0.0
    %2117 = vmatpush2.msra.mxu0 0.0
    %2118 = vmatprep.subr.mxu0 0.0
    %2119 = vmatpush2.msra.mxu0 0.0
    %2120 = vmatprep.subr.mxu0 0.0
    %2121 = vmatpush2.msra.mxu0 0.0
    %2122 = vmatprep.subr.mxu0 0.0
    %2123 = vmatpush2.msra.mxu0 0.0
    %2124 = vmatprep.subr.mxu0 0.0
    %2125 = vmatpush2.msra.mxu0 0.0
    %2126 = vmatprep.subr.mxu0 0.0
    %2127 = vmatpush2.msra.mxu0 0.0
    %2128 = vmatprep.subr.mxu0 0.0
    %2129 = vmatpush2.msra.mxu0 0.0
    %2130 = vmatprep.subr.mxu0 0.0
    %2131 = vmatpush2.msra.mxu0 0.0
    %2132 = vmatprep.subr.mxu0 0.0
    %2133 = vmatpush2.msra.mxu0 0.0
    %2134 = vmatprep.subr.mxu0 0.0
    %2135 = vmatpush2.msra.mxu0 0.0
    %2136 = vmatprep.subr.mxu0 0.0
    %2137 = vmatpush2.msra.mxu0 0.0
    %2138 = vmatprep.subr.mxu0 0.0
    %2139 = vmatpush2.msra.mxu0 0.0
    %2140 = vmatprep.mubr.f32.mxu0 0.0
    %2141 = vmatmul.mubr.f32.gmra.mxu0 %v2068
    %v2142 = vpop.f32.mrf.mxu0
    %v2143 = vadd.f32 0.0, %v2142
    %v2144 = vpop.f32.mrf.mxu0
    %2145 = vmatprep.mubr.f32.mxu0 0.0
    %2146 = vmatmul.mubr.f32.gmra.mxu0 %v2070
    %v2147 = vpop.f32.mrf.mxu0
    %v2148 = vpop.f32.mrf.mxu0
    %2149 = vmatprep.mubr.f32.mxu0 0.0
    %2150 = vmatmul.mubr.f32.gmra.mxu0 %v2072
    %v2151 = vpop.f32.mrf.mxu0
    %v2152 = vpop.f32.mrf.mxu0
    %2153 = vmatprep.mubr.f32.mxu0 0.0
    %2154 = vmatmul.mubr.f32.gmra.mxu0 %v2074
    %v2155 = vpop.f32.mrf.mxu0
    %v2156 = vadd.f32 0.0, %v2155
    %v2157 = vpop.f32.mrf.mxu0
    %2158 = vdwg.mxu0
    %v2159 = vadd.f32 %v2047, %v2143
    %v2160 = vadd.f32 %v2048, %v2156
    %v2161 = vld [vmem:[%s12 + $0x180] sm:$0xff]
    %v2162 = vld [vmem:[%s12 + $0x188] sm:$0xff]
    %v2163 = vld [vmem:[%s12 + $0x190] sm:$0xff]
    %v2164 = vld [vmem:[%s12 + $0x198] sm:$0xff]
    %v2165 = vld [vmem:[%s12 + $0x1a0] sm:$0xff]
    %v2166 = vld [vmem:[%s12 + $0x1a8] sm:$0xff]
    %v2167 = vld [vmem:[%s12 + $0x1b0] sm:$0xff]
    %v2168 = vld [vmem:[%s12 + $0x1b8] sm:$0xff]
    %v2169 = vrot.slane %v1514, 2
    %v2170 = vsel %vm1732, %v1738, %v2169
    %v2171 = vsel %vm1435, %v2170, 0
    %v2173 = vsel %vm1435, %v2169, 0
    %2175 = vmatprep.subr.mxu0 0.0
    %2176 = vmatpush1.msra.mxu0 0.0
    %2177 = vmatprep.subr.mxu0 0.0
    %2178 = vmatpush1.msra.mxu0 0.0
    %2179 = vmatprep.subr.mxu0 0.0
    %2180 = vmatpush1.msra.mxu0 0.0
    %2181 = vmatprep.subr.mxu0 0.0
    %2182 = vmatpush1.msra.mxu0 0.0
    %2183 = vmatprep.subr.mxu0 0.0
    %2184 = vmatpush1.msra.mxu0 0.0
    %2185 = vmatprep.subr.mxu0 0.0
    %2186 = vmatpush1.msra.mxu0 0.0
    %2187 = vmatprep.subr.mxu0 0.0
    %2188 = vmatpush1.msra.mxu0 0.0
    %2189 = vmatprep.subr.mxu0 0.0
    %2190 = vmatpush1.msra.mxu0 0.0
    %2191 = vmatprep.subr.mxu0 0.0
    %2192 = vmatpush1.msra.mxu0 %v2168
    %2193 = vmatprep.subr.mxu0 0.0
    %2194 = vmatpush1.msra.mxu0 %v2167
    %2195 = vmatprep.subr.mxu0 0.0
    %2196 = vmatpush1.msra.mxu0 %v2166
    %2197 = vmatprep.subr.mxu0 0.0
    %2198 = vmatpush1.msra.mxu0 %v2165
    %2199 = vmatprep.subr.mxu0 0.0
    %2200 = vmatpush1.msra.mxu0 %v2164
    %2201 = vmatprep.subr.mxu0 0.0
    %2202 = vmatpush1.msra.mxu0 %v2163
    %2203 = vmatprep.subr.mxu0 0.0
    %2204 = vmatpush1.msra.mxu0 %v2162
    %2205 = vmatprep.subr.mxu0 0.0
    %2206 = vmatpush1.msra.mxu0 %v2161
    %2207 = vmatprep.subr.mxu0 0.0
    %2208 = vmatpush2.msra.mxu0 0.0
    %2209 = vmatprep.subr.mxu0 0.0
    %2210 = vmatpush2.msra.mxu0 0.0
    %2211 = vmatprep.subr.mxu0 0.0
    %2212 = vmatpush2.msra.mxu0 0.0
    %2213 = vmatprep.subr.mxu0 0.0
    %2214 = vmatpush2.msra.mxu0 0.0
    %2215 = vmatprep.subr.mxu0 0.0
    %2216 = vmatpush2.msra.mxu0 0.0
    %2217 = vmatprep.subr.mxu0 0.0
    %2218 = vmatpush2.msra.mxu0 0.0
    %2219 = vmatprep.subr.mxu0 0.0
    %2220 = vmatpush2.msra.mxu0 0.0
    %2221 = vmatprep.subr.mxu0 0.0
    %2222 = vmatpush2.msra.mxu0 0.0
    %2223 = vmatprep.subr.mxu0 0.0
    %2224 = vmatpush2.msra.mxu0 0.0
    %2225 = vmatprep.subr.mxu0 0.0
    %2226 = vmatpush2.msra.mxu0 0.0
    %2227 = vmatprep.subr.mxu0 0.0
    %2228 = vmatpush2.msra.mxu0 0.0
    %2229 = vmatprep.subr.mxu0 0.0
    %2230 = vmatpush2.msra.mxu0 0.0
    %2231 = vmatprep.subr.mxu0 0.0
    %2232 = vmatpush2.msra.mxu0 0.0
    %2233 = vmatprep.subr.mxu0 0.0
    %2234 = vmatpush2.msra.mxu0 0.0
    %2235 = vmatprep.subr.mxu0 0.0
    %2236 = vmatpush2.msra.mxu0 0.0
    %2237 = vmatprep.subr.mxu0 0.0
    %2238 = vmatpush2.msra.mxu0 0.0
    %2239 = vmatprep.mubr.f32.mxu0 0.0
    %2240 = vmatmul.mubr.f32.gmra.mxu0 %v1742
    %v2241 = vpop.f32.mrf.mxu0
    %v2242 = vadd.f32 0.0, %v2241
    %v2243 = vpop.f32.mrf.mxu0
    %2244 = vmatprep.mubr.f32.mxu0 0.0
    %2245 = vmatmul.mubr.f32.gmra.mxu0 %v1744
    %v2246 = vpop.f32.mrf.mxu0
    %v2247 = vpop.f32.mrf.mxu0
    %2248 = vmatprep.mubr.f32.mxu0 0.0
    %2249 = vmatmul.mubr.f32.gmra.mxu0 %v2171
    %v2250 = vpop.f32.mrf.mxu0
    %v2251 = vpop.f32.mrf.mxu0
    %2252 = vmatprep.mubr.f32.mxu0 0.0
    %2253 = vmatmul.mubr.f32.gmra.mxu0 %v2173
    %v2254 = vpop.f32.mrf.mxu0
    %v2255 = vadd.f32 0.0, %v2254
    %v2256 = vpop.f32.mrf.mxu0
    %2257 = vdwg.mxu0
    %v2258 = vadd.f32 %v2159, %v2242
    %v2259 = vadd.f32 %v2160, %v2255
    %v2260 = vld [vmem:[%s12 + $0x1c0] sm:$0xff]
    %v2261 = vld [vmem:[%s12 + $0x1c8] sm:$0xff]
    %v2262 = vld [vmem:[%s12 + $0x1d0] sm:$0xff]
    %v2263 = vld [vmem:[%s12 + $0x1d8] sm:$0xff]
    %v2264 = vld [vmem:[%s12 + $0x1e0] sm:$0xff]
    %v2265 = vld [vmem:[%s12 + $0x1e8] sm:$0xff]
    %v2266 = vld [vmem:[%s12 + $0x1f0] sm:$0xff]
    %v2267 = vld [vmem:[%s12 + $0x1f8] sm:$0xff]
    %vm2268 = vcmask 1044480
    %v2269 = vrot.slane %v1511, 3
    %v2270 = vrot.slane %v1512, 3
    %v2271 = vsel %vm2268, %v2269, %v2270
    %v2272 = vrot.slane %v1513, 3
    %v2273 = vsel %vm2268, %v2270, %v2272
    %v2274 = vrot.slane %v1514, 3
    %v2275 = vsel %vm2268, %v2272, %v2274
    %v2276 = vsel %vm1435, %v2271, 0
    %v2278 = vsel %vm1435, %v2273, 0
    %v2280 = vsel %vm1435, %v2275, 0
    %v2282 = vsel %vm1435, %v2274, 0
    %2284 = vmatprep.subr.mxu0 0.0
    %2285 = vmatpush1.msra.mxu0 0.0
    %2286 = vmatprep.subr.mxu0 0.0
    %2287 = vmatpush1.msra.mxu0 0.0
    %2288 = vmatprep.subr.mxu0 0.0
    %2289 = vmatpush1.msra.mxu0 0.0
    %2290 = vmatprep.subr.mxu0 0.0
    %2291 = vmatpush1.msra.mxu0 0.0
    %2292 = vmatprep.subr.mxu0 0.0
    %2293 = vmatpush1.msra.mxu0 0.0
    %2294 = vmatprep.subr.mxu0 0.0
    %2295 = vmatpush1.msra.mxu0 0.0
    %2296 = vmatprep.subr.mxu0 0.0
    %2297 = vmatpush1.msra.mxu0 0.0
    %2298 = vmatprep.subr.mxu0 0.0
    %2299 = vmatpush1.msra.mxu0 0.0
    %2300 = vmatprep.subr.mxu0 0.0
    %2301 = vmatpush1.msra.mxu0 %v2267
    %2302 = vmatprep.subr.mxu0 0.0
    %2303 = vmatpush1.msra.mxu0 %v2266
    %2304 = vmatprep.subr.mxu0 0.0
    %2305 = vmatpush1.msra.mxu0 %v2265
    %2306 = vmatprep.subr.mxu0 0.0
    %2307 = vmatpush1.msra.mxu0 %v2264
    %2308 = vmatprep.subr.mxu0 0.0
    %2309 = vmatpush1.msra.mxu0 %v2263
    %2310 = vmatprep.subr.mxu0 0.0
    %2311 = vmatpush1.msra.mxu0 %v2262
    %2312 = vmatprep.subr.mxu0 0.0
    %2313 = vmatpush1.msra.mxu0 %v2261
    %2314 = vmatprep.subr.mxu0 0.0
    %2315 = vmatpush1.msra.mxu0 %v2260
    %2316 = vmatprep.subr.mxu0 0.0
    %2317 = vmatpush2.msra.mxu0 0.0
    %2318 = vmatprep.subr.mxu0 0.0
    %2319 = vmatpush2.msra.mxu0 0.0
    %2320 = vmatprep.subr.mxu0 0.0
    %2321 = vmatpush2.msra.mxu0 0.0
    %2322 = vmatprep.subr.mxu0 0.0
    %2323 = vmatpush2.msra.mxu0 0.0
    %2324 = vmatprep.subr.mxu0 0.0
    %2325 = vmatpush2.msra.mxu0 0.0
    %2326 = vmatprep.subr.mxu0 0.0
    %2327 = vmatpush2.msra.mxu0 0.0
    %2328 = vmatprep.subr.mxu0 0.0
    %2329 = vmatpush2.msra.mxu0 0.0
    %2330 = vmatprep.subr.mxu0 0.0
    %2331 = vmatpush2.msra.mxu0 0.0
    %2332 = vmatprep.subr.mxu0 0.0
    %2333 = vmatpush2.msra.mxu0 0.0
    %2334 = vmatprep.subr.mxu0 0.0
    %2335 = vmatpush2.msra.mxu0 0.0
    %2336 = vmatprep.subr.mxu0 0.0
    %2337 = vmatpush2.msra.mxu0 0.0
    %2338 = vmatprep.subr.mxu0 0.0
    %2339 = vmatpush2.msra.mxu0 0.0
    %2340 = vmatprep.subr.mxu0 0.0
    %2341 = vmatpush2.msra.mxu0 0.0
    %2342 = vmatprep.subr.mxu0 0.0
    %2343 = vmatpush2.msra.mxu0 0.0
    %2344 = vmatprep.subr.mxu0 0.0
    %2345 = vmatpush2.msra.mxu0 0.0
    %2346 = vmatprep.subr.mxu0 0.0
    %2347 = vmatpush2.msra.mxu0 0.0
    %2348 = vmatprep.mubr.f32.mxu0 0.0
    %2349 = vmatmul.mubr.f32.gmra.mxu0 %v2276
    %v2350 = vpop.f32.mrf.mxu0
    %v2351 = vadd.f32 0.0, %v2350
    %v2352 = vpop.f32.mrf.mxu0
    %2353 = vmatprep.mubr.f32.mxu0 0.0
    %2354 = vmatmul.mubr.f32.gmra.mxu0 %v2278
    %v2355 = vpop.f32.mrf.mxu0
    %v2356 = vpop.f32.mrf.mxu0
    %2357 = vmatprep.mubr.f32.mxu0 0.0
    %2358 = vmatmul.mubr.f32.gmra.mxu0 %v2280
    %v2359 = vpop.f32.mrf.mxu0
    %v2360 = vpop.f32.mrf.mxu0
    %2361 = vmatprep.mubr.f32.mxu0 0.0
    %2362 = vmatmul.mubr.f32.gmra.mxu0 %v2282
    %v2363 = vpop.f32.mrf.mxu0
    %v2364 = vadd.f32 0.0, %v2363
    %v2365 = vpop.f32.mrf.mxu0
    %2366 = vdwg.mxu0
    %v2367 = vadd.f32 %v2258, %v2351
    %v2368 = vadd.f32 %v2259, %v2364
    %v2369 = vld [vmem:[%s12 + $0x200] sm:$0xff]
    %v2370 = vld [vmem:[%s12 + $0x208] sm:$0xff]
    %v2371 = vld [vmem:[%s12 + $0x210] sm:$0xff]
    %v2372 = vld [vmem:[%s12 + $0x218] sm:$0xff]
    %v2373 = vld [vmem:[%s12 + $0x220] sm:$0xff]
    %v2374 = vld [vmem:[%s12 + $0x228] sm:$0xff]
    %v2375 = vld [vmem:[%s12 + $0x230] sm:$0xff]
    %v2376 = vld [vmem:[%s12 + $0x238] sm:$0xff]
    %vm2377 = vcmask 1043456
    %v2378 = vrot.slane %v1511, 4
    %v2379 = vrot.slane %v1512, 4
    %v2380 = vsel %vm2377, %v2378, %v2379
    %v2381 = vrot.slane %v1513, 4
    %v2382 = vsel %vm2377, %v2379, %v2381
    %v2383 = vrot.slane %v1514, 4
    %v2384 = vsel %vm2377, %v2381, %v2383
    %v2385 = vsel %vm1435, %v2380, 0
    %v2387 = vsel %vm1435, %v2382, 0
    %v2389 = vsel %vm1435, %v2384, 0
    %v2391 = vsel %vm1435, %v2383, 0
    %2393 = vmatprep.subr.mxu0 0.0
    %2394 = vmatpush1.msra.mxu0 0.0
    %2395 = vmatprep.subr.mxu0 0.0
    %2396 = vmatpush1.msra.mxu0 0.0
    %2397 = vmatprep.subr.mxu0 0.0
    %2398 = vmatpush1.msra.mxu0 0.0
    %2399 = vmatprep.subr.mxu0 0.0
    %2400 = vmatpush1.msra.mxu0 0.0
    %2401 = vmatprep.subr.mxu0 0.0
    %2402 = vmatpush1.msra.mxu0 0.0
    %2403 = vmatprep.subr.mxu0 0.0
    %2404 = vmatpush1.msra.mxu0 0.0
    %2405 = vmatprep.subr.mxu0 0.0
    %2406 = vmatpush1.msra.mxu0 0.0
    %2407 = vmatprep.subr.mxu0 0.0
    %2408 = vmatpush1.msra.mxu0 0.0
    %2409 = vmatprep.subr.mxu0 0.0
    %2410 = vmatpush1.msra.mxu0 %v2376
    %2411 = vmatprep.subr.mxu0 0.0
    %2412 = vmatpush1.msra.mxu0 %v2375
    %2413 = vmatprep.subr.mxu0 0.0
    %2414 = vmatpush1.msra.mxu0 %v2374
    %2415 = vmatprep.subr.mxu0 0.0
    %2416 = vmatpush1.msra.mxu0 %v2373
    %2417 = vmatprep.subr.mxu0 0.0
    %2418 = vmatpush1.msra.mxu0 %v2372
    %2419 = vmatprep.subr.mxu0 0.0
    %2420 = vmatpush1.msra.mxu0 %v2371
    %2421 = vmatprep.subr.mxu0 0.0
    %2422 = vmatpush1.msra.mxu0 %v2370
    %2423 = vmatprep.subr.mxu0 0.0
    %2424 = vmatpush1.msra.mxu0 %v2369
    %2425 = vmatprep.subr.mxu0 0.0
    %2426 = vmatpush2.msra.mxu0 0.0
    %2427 = vmatprep.subr.mxu0 0.0
    %2428 = vmatpush2.msra.mxu0 0.0
    %2429 = vmatprep.subr.mxu0 0.0
    %2430 = vmatpush2.msra.mxu0 0.0
    %2431 = vmatprep.subr.mxu0 0.0
    %2432 = vmatpush2.msra.mxu0 0.0
    %2433 = vmatprep.subr.mxu0 0.0
    %2434 = vmatpush2.msra.mxu0 0.0
    %2435 = vmatprep.subr.mxu0 0.0
    %2436 = vmatpush2.msra.mxu0 0.0
    %2437 = vmatprep.subr.mxu0 0.0
    %2438 = vmatpush2.msra.mxu0 0.0
    %2439 = vmatprep.subr.mxu0 0.0
    %2440 = vmatpush2.msra.mxu0 0.0
    %2441 = vmatprep.subr.mxu0 0.0
    %2442 = vmatpush2.msra.mxu0 0.0
    %2443 = vmatprep.subr.mxu0 0.0
    %2444 = vmatpush2.msra.mxu0 0.0
    %2445 = vmatprep.subr.mxu0 0.0
    %2446 = vmatpush2.msra.mxu0 0.0
    %2447 = vmatprep.subr.mxu0 0.0
    %2448 = vmatpush2.msra.mxu0 0.0
    %2449 = vmatprep.subr.mxu0 0.0
    %2450 = vmatpush2.msra.mxu0 0.0
    %2451 = vmatprep.subr.mxu0 0.0
    %2452 = vmatpush2.msra.mxu0 0.0
    %2453 = vmatprep.subr.mxu0 0.0
    %2454 = vmatpush2.msra.mxu0 0.0
    %2455 = vmatprep.subr.mxu0 0.0
    %2456 = vmatpush2.msra.mxu0 0.0
    %2457 = vmatprep.mubr.f32.mxu0 0.0
    %2458 = vmatmul.mubr.f32.gmra.mxu0 %v2385
    %v2459 = vpop.f32.mrf.mxu0
    %v2460 = vadd.f32 0.0, %v2459
    %v2461 = vpop.f32.mrf.mxu0
    %2462 = vmatprep.mubr.f32.mxu0 0.0
    %2463 = vmatmul.mubr.f32.gmra.mxu0 %v2387
    %v2464 = vpop.f32.mrf.mxu0
    %v2465 = vpop.f32.mrf.mxu0
    %2466 = vmatprep.mubr.f32.mxu0 0.0
    %2467 = vmatmul.mubr.f32.gmra.mxu0 %v2389
    %v2468 = vpop.f32.mrf.mxu0
    %v2469 = vpop.f32.mrf.mxu0
    %2470 = vmatprep.mubr.f32.mxu0 0.0
    %2471 = vmatmul.mubr.f32.gmra.mxu0 %v2391
    %v2472 = vpop.f32.mrf.mxu0
    %v2473 = vadd.f32 0.0, %v2472
    %v2474 = vpop.f32.mrf.mxu0
    %2475 = vdwg.mxu0
    %v2476 = vadd.f32 %v2367, %v2460
    %v2477 = vadd.f32 %v2368, %v2473
    %v2478 = vsel %vm2058, %v2476, %v2477
    %v2479 = vld [vmem:[%s13] sm:$0x1]
    %v2481 = vlaneseq
    %v2482 = vshrl.u32 %v2481, 7
    %v2483 = vsub.s32 0, %v2482
    %v2484 = vrot.slane %v2479, %v2483
    %v2486 = vadd.f32 %v2478, %v2484
    %v2487 = vld [vmem:[%s14] sm:$0xff]
    %v2488 = vld [vmem:[%s14 + $0x8] sm:$0xff]
    %v2489 = vld [vmem:[%s14 + $0x10] sm:$0xff]
    %v2490 = vld [vmem:[%s14 + $0x18] sm:$0xff]
    %v2491 = vld [vmem:[%s14 + $0x20] sm:$0xff]
    %v2492 = vld [vmem:[%s14 + $0x28] sm:$0xff]
    %v2493 = vld [vmem:[%s14 + $0x30] sm:$0xff]
    %v2494 = vld [vmem:[%s14 + $0x38] sm:$0xff]
    %v2495 = vld [vmem:[%s14 + $0x40] sm:$0xff]
    %v2496 = vld [vmem:[%s14 + $0x48] sm:$0xff]
    %v2497 = vld [vmem:[%s14 + $0x50] sm:$0xff]
    %v2498 = vld [vmem:[%s14 + $0x58] sm:$0xff]
    %v2499 = vld [vmem:[%s14 + $0x60] sm:$0xff]
    %v2500 = vld [vmem:[%s14 + $0x68] sm:$0xff]
    %v2501 = vld [vmem:[%s14 + $0x70] sm:$0xff]
    %v2502 = vld [vmem:[%s14 + $0x78] sm:$0xff]
    %v2503 = vld [vmem:[%s14 + $0x80] sm:$0xff]
    %v2504 = vld [vmem:[%s14 + $0x88] sm:$0xff]
    %v2505 = vld [vmem:[%s14 + $0x90] sm:$0xff]
    %v2506 = vld [vmem:[%s14 + $0x98] sm:$0xff]
    %v2507 = vld [vmem:[%s14 + $0xa0] sm:$0xff]
    %v2508 = vld [vmem:[%s14 + $0xa8] sm:$0xff]
    %v2509 = vld [vmem:[%s14 + $0xb0] sm:$0xff]
    %v2510 = vld [vmem:[%s14 + $0xb8] sm:$0xff]
    %v2511 = vld [vmem:[%s14 + $0xc0] sm:$0xff]
    %v2512 = vld [vmem:[%s14 + $0xc8] sm:$0xff]
    %v2513 = vld [vmem:[%s14 + $0xd0] sm:$0xff]
    %v2514 = vld [vmem:[%s14 + $0xd8] sm:$0xff]
    %v2515 = vld [vmem:[%s14 + $0xe0] sm:$0xff]
    %v2516 = vld [vmem:[%s14 + $0xe8] sm:$0xff]
    %v2517 = vld [vmem:[%s14 + $0xf0] sm:$0xff]
    %v2518 = vld [vmem:[%s14 + $0xf8] sm:$0xff]
    %v2519 = vld [vmem:[%s15] sm:$0x3]
    %v2521 = vlaneseq
    %v2522 = vshrl.u32 %v2521, 7
    %v2523 = vsub.s32 0, %v2522
    %v2524 = vrot.slane %v2519, %v2523
    %v2525 = vlaneseq
    %v2526 = vshrl.u32 %v2525, 7
    %v2527 = vsub.s32 1, %v2526
    %v2528 = vrot.slane %v2519, %v2527
    %2531 = vmatprep.subr.mxu0 %v2518
    %2532 = vmatpush1.msra.mxu0 %v2517
    %2533 = vmatprep.subr.mxu0 %v2516
    %2534 = vmatpush1.msra.mxu0 %v2515
    %2535 = vmatprep.subr.mxu0 %v2514
    %2536 = vmatpush1.msra.mxu0 %v2513
    %2537 = vmatprep.subr.mxu0 %v2512
    %2538 = vmatpush1.msra.mxu0 %v2511
    %2539 = vmatprep.subr.mxu0 %v2510
    %2540 = vmatpush1.msra.mxu0 %v2509
    %2541 = vmatprep.subr.mxu0 %v2508
    %2542 = vmatpush1.msra.mxu0 %v2507
    %2543 = vmatprep.subr.mxu0 %v2506
    %2544 = vmatpush1.msra.mxu0 %v2505
    %2545 = vmatprep.subr.mxu0 %v2504
    %2546 = vmatpush1.msra.mxu0 %v2503
    %2547 = vmatprep.subr.mxu0 %v2502
    %2548 = vmatpush1.msra.mxu0 %v2501
    %2549 = vmatprep.subr.mxu0 %v2500
    %2550 = vmatpush1.msra.mxu0 %v2499
    %2551 = vmatprep.subr.mxu0 %v2498
    %2552 = vmatpush1.msra.mxu0 %v2497
    %2553 = vmatprep.subr.mxu0 %v2496
    %2554 = vmatpush1.msra.mxu0 %v2495
    %2555 = vmatprep.subr.mxu0 %v2494
    %2556 = vmatpush1.msra.mxu0 %v2493
    %2557 = vmatprep.subr.mxu0 %v2492
    %2558 = vmatpush1.msra.mxu0 %v2491
    %2559 = vmatprep.subr.mxu0 %v2490
    %2560 = vmatpush1.msra.mxu0 %v2489
    %2561 = vmatprep.subr.mxu0 %v2488
    %2562 = vmatpush1.msra.mxu0 %v2487
    %2563 = vmatprep.subr.mxu0 0.0
    %2564 = vmatpush2.msra.mxu0 0.0
    %2565 = vmatprep.subr.mxu0 0.0
    %2566 = vmatpush2.msra.mxu0 0.0
    %2567 = vmatprep.subr.mxu0 0.0
    %2568 = vmatpush2.msra.mxu0 0.0
    %2569 = vmatprep.subr.mxu0 0.0
    %2570 = vmatpush2.msra.mxu0 0.0
    %2571 = vmatprep.subr.mxu0 0.0
    %2572 = vmatpush2.msra.mxu0 0.0
    %2573 = vmatprep.subr.mxu0 0.0
    %2574 = vmatpush2.msra.mxu0 0.0
    %2575 = vmatprep.subr.mxu0 0.0
    %2576 = vmatpush2.msra.mxu0 0.0
    %2577 = vmatprep.subr.mxu0 0.0
    %2578 = vmatpush2.msra.mxu0 0.0
    %2579 = vmatprep.subr.mxu0 0.0
    %2580 = vmatpush2.msra.mxu0 0.0
    %2581 = vmatprep.subr.mxu0 0.0
    %2582 = vmatpush2.msra.mxu0 0.0
    %2583 = vmatprep.subr.mxu0 0.0
    %2584 = vmatpush2.msra.mxu0 0.0
    %2585 = vmatprep.subr.mxu0 0.0
    %2586 = vmatpush2.msra.mxu0 0.0
    %2587 = vmatprep.subr.mxu0 0.0
    %2588 = vmatpush2.msra.mxu0 0.0
    %2589 = vmatprep.subr.mxu0 0.0
    %2590 = vmatpush2.msra.mxu0 0.0
    %2591 = vmatprep.subr.mxu0 0.0
    %2592 = vmatpush2.msra.mxu0 0.0
    %2593 = vmatprep.subr.mxu0 0.0
    %2594 = vmatpush2.msra.mxu0 0.0
    %2595 = vmatprep.mubr.f32.mxu0 0.0
    %2596 = vmatmul.mubr.f32.gmra.mxu0 %v2486
    %v2597 = vpop.f32.mrf.mxu0
    %v2598 = vadd.f32 %v2524, %v2597
    %v2599 = vpop.f32.mrf.mxu0
    %v2600 = vadd.f32 %v2528, %v2599
    %2601 = vdwg.mxu0
    %v2602 = vmax.f32 %v2598, 0.0
    %v2603 = vmax.f32 %v2600, 0.0
    %v2604 = vld [vmem:[%s16] sm:$0xff]
    %v2605 = vld [vmem:[%s16 + $0x8] sm:$0xff]
    %v2606 = vld [vmem:[%s16 + $0x10] sm:$0xff]
    %v2607 = vld [vmem:[%s16 + $0x18] sm:$0xff]
    %v2608 = vld [vmem:[%s16 + $0x20] sm:$0xff]
    %v2609 = vld [vmem:[%s16 + $0x28] sm:$0xff]
    %v2610 = vld [vmem:[%s16 + $0x30] sm:$0xff]
    %v2611 = vld [vmem:[%s16 + $0x38] sm:$0xff]
    %v2612 = vld [vmem:[%s16 + $0x40] sm:$0xff]
    %v2613 = vld [vmem:[%s16 + $0x48] sm:$0xff]
    %v2614 = vld [vmem:[%s16 + $0x50] sm:$0xff]
    %v2615 = vld [vmem:[%s16 + $0x58] sm:$0xff]
    %v2616 = vld [vmem:[%s16 + $0x60] sm:$0xff]
    %v2617 = vld [vmem:[%s16 + $0x68] sm:$0xff]
    %v2618 = vld [vmem:[%s16 + $0x70] sm:$0xff]
    %v2619 = vld [vmem:[%s16 + $0x78] sm:$0xff]
    %v2620 = vld [vmem:[%s17] sm:$0x1]
    %v2622 = vlaneseq
    %v2623 = vshrl.u32 %v2622, 7
    %v2624 = vsub.s32 0, %v2623
    %v2625 = vrot.slane %v2620, %v2624
    %2627 = vmatprep.subr.mxu0 0.0
    %2628 = vmatpush1.msra.mxu0 %v2619
    %2629 = vmatprep.subr.mxu0 0.0
    %2630 = vmatpush1.msra.mxu0 %v2618
    %2631 = vmatprep.subr.mxu0 0.0
    %2632 = vmatpush1.msra.mxu0 %v2617
    %2633 = vmatprep.subr.mxu0 0.0
    %2634 = vmatpush1.msra.mxu0 %v2616
    %2635 = vmatprep.subr.mxu0 0.0
    %2636 = vmatpush1.msra.mxu0 %v2615
    %2637 = vmatprep.subr.mxu0 0.0
    %2638 = vmatpush1.msra.mxu0 %v2614
    %2639 = vmatprep.subr.mxu0 0.0
    %2640 = vmatpush1.msra.mxu0 %v2613
    %2641 = vmatprep.subr.mxu0 0.0
    %2642 = vmatpush1.msra.mxu0 %v2612
    %2643 = vmatprep.subr.mxu0 0.0
    %2644 = vmatpush1.msra.mxu0 %v2611
    %2645 = vmatprep.subr.mxu0 0.0
    %2646 = vmatpush1.msra.mxu0 %v2610
    %2647 = vmatprep.subr.mxu0 0.0
    %2648 = vmatpush1.msra.mxu0 %v2609
    %2649 = vmatprep.subr.mxu0 0.0
    %2650 = vmatpush1.msra.mxu0 %v2608
    %2651 = vmatprep.subr.mxu0 0.0
    %2652 = vmatpush1.msra.mxu0 %v2607
    %2653 = vmatprep.subr.mxu0 0.0
    %2654 = vmatpush1.msra.mxu0 %v2606
    %2655 = vmatprep.subr.mxu0 0.0
    %2656 = vmatpush1.msra.mxu0 %v2605
    %2657 = vmatprep.subr.mxu0 0.0
    %2658 = vmatpush1.msra.mxu0 %v2604
    %2659 = vmatprep.subr.mxu0 0.0
    %2660 = vmatpush2.msra.mxu0 0.0
    %2661 = vmatprep.subr.mxu0 0.0
    %2662 = vmatpush2.msra.mxu0 0.0
    %2663 = vmatprep.subr.mxu0 0.0
    %2664 = vmatpush2.msra.mxu0 0.0
    %2665 = vmatprep.subr.mxu0 0.0
    %2666 = vmatpush2.msra.mxu0 0.0
    %2667 = vmatprep.subr.mxu0 0.0
    %2668 = vmatpush2.msra.mxu0 0.0
    %2669 = vmatprep.subr.mxu0 0.0
    %2670 = vmatpush2.msra.mxu0 0.0
    %2671 = vmatprep.subr.mxu0 0.0
    %2672 = vmatpush2.msra.mxu0 0.0
    %2673 = vmatprep.subr.mxu0 0.0
    %2674 = vmatpush2.msra.mxu0 0.0
    %2675 = vmatprep.subr.mxu0 0.0
    %2676 = vmatpush2.msra.mxu0 0.0
    %2677 = vmatprep.subr.mxu0 0.0
    %2678 = vmatpush2.msra.mxu0 0.0
    %2679 = vmatprep.subr.mxu0 0.0
    %2680 = vmatpush2.msra.mxu0 0.0
    %2681 = vmatprep.subr.mxu0 0.0
    %2682 = vmatpush2.msra.mxu0 0.0
    %2683 = vmatprep.subr.mxu0 0.0
    %2684 = vmatpush2.msra.mxu0 0.0
    %2685 = vmatprep.subr.mxu0 0.0
    %2686 = vmatpush2.msra.mxu0 0.0
    %2687 = vmatprep.subr.mxu0 0.0
    %2688 = vmatpush2.msra.mxu0 0.0
    %2689 = vmatprep.subr.mxu0 0.0
    %2690 = vmatpush2.msra.mxu0 0.0
    %2691 = vmatprep.mubr.f32.mxu0 0.0
    %2692 = vmatmul.mubr.f32.gmra.mxu0 %v2602
    %v2693 = vpop.f32.mrf.mxu0
    %v2694 = vadd.f32 %v2625, %v2693
    %v2695 = vpop.f32.mrf.mxu0
    %2696 = vdwg.mxu0
    %vm2697 = vcmask 9216
    %2698 = vst.msk [vmem:[%s21] sm:$0x3] %vm2697, %v2694
    %v2699 = vld [vmem:[%s18] sm:$0xff]
    %v2700 = vld [vmem:[%s18 + $0x8] sm:$0xff]
    %v2701 = vld [vmem:[%s18 + $0x10] sm:$0xff]
    %v2702 = vld [vmem:[%s18 + $0x18] sm:$0xff]
    %v2703 = vld [vmem:[%s18 + $0x20] sm:$0xff]
    %v2704 = vld [vmem:[%s18 + $0x28] sm:$0xff]
    %v2705 = vld [vmem:[%s18 + $0x30] sm:$0xff]
    %v2706 = vld [vmem:[%s18 + $0x38] sm:$0xff]
    %v2707 = vld [vmem:[%s18 + $0x40] sm:$0xff]
    %v2708 = vld [vmem:[%s18 + $0x48] sm:$0xff]
    %v2709 = vld [vmem:[%s18 + $0x50] sm:$0xff]
    %v2710 = vld [vmem:[%s18 + $0x58] sm:$0xff]
    %v2711 = vld [vmem:[%s18 + $0x60] sm:$0xff]
    %v2712 = vld [vmem:[%s18 + $0x68] sm:$0xff]
    %v2713 = vld [vmem:[%s18 + $0x70] sm:$0xff]
    %v2714 = vld [vmem:[%s18 + $0x78] sm:$0xff]
    %v2715 = vld [vmem:[%s19] sm:$0x1]
    %v2717 = vlaneseq
    %v2718 = vshrl.u32 %v2717, 7
    %v2719 = vsub.s32 0, %v2718
    %v2720 = vrot.slane %v2715, %v2719
    %2722 = vmatprep.subr.mxu0 0.0
    %2723 = vmatpush1.msra.mxu0 %v2714
    %2724 = vmatprep.subr.mxu0 0.0
    %2725 = vmatpush1.msra.mxu0 %v2713
    %2726 = vmatprep.subr.mxu0 0.0
    %2727 = vmatpush1.msra.mxu0 %v2712
    %2728 = vmatprep.subr.mxu0 0.0
    %2729 = vmatpush1.msra.mxu0 %v2711
    %2730 = vmatprep.subr.mxu0 0.0
    %2731 = vmatpush1.msra.mxu0 %v2710
    %2732 = vmatprep.subr.mxu0 0.0
    %2733 = vmatpush1.msra.mxu0 %v2709
    %2734 = vmatprep.subr.mxu0 0.0
    %2735 = vmatpush1.msra.mxu0 %v2708
    %2736 = vmatprep.subr.mxu0 0.0
    %2737 = vmatpush1.msra.mxu0 %v2707
    %2738 = vmatprep.subr.mxu0 0.0
    %2739 = vmatpush1.msra.mxu0 %v2706
    %2740 = vmatprep.subr.mxu0 0.0
    %2741 = vmatpush1.msra.mxu0 %v2705
    %2742 = vmatprep.subr.mxu0 0.0
    %2743 = vmatpush1.msra.mxu0 %v2704
    %2744 = vmatprep.subr.mxu0 0.0
    %2745 = vmatpush1.msra.mxu0 %v2703
    %2746 = vmatprep.subr.mxu0 0.0
    %2747 = vmatpush1.msra.mxu0 %v2702
    %2748 = vmatprep.subr.mxu0 0.0
    %2749 = vmatpush1.msra.mxu0 %v2701
    %2750 = vmatprep.subr.mxu0 0.0
    %2751 = vmatpush1.msra.mxu0 %v2700
    %2752 = vmatprep.subr.mxu0 0.0
    %2753 = vmatpush1.msra.mxu0 %v2699
    %2754 = vmatprep.subr.mxu0 0.0
    %2755 = vmatpush2.msra.mxu0 0.0
    %2756 = vmatprep.subr.mxu0 0.0
    %2757 = vmatpush2.msra.mxu0 0.0
    %2758 = vmatprep.subr.mxu0 0.0
    %2759 = vmatpush2.msra.mxu0 0.0
    %2760 = vmatprep.subr.mxu0 0.0
    %2761 = vmatpush2.msra.mxu0 0.0
    %2762 = vmatprep.subr.mxu0 0.0
    %2763 = vmatpush2.msra.mxu0 0.0
    %2764 = vmatprep.subr.mxu0 0.0
    %2765 = vmatpush2.msra.mxu0 0.0
    %2766 = vmatprep.subr.mxu0 0.0
    %2767 = vmatpush2.msra.mxu0 0.0
    %2768 = vmatprep.subr.mxu0 0.0
    %2769 = vmatpush2.msra.mxu0 0.0
    %2770 = vmatprep.subr.mxu0 0.0
    %2771 = vmatpush2.msra.mxu0 0.0
    %2772 = vmatprep.subr.mxu0 0.0
    %2773 = vmatpush2.msra.mxu0 0.0
    %2774 = vmatprep.subr.mxu0 0.0
    %2775 = vmatpush2.msra.mxu0 0.0
    %2776 = vmatprep.subr.mxu0 0.0
    %2777 = vmatpush2.msra.mxu0 0.0
    %2778 = vmatprep.subr.mxu0 0.0
    %2779 = vmatpush2.msra.mxu0 0.0
    %2780 = vmatprep.subr.mxu0 0.0
    %2781 = vmatpush2.msra.mxu0 0.0
    %2782 = vmatprep.subr.mxu0 0.0
    %2783 = vmatpush2.msra.mxu0 0.0
    %2784 = vmatprep.subr.mxu0 0.0
    %2785 = vmatpush2.msra.mxu0 0.0
    %2786 = vmatprep.mubr.f32.mxu0 0.0
    %2787 = vmatmul.mubr.f32.gmra.mxu0 %v2603
    %v2788 = vpop.f32.mrf.mxu0
    %v2789 = vadd.f32 %v2720, %v2788
    %v2790 = vpop.f32.mrf.mxu0
    %2791 = vdwg.mxu0
    %vm2792 = vcmask 50176
    %v2793 = vsel %vm2792, %v2789, -inf
    %2794 = vmax.xlane.f32.xlu0 %v2793
    %v2795 = vpop.xlane.xlu0 %2794
    %v2796 = vsub.f32 %v2789, %v2795
    %v2797 = vmul.f32 %v2796, 1.442695
    %v2798 = vpow.pop %v2797
    %v2799 = vsel %vm2792, %v2798, 0.0
    %2800 = vadd.xlane.f32.xlu0 %v2799
    %v2801 = vpop.xlane.xlu0 %2800
    %v2802 = vlog2.pop %v2801
    %v2803 = vmul.f32 %v2802, 0.6931472
    %v2804 = vsub.f32 %v2796, %v2803
    %2805 = vst.msk [vmem:[#allocation2] sm:$0x3] %vm2792, %v2804
    // Predicated region
    $region82: #{pe_model_forward.1} parent=1 // pred_check
      _
    $region83: #{pe_model_forward.1} parent=1 // pred_check_branch
      %2807 = sbr.rel (0) target = $region85
    $region84: #{pe_model_forward.1} parent=1 // pred_region
      %s2809 = ssub.s32 32, 32
      %2810 = vsyncadd [#allocation3], %s2809
      %s2812 = sshll.u32 [#allocation2], 4
      %s2813 = int_to_ptr.vmem [resolvable:$true] %s2812
      %2815 = dma.vmem_to_hbm [thread:$0]  %s2813, 32, %s20, [#allocation3]
    $region85: #{pe_model_forward.1} parent=1 // pred_fallthru
      _
    // Predicated region
    $region86: #{pe_model_forward.1} parent=1 // pred_check
      _
    $region87: #{pe_model_forward.1} parent=1 // pred_check_branch
      %2817 = sbr.rel (0) target = $region89
    $region88: #{pe_model_forward.1} parent=1 // pred_region
      _
    $region89: #{pe_model_forward.1} parent=1 // pred_fallthru
      _
    // Predicated region
    $region90: #{pe_model_forward.1} parent=1 // pred_check
      _
    $region91: #{pe_model_forward.1} parent=1 // pred_check_branch
      %2819 = sbr.rel (0) target = $region93
    $region92: #{pe_model_forward.1} parent=1 // pred_region
      %2820 = dma.done [#allocation3], 32
    $region93: #{pe_model_forward.1} parent=1 // pred_fallthru
      _
    // Predicated region
    $region94: #{pe_model_forward.1} parent=1 // pred_check
      _
    $region95: #{pe_model_forward.1} parent=1 // pred_check_branch
      %2822 = sbr.rel (0) target = $region97
    $region96: #{pe_model_forward.1} parent=1 // pred_region
      _
    $region97: #{pe_model_forward.1} parent=1 // pred_fallthru
      _
    %2823 = vsyncpa [#allocation3], 1

</llo_original>
